<compile_context>
chip_gen: v7x
topology: tpu7x:2x2x1
jax: 0.10.0
libtpu: 0.0.40
codegen_flags: <defaults>
</compile_context>

<pallas_src>
import jax
import jax.numpy as jnp
from jax.experimental import pallas as pl
from jax.experimental.pallas import tpu as pltpu


# ---------------------------------------------------------------------------
# Fused kernel: pad+concat -> conv3x3+ReLU -> conv3x3+ReLU, one image per step
# ---------------------------------------------------------------------------
def _unet_up_fused_kernel(x1_ref, x2u_ref, w1_ref, b1_ref, w2_ref, b2_ref,
                          o_ref, xpad, patches1, y1pad, patches2):
    # x1_ref  : (1, H, W, C1)       skip connection (bf16)
    # x2u_ref : (1, H, W, C2)       upsampled deep features (bf16)
    # w1_ref  : (9*(C1+C2), Cout)   conv1 weights in im2col layout (bf16)
    # b1_ref  : (1, Cout)           conv1 bias (f32)
    # w2_ref  : (9*Cout, Cout)      conv2 weights in im2col layout (bf16)
    # b2_ref  : (1, Cout)           conv2 bias (f32)
    # o_ref   : (1, Cout, H*W)      output, NCHW order, lane-dense last dim
    # xpad    : VMEM (H+2, W+2, C1+C2) f32  zero-padded concat staging
    # patches1: VMEM (H*W, 9*(C1+C2)) bf16  im2col matrix for conv1
    # y1pad   : VMEM (H+2, W+2, Cout) f32   zero-padded conv1 activation
    # patches2: VMEM (H*W, 9*Cout)    bf16  im2col matrix for conv2
    _, H, W, C1 = x1_ref.shape
    C2 = x2u_ref.shape[3]
    Cin = C1 + C2
    Cout = w1_ref.shape[1]

    # ---- zero-pad + channel-concat the two inputs directly in VMEM ---------
    xpad[...] = jnp.zeros(xpad.shape, xpad.dtype)
    xpad[1:H + 1, 1:W + 1, 0:C1] = x1_ref[0].astype(xpad.dtype)
    xpad[1:H + 1, 1:W + 1, C1:Cin] = x2u_ref[0].astype(xpad.dtype)

    # ---- conv1: im2col -> single (H*W, 9*Cin) x (9*Cin, Cout) MXU matmul ---
    for k in range(9):
        ky, kx = k // 3, k % 3
        patches1[:, k * Cin:(k + 1) * Cin] = (
            xpad[ky:ky + H, kx:kx + W, :]
            .reshape(H * W, Cin).astype(patches1.dtype))
    acc1 = jnp.dot(patches1[...], w1_ref[...],
                   preferred_element_type=jnp.float32)
    y1 = jnp.maximum(acc1 + b1_ref[0], 0.0)            # bias + ReLU in f32

    # ---- conv2 (fused): conv1 activation stays in VMEM, never hits HBM -----
    y1pad[...] = jnp.zeros(y1pad.shape, y1pad.dtype)
    y1pad[1:H + 1, 1:W + 1, :] = y1.reshape(H, W, Cout)
    for k in range(9):
        ky, kx = k // 3, k % 3
        patches2[:, k * Cout:(k + 1) * Cout] = (
            y1pad[ky:ky + H, kx:kx + W, :]
            .reshape(H * W, Cout).astype(patches2.dtype))
    acc2 = jnp.dot(patches2[...], w2_ref[...],
                   preferred_element_type=jnp.float32)
    y2 = jnp.maximum(acc2 + b2_ref[0], 0.0)            # (H*W, Cout) f32

    # ---- lane-dense store, already NCHW-ordered: (Cout, H*W) ---------------
    o_ref[0] = y2.T.astype(o_ref.dtype)


# ---------------------------------------------------------------------------
# Bilinear x2 upsample, align_corners=True (== nn.UpsamplingBilinear2d).
# Kept in plain JAX (gather + lerp on the small deep-feature tensor).
# ---------------------------------------------------------------------------
def upsample_bilinear_x2_align_corners(x_nhwc):
    N, H, W, C = x_nhwc.shape

    def coords(n_in, n_out):
        if n_in == 1:
            z = jnp.zeros((n_out,), jnp.int32)
            return z, z, jnp.zeros((n_out,), jnp.float32)
        src = jnp.arange(n_out, dtype=jnp.float32) * (n_in - 1) / (n_out - 1)
        i0 = jnp.clip(jnp.floor(src).astype(jnp.int32), 0, n_in - 2)
        frac = src - i0.astype(jnp.float32)
        return i0, i0 + 1, frac

    h0, h1, hf = coords(H, 2 * H)
    w0, w1, wf = coords(W, 2 * W)

    xh = (x_nhwc[:, h0] * (1.0 - hf)[None, :, None, None]
          + x_nhwc[:, h1] * hf[None, :, None, None])
    out = (xh[:, :, w0] * (1.0 - wf)[None, None, :, None]
           + xh[:, :, w1] * wf[None, None, :, None])
    return out


# ---------------------------------------------------------------------------
# unetUp forward (wrapper around the fused kernel).
# ---------------------------------------------------------------------------
def unet_up_forward(inputs1_nchw, inputs2_nchw, params):
    N, C1, H, W = inputs1_nchw.shape
    C2 = inputs2_nchw.shape[1]
    Cin = C1 + C2
    Cout = params["b1"].shape[0]

    # TODO(synk): fold the NCHW->NHWC input transposes and the x2 bilinear
    # upsample into the kernel (align_corners weights are compile-time
    # constants) to remove the remaining wrapper-side HBM round trips.
    x1 = jnp.transpose(inputs1_nchw, (0, 2, 3, 1)).astype(jnp.bfloat16)
    x2 = jnp.transpose(inputs2_nchw, (0, 2, 3, 1))
    x2_up = upsample_bilinear_x2_align_corners(x2).astype(jnp.bfloat16)

    # Weights in im2col layout (9*Cin, Cout); bf16 MXU operands, f32 biases.
    w1 = params["w1"].reshape(9 * Cin, Cout).astype(jnp.bfloat16)
    w2 = params["w2"].reshape(9 * Cout, Cout).astype(jnp.bfloat16)
    b1 = params["b1"].reshape(1, Cout).astype(jnp.float32)
    b2 = params["b2"].reshape(1, Cout).astype(jnp.float32)

    # TODO(synk): at production decoder sizes (H,W >= 256, channels >= 128)
    # add H-strip tiling with a 2-row halo (grid=(N, H//TH)) so the working
    # set fits v7x's 64 MiB VMEM and both TensorCores get several grid steps.
    out_flat = pl.pallas_call(
        _unet_up_fused_kernel,
        out_shape=jax.ShapeDtypeStruct((N, Cout, H * W), jnp.float32),
        grid_spec=pltpu.PrefetchScalarGridSpec(
            num_scalar_prefetch=0,
            grid=(N,),
            in_specs=[
                pl.BlockSpec((1, H, W, C1), lambda n: (n, 0, 0, 0)),
                pl.BlockSpec((1, H, W, C2), lambda n: (n, 0, 0, 0)),
                pl.BlockSpec((9 * Cin, Cout), lambda n: (0, 0)),
                pl.BlockSpec((1, Cout), lambda n: (0, 0)),
                pl.BlockSpec((9 * Cout, Cout), lambda n: (0, 0)),
                pl.BlockSpec((1, Cout), lambda n: (0, 0)),
            ],
            out_specs=pl.BlockSpec((1, Cout, H * W), lambda n: (n, 0, 0)),
            scratch_shapes=[
                pltpu.VMEM((H + 2, W + 2, Cin), jnp.float32),   # xpad
                pltpu.VMEM((H * W, 9 * Cin), jnp.bfloat16),     # patches1
                pltpu.VMEM((H + 2, W + 2, Cout), jnp.float32),  # y1pad
                pltpu.VMEM((H * W, 9 * Cout), jnp.bfloat16),    # patches2
            ],
        ),
        compiler_params=pltpu.CompilerParams(
            dimension_semantics=("parallel",),
            # Raised scoped-VMEM budget (defaults 16/32 MiB); kept safely
            # below v7x's 64 MiB physical VMEM so it is portable.
            vmem_limit_bytes=48 * 1024 * 1024,
        ),
    )(x1, x2_up, w1, b1, w2, b2)

    # Kernel already emits NCHW order with a lane-dense H*W last dim; this
    # reshape is free (row-major contiguous) — no output transpose needed.
    return out_flat.reshape(N, Cout, H, W)


def init_params(key, in_size, out_size):
    k1, k2, k3, k4 = jax.random.split(key, 4)
    # PyTorch conv weight layout is (Cout, Cin, 3, 3); store transposed to
    # (3, 3, Cin, Cout) (HWIO) for the channels-last kernel.
    w1_torch = jax.random.normal(k1, (out_size, in_size, 3, 3), jnp.float32) * 0.05
    w2_torch = jax.random.normal(k2, (out_size, out_size, 3, 3), jnp.float32) * 0.05
    b1 = jax.random.normal(k3, (out_size,), jnp.float32) * 0.05
    b2 = jax.random.normal(k4, (out_size,), jnp.float32) * 0.05
    return {
        "w1": jnp.transpose(w1_torch, (2, 3, 1, 0)),
        "b1": b1,
        "w2": jnp.transpose(w2_torch, (2, 3, 1, 0)),
        "b2": b2,
    }


# Pure-JAX f32 reference of the PyTorch unetUp forward (for a sanity check).
def reference_forward(inputs1_nchw, inputs2_nchw, params):
    x2_nhwc = jnp.transpose(inputs2_nchw, (0, 2, 3, 1))
    x2_up = jnp.transpose(upsample_bilinear_x2_align_corners(x2_nhwc),
                          (0, 3, 1, 2))
    x = jnp.concatenate([inputs1_nchw, x2_up], axis=1)

    def conv_relu(x, w_hwio, b):
        y = jax.lax.conv_general_dilated(
            x, w_hwio, window_strides=(1, 1), padding=((1, 1), (1, 1)),
            dimension_numbers=("NCHW", "HWIO", "NCHW"))
        return jnp.maximum(y + b[None, :, None, None], 0.0)

    x = conv_relu(x, params["w1"], params["b1"])
    x = conv_relu(x, params["w2"], params["b2"])
    return x


if __name__ == "__main__":
    key = jax.random.PRNGKey(0)
    k_in1, k_in2, k_par = jax.random.split(key, 3)

    # Small UNet-decoder-like shapes:
    #   inputs1: skip connection  (N, C1, H, W)     = (2, 8, 16, 16)
    #   inputs2: deeper features  (N, C2, H/2, W/2) = (2, 4, 8, 8)
    #   in_size = C1 + C2 = 12, out_size = 8
    N, C1, H, W = 2, 8, 16, 16
    C2 = 4
    in_size, out_size = C1 + C2, 8

    inputs1 = jax.random.normal(k_in1, (N, C1, H, W), jnp.float32)
    inputs2 = jax.random.normal(k_in2, (N, C2, H // 2, W // 2), jnp.float32)
    params = init_params(k_par, in_size, out_size)

    out = jax.jit(unet_up_forward)(inputs1, inputs2, params)
    out = jax.block_until_ready(out)

    assert out.shape == (N, out_size, H, W), out.shape
    assert bool(jnp.all(out >= 0.0))  # ReLU output

    # Loose tolerance: kernel uses bf16 MXU operands with f32 accumulation.
    ref = reference_forward(inputs1, inputs2, params)
    assert bool(jnp.allclose(out, ref, rtol=1e-1, atol=5e-2)), (
        float(jnp.max(jnp.abs(out - ref))))

    print("KERNEL_OK")
</pallas_src>

<mosaic_0001>
module attributes {stable_mosaic.version = 11 : i64} {
  func.func @_unet_up_fused_kernel(%arg0: i32, %arg1: memref<1x16x16x8xbf16, #tpu.memory_space<vmem>>, %arg2: memref<1x16x16x4xbf16, #tpu.memory_space<vmem>>, %arg3: memref<108x8xbf16, #tpu.memory_space<vmem>>, %arg4: memref<1x8xf32, #tpu.memory_space<vmem>>, %arg5: memref<72x8xbf16, #tpu.memory_space<vmem>>, %arg6: memref<1x8xf32, #tpu.memory_space<vmem>>, %arg7: memref<1x8x256xf32, #tpu.memory_space<vmem>>, %arg8: memref<18x18x12xf32, #tpu.memory_space<vmem>>, %arg9: memref<256x108xbf16, #tpu.memory_space<vmem>>, %arg10: memref<18x18x8xf32, #tpu.memory_space<vmem>>, %arg11: memref<256x72xbf16, #tpu.memory_space<vmem>>) attributes {dimension_semantics = [#tpu.dimension_semantics<parallel>], iteration_bounds = array<i64: 2>, scalar_prefetch = 0 : i64, scratch_operands = 4 : i64, tpu.core_type = #tpu.core_type<tc>, window_params = [{transform_indices = @transform_0, window_bounds = array<i64: 1, 16, 16, 8>}, {transform_indices = @transform_1, window_bounds = array<i64: 1, 16, 16, 4>}, {pipeline_mode = #tpu.pipeline_mode<synchronous>, transform_indices = @transform_2, window_bounds = array<i64: 108, 8>}, {pipeline_mode = #tpu.pipeline_mode<synchronous>, transform_indices = @transform_3, window_bounds = array<i64: 1, 8>}, {pipeline_mode = #tpu.pipeline_mode<synchronous>, transform_indices = @transform_4, window_bounds = array<i64: 72, 8>}, {pipeline_mode = #tpu.pipeline_mode<synchronous>, transform_indices = @transform_5, window_bounds = array<i64: 1, 8>}, {transform_indices = @transform_6, window_bounds = array<i64: 1, 8, 256>}]} {
    %cst = arith.constant 0.000000e+00 : f32
    %0 = vector.broadcast %cst : f32 to vector<18x18x12xf32>
    %c0 = arith.constant 0 : index
    %c0_0 = arith.constant 0 : index
    %c0_1 = arith.constant 0 : index
    %1 = vector.load %arg8[%c0, %c0_0, %c0_1] : memref<18x18x12xf32, #tpu.memory_space<vmem>>, vector<18x18x12xf32>
    tpu.vector_store %arg8[%c0, %c0_0, %c0_1], %0 {strides = array<i32>} : memref<18x18x12xf32, #tpu.memory_space<vmem>>, vector<18x18x12xf32>,
    %c0_2 = arith.constant 0 : index
    %c0_3 = arith.constant 0 : index
    %c0_4 = arith.constant 0 : index
    %c0_5 = arith.constant 0 : index
    %2 = vector.load %arg1[%c0_2, %c0_3, %c0_4, %c0_5] : memref<1x16x16x8xbf16, #tpu.memory_space<vmem>>, vector<1x16x16x8xbf16>
    %3 = vector.shape_cast %2 : vector<1x16x16x8xbf16> to vector<16x16x8xbf16>
    %4 = arith.extf %3 : vector<16x16x8xbf16> to vector<16x16x8xf32>
    %c1 = arith.constant 1 : index
    %c1_6 = arith.constant 1 : index
    %c0_7 = arith.constant 0 : index
    %5 = vector.load %arg8[%c1, %c1_6, %c0_7] : memref<18x18x12xf32, #tpu.memory_space<vmem>>, vector<16x16x8xf32>
    tpu.vector_store %arg8[%c1, %c1_6, %c0_7], %4 {strides = array<i32>} : memref<18x18x12xf32, #tpu.memory_space<vmem>>, vector<16x16x8xf32>,
    %c0_8 = arith.constant 0 : index
    %c0_9 = arith.constant 0 : index
    %c0_10 = arith.constant 0 : index
    %c0_11 = arith.constant 0 : index
    %6 = vector.load %arg2[%c0_8, %c0_9, %c0_10, %c0_11] : memref<1x16x16x4xbf16, #tpu.memory_space<vmem>>, vector<1x16x16x4xbf16>
    %7 = vector.shape_cast %6 : vector<1x16x16x4xbf16> to vector<16x16x4xbf16>
    %8 = arith.extf %7 : vector<16x16x4xbf16> to vector<16x16x4xf32>
    %c1_12 = arith.constant 1 : index
    %c1_13 = arith.constant 1 : index
    %c8 = arith.constant 8 : index
    %9 = vector.load %arg8[%c1_12, %c1_13, %c8] : memref<18x18x12xf32, #tpu.memory_space<vmem>>, vector<16x16x4xf32>
    tpu.vector_store %arg8[%c1_12, %c1_13, %c8], %8 {strides = array<i32>} : memref<18x18x12xf32, #tpu.memory_space<vmem>>, vector<16x16x4xf32>,
    %c0_14 = arith.constant 0 : index
    %c0_15 = arith.constant 0 : index
    %c0_16 = arith.constant 0 : index
    %10 = vector.load %arg8[%c0_14, %c0_15, %c0_16] : memref<18x18x12xf32, #tpu.memory_space<vmem>>, vector<16x16x12xf32>
    %11 = vector.shape_cast %10 : vector<16x16x12xf32> to vector<256x12xf32>
    %12 = arith.truncf %11 : vector<256x12xf32> to vector<256x12xbf16>
    %c0_17 = arith.constant 0 : index
    %c0_18 = arith.constant 0 : index
    %13 = vector.load %arg9[%c0_17, %c0_18] : memref<256x108xbf16, #tpu.memory_space<vmem>>, vector<256x12xbf16>
    tpu.vector_store %arg9[%c0_17, %c0_18], %12 {strides = array<i32>} : memref<256x108xbf16, #tpu.memory_space<vmem>>, vector<256x12xbf16>,
    %c0_19 = arith.constant 0 : index
    %c1_20 = arith.constant 1 : index
    %c0_21 = arith.constant 0 : index
    %14 = vector.load %arg8[%c0_19, %c1_20, %c0_21] : memref<18x18x12xf32, #tpu.memory_space<vmem>>, vector<16x16x12xf32>
    %15 = vector.shape_cast %14 : vector<16x16x12xf32> to vector<256x12xf32>
    %16 = arith.truncf %15 : vector<256x12xf32> to vector<256x12xbf16>
    %c0_22 = arith.constant 0 : index
    %c12 = arith.constant 12 : index
    %17 = vector.load %arg9[%c0_22, %c12] : memref<256x108xbf16, #tpu.memory_space<vmem>>, vector<256x12xbf16>
    tpu.vector_store %arg9[%c0_22, %c12], %16 {strides = array<i32>} : memref<256x108xbf16, #tpu.memory_space<vmem>>, vector<256x12xbf16>,
    %c0_23 = arith.constant 0 : index
    %c2 = arith.constant 2 : index
    %c0_24 = arith.constant 0 : index
    %18 = vector.load %arg8[%c0_23, %c2, %c0_24] : memref<18x18x12xf32, #tpu.memory_space<vmem>>, vector<16x16x12xf32>
    %19 = vector.shape_cast %18 : vector<16x16x12xf32> to vector<256x12xf32>
    %20 = arith.truncf %19 : vector<256x12xf32> to vector<256x12xbf16>
    %c0_25 = arith.constant 0 : index
    %c24 = arith.constant 24 : index
    %21 = vector.load %arg9[%c0_25, %c24] : memref<256x108xbf16, #tpu.memory_space<vmem>>, vector<256x12xbf16>
    tpu.vector_store %arg9[%c0_25, %c24], %20 {strides = array<i32>} : memref<256x108xbf16, #tpu.memory_space<vmem>>, vector<256x12xbf16>,
    %c1_26 = arith.constant 1 : index
    %c0_27 = arith.constant 0 : index
    %c0_28 = arith.constant 0 : index
    %22 = vector.load %arg8[%c1_26, %c0_27, %c0_28] : memref<18x18x12xf32, #tpu.memory_space<vmem>>, vector<16x16x12xf32>
    %23 = vector.shape_cast %22 : vector<16x16x12xf32> to vector<256x12xf32>
    %24 = arith.truncf %23 : vector<256x12xf32> to vector<256x12xbf16>
    %c0_29 = arith.constant 0 : index
    %c36 = arith.constant 36 : index
    %25 = vector.load %arg9[%c0_29, %c36] : memref<256x108xbf16, #tpu.memory_space<vmem>>, vector<256x12xbf16>
    tpu.vector_store %arg9[%c0_29, %c36], %24 {strides = array<i32>} : memref<256x108xbf16, #tpu.memory_space<vmem>>, vector<256x12xbf16>,
    %c1_30 = arith.constant 1 : index
    %c1_31 = arith.constant 1 : index
    %c0_32 = arith.constant 0 : index
    %26 = vector.load %arg8[%c1_30, %c1_31, %c0_32] : memref<18x18x12xf32, #tpu.memory_space<vmem>>, vector<16x16x12xf32>
    %27 = vector.shape_cast %26 : vector<16x16x12xf32> to vector<256x12xf32>
    %28 = arith.truncf %27 : vector<256x12xf32> to vector<256x12xbf16>
    %c0_33 = arith.constant 0 : index
    %c48 = arith.constant 48 : index
    %29 = vector.load %arg9[%c0_33, %c48] : memref<256x108xbf16, #tpu.memory_space<vmem>>, vector<256x12xbf16>
    tpu.vector_store %arg9[%c0_33, %c48], %28 {strides = array<i32>} : memref<256x108xbf16, #tpu.memory_space<vmem>>, vector<256x12xbf16>,
    %c1_34 = arith.constant 1 : index
    %c2_35 = arith.constant 2 : index
    %c0_36 = arith.constant 0 : index
    %30 = vector.load %arg8[%c1_34, %c2_35, %c0_36] : memref<18x18x12xf32, #tpu.memory_space<vmem>>, vector<16x16x12xf32>
    %31 = vector.shape_cast %30 : vector<16x16x12xf32> to vector<256x12xf32>
    %32 = arith.truncf %31 : vector<256x12xf32> to vector<256x12xbf16>
    %c0_37 = arith.constant 0 : index
    %c60 = arith.constant 60 : index
    %33 = vector.load %arg9[%c0_37, %c60] : memref<256x108xbf16, #tpu.memory_space<vmem>>, vector<256x12xbf16>
    tpu.vector_store %arg9[%c0_37, %c60], %32 {strides = array<i32>} : memref<256x108xbf16, #tpu.memory_space<vmem>>, vector<256x12xbf16>,
    %c2_38 = arith.constant 2 : index
    %c0_39 = arith.constant 0 : index
    %c0_40 = arith.constant 0 : index
    %34 = vector.load %arg8[%c2_38, %c0_39, %c0_40] : memref<18x18x12xf32, #tpu.memory_space<vmem>>, vector<16x16x12xf32>
    %35 = vector.shape_cast %34 : vector<16x16x12xf32> to vector<256x12xf32>
    %36 = arith.truncf %35 : vector<256x12xf32> to vector<256x12xbf16>
    %c0_41 = arith.constant 0 : index
    %c72 = arith.constant 72 : index
    %37 = vector.load %arg9[%c0_41, %c72] : memref<256x108xbf16, #tpu.memory_space<vmem>>, vector<256x12xbf16>
    tpu.vector_store %arg9[%c0_41, %c72], %36 {strides = array<i32>} : memref<256x108xbf16, #tpu.memory_space<vmem>>, vector<256x12xbf16>,
    %c2_42 = arith.constant 2 : index
    %c1_43 = arith.constant 1 : index
    %c0_44 = arith.constant 0 : index
    %38 = vector.load %arg8[%c2_42, %c1_43, %c0_44] : memref<18x18x12xf32, #tpu.memory_space<vmem>>, vector<16x16x12xf32>
    %39 = vector.shape_cast %38 : vector<16x16x12xf32> to vector<256x12xf32>
    %40 = arith.truncf %39 : vector<256x12xf32> to vector<256x12xbf16>
    %c0_45 = arith.constant 0 : index
    %c84 = arith.constant 84 : index
    %41 = vector.load %arg9[%c0_45, %c84] : memref<256x108xbf16, #tpu.memory_space<vmem>>, vector<256x12xbf16>
    tpu.vector_store %arg9[%c0_45, %c84], %40 {strides = array<i32>} : memref<256x108xbf16, #tpu.memory_space<vmem>>, vector<256x12xbf16>,
    %c2_46 = arith.constant 2 : index
    %c2_47 = arith.constant 2 : index
    %c0_48 = arith.constant 0 : index
    %42 = vector.load %arg8[%c2_46, %c2_47, %c0_48] : memref<18x18x12xf32, #tpu.memory_space<vmem>>, vector<16x16x12xf32>
    %43 = vector.shape_cast %42 : vector<16x16x12xf32> to vector<256x12xf32>
    %44 = arith.truncf %43 : vector<256x12xf32> to vector<256x12xbf16>
    %c0_49 = arith.constant 0 : index
    %c96 = arith.constant 96 : index
    %45 = vector.load %arg9[%c0_49, %c96] : memref<256x108xbf16, #tpu.memory_space<vmem>>, vector<256x12xbf16>
    tpu.vector_store %arg9[%c0_49, %c96], %44 {strides = array<i32>} : memref<256x108xbf16, #tpu.memory_space<vmem>>, vector<256x12xbf16>,
    %c0_50 = arith.constant 0 : index
    %c0_51 = arith.constant 0 : index
    %46 = vector.load %arg9[%c0_50, %c0_51] : memref<256x108xbf16, #tpu.memory_space<vmem>>, vector<256x108xbf16>
    %c0_52 = arith.constant 0 : index
    %c0_53 = arith.constant 0 : index
    %47 = vector.load %arg3[%c0_52, %c0_53] : memref<108x8xbf16, #tpu.memory_space<vmem>>, vector<108x8xbf16>
    %cst_54 = arith.constant dense<0.000000e+00> : vector<256x8xf32>
    %48 = tpu.matmul %46, %47, %cst_54 {dimension_numbers = #tpu.dot_dimension_numbers<[1], [0], [0], [1], [0, 0, 1, 1], [], []>} : vector<256x108xbf16>, vector<108x8xbf16>, vector<256x8xf32> -> vector<256x8xf32>
    %c0_55 = arith.constant 0 : index
    %c0_56 = arith.constant 0 : index
    %49 = vector.load %arg4[%c0_55, %c0_56] : memref<1x8xf32, #tpu.memory_space<vmem>>, vector<1x8xf32>
    %50 = vector.shape_cast %49 : vector<1x8xf32> to vector<8xf32>
    %51 = vector.shape_cast %50 : vector<8xf32> to vector<1x8xf32>
    %52 = vector.broadcast %51 : vector<1x8xf32> to vector<256x8xf32>
    %53 = arith.addf %48, %52 : vector<256x8xf32>
    %cst_57 = arith.constant 0.000000e+00 : f32
    %54 = vector.broadcast %cst_57 : f32 to vector<256x8xf32>
    %55 = arith.maximumf %53, %54 : vector<256x8xf32>
    %cst_58 = arith.constant 0.000000e+00 : f32
    %56 = vector.broadcast %cst_58 : f32 to vector<18x18x8xf32>
    %c0_59 = arith.constant 0 : index
    %c0_60 = arith.constant 0 : index
    %c0_61 = arith.constant 0 : index
    %57 = vector.load %arg10[%c0_59, %c0_60, %c0_61] : memref<18x18x8xf32, #tpu.memory_space<vmem>>, vector<18x18x8xf32>
    tpu.vector_store %arg10[%c0_59, %c0_60, %c0_61], %56 {strides = array<i32>} : memref<18x18x8xf32, #tpu.memory_space<vmem>>, vector<18x18x8xf32>,
    %58 = vector.shape_cast %55 : vector<256x8xf32> to vector<16x16x8xf32>
    %c1_62 = arith.constant 1 : index
    %c1_63 = arith.constant 1 : index
    %c0_64 = arith.constant 0 : index
    %59 = vector.load %arg10[%c1_62, %c1_63, %c0_64] : memref<18x18x8xf32, #tpu.memory_space<vmem>>, vector<16x16x8xf32>
    tpu.vector_store %arg10[%c1_62, %c1_63, %c0_64], %58 {strides = array<i32>} : memref<18x18x8xf32, #tpu.memory_space<vmem>>, vector<16x16x8xf32>,
    %c0_65 = arith.constant 0 : index
    %c0_66 = arith.constant 0 : index
    %c0_67 = arith.constant 0 : index
    %60 = vector.load %arg10[%c0_65, %c0_66, %c0_67] : memref<18x18x8xf32, #tpu.memory_space<vmem>>, vector<16x16x8xf32>
    %61 = vector.shape_cast %60 : vector<16x16x8xf32> to vector<256x8xf32>
    %62 = arith.truncf %61 : vector<256x8xf32> to vector<256x8xbf16>
    %c0_68 = arith.constant 0 : index
    %c0_69 = arith.constant 0 : index
    %63 = vector.load %arg11[%c0_68, %c0_69] : memref<256x72xbf16, #tpu.memory_space<vmem>>, vector<256x8xbf16>
    tpu.vector_store %arg11[%c0_68, %c0_69], %62 {strides = array<i32>} : memref<256x72xbf16, #tpu.memory_space<vmem>>, vector<256x8xbf16>,
    %c0_70 = arith.constant 0 : index
    %c1_71 = arith.constant 1 : index
    %c0_72 = arith.constant 0 : index
    %64 = vector.load %arg10[%c0_70, %c1_71, %c0_72] : memref<18x18x8xf32, #tpu.memory_space<vmem>>, vector<16x16x8xf32>
    %65 = vector.shape_cast %64 : vector<16x16x8xf32> to vector<256x8xf32>
    %66 = arith.truncf %65 : vector<256x8xf32> to vector<256x8xbf16>
    %c0_73 = arith.constant 0 : index
    %c8_74 = arith.constant 8 : index
    %67 = vector.load %arg11[%c0_73, %c8_74] : memref<256x72xbf16, #tpu.memory_space<vmem>>, vector<256x8xbf16>
    tpu.vector_store %arg11[%c0_73, %c8_74], %66 {strides = array<i32>} : memref<256x72xbf16, #tpu.memory_space<vmem>>, vector<256x8xbf16>,
    %c0_75 = arith.constant 0 : index
    %c2_76 = arith.constant 2 : index
    %c0_77 = arith.constant 0 : index
    %68 = vector.load %arg10[%c0_75, %c2_76, %c0_77] : memref<18x18x8xf32, #tpu.memory_space<vmem>>, vector<16x16x8xf32>
    %69 = vector.shape_cast %68 : vector<16x16x8xf32> to vector<256x8xf32>
    %70 = arith.truncf %69 : vector<256x8xf32> to vector<256x8xbf16>
    %c0_78 = arith.constant 0 : index
    %c16 = arith.constant 16 : index
    %71 = vector.load %arg11[%c0_78, %c16] : memref<256x72xbf16, #tpu.memory_space<vmem>>, vector<256x8xbf16>
    tpu.vector_store %arg11[%c0_78, %c16], %70 {strides = array<i32>} : memref<256x72xbf16, #tpu.memory_space<vmem>>, vector<256x8xbf16>,
    %c1_79 = arith.constant 1 : index
    %c0_80 = arith.constant 0 : index
    %c0_81 = arith.constant 0 : index
    %72 = vector.load %arg10[%c1_79, %c0_80, %c0_81] : memref<18x18x8xf32, #tpu.memory_space<vmem>>, vector<16x16x8xf32>
    %73 = vector.shape_cast %72 : vector<16x16x8xf32> to vector<256x8xf32>
    %74 = arith.truncf %73 : vector<256x8xf32> to vector<256x8xbf16>
    %c0_82 = arith.constant 0 : index
    %c24_83 = arith.constant 24 : index
    %75 = vector.load %arg11[%c0_82, %c24_83] : memref<256x72xbf16, #tpu.memory_space<vmem>>, vector<256x8xbf16>
    tpu.vector_store %arg11[%c0_82, %c24_83], %74 {strides = array<i32>} : memref<256x72xbf16, #tpu.memory_space<vmem>>, vector<256x8xbf16>,
    %c1_84 = arith.constant 1 : index
    %c1_85 = arith.constant 1 : index
    %c0_86 = arith.constant 0 : index
    %76 = vector.load %arg10[%c1_84, %c1_85, %c0_86] : memref<18x18x8xf32, #tpu.memory_space<vmem>>, vector<16x16x8xf32>
    %77 = vector.shape_cast %76 : vector<16x16x8xf32> to vector<256x8xf32>
    %78 = arith.truncf %77 : vector<256x8xf32> to vector<256x8xbf16>
    %c0_87 = arith.constant 0 : index
    %c32 = arith.constant 32 : index
    %79 = vector.load %arg11[%c0_87, %c32] : memref<256x72xbf16, #tpu.memory_space<vmem>>, vector<256x8xbf16>
    tpu.vector_store %arg11[%c0_87, %c32], %78 {strides = array<i32>} : memref<256x72xbf16, #tpu.memory_space<vmem>>, vector<256x8xbf16>,
    %c1_88 = arith.constant 1 : index
    %c2_89 = arith.constant 2 : index
    %c0_90 = arith.constant 0 : index
    %80 = vector.load %arg10[%c1_88, %c2_89, %c0_90] : memref<18x18x8xf32, #tpu.memory_space<vmem>>, vector<16x16x8xf32>
    %81 = vector.shape_cast %80 : vector<16x16x8xf32> to vector<256x8xf32>
    %82 = arith.truncf %81 : vector<256x8xf32> to vector<256x8xbf16>
    %c0_91 = arith.constant 0 : index
    %c40 = arith.constant 40 : index
    %83 = vector.load %arg11[%c0_91, %c40] : memref<256x72xbf16, #tpu.memory_space<vmem>>, vector<256x8xbf16>
    tpu.vector_store %arg11[%c0_91, %c40], %82 {strides = array<i32>} : memref<256x72xbf16, #tpu.memory_space<vmem>>, vector<256x8xbf16>,
    %c2_92 = arith.constant 2 : index
    %c0_93 = arith.constant 0 : index
    %c0_94 = arith.constant 0 : index
    %84 = vector.load %arg10[%c2_92, %c0_93, %c0_94] : memref<18x18x8xf32, #tpu.memory_space<vmem>>, vector<16x16x8xf32>
    %85 = vector.shape_cast %84 : vector<16x16x8xf32> to vector<256x8xf32>
    %86 = arith.truncf %85 : vector<256x8xf32> to vector<256x8xbf16>
    %c0_95 = arith.constant 0 : index
    %c48_96 = arith.constant 48 : index
    %87 = vector.load %arg11[%c0_95, %c48_96] : memref<256x72xbf16, #tpu.memory_space<vmem>>, vector<256x8xbf16>
    tpu.vector_store %arg11[%c0_95, %c48_96], %86 {strides = array<i32>} : memref<256x72xbf16, #tpu.memory_space<vmem>>, vector<256x8xbf16>,
    %c2_97 = arith.constant 2 : index
    %c1_98 = arith.constant 1 : index
    %c0_99 = arith.constant 0 : index
    %88 = vector.load %arg10[%c2_97, %c1_98, %c0_99] : memref<18x18x8xf32, #tpu.memory_space<vmem>>, vector<16x16x8xf32>
    %89 = vector.shape_cast %88 : vector<16x16x8xf32> to vector<256x8xf32>
    %90 = arith.truncf %89 : vector<256x8xf32> to vector<256x8xbf16>
    %c0_100 = arith.constant 0 : index
    %c56 = arith.constant 56 : index
    %91 = vector.load %arg11[%c0_100, %c56] : memref<256x72xbf16, #tpu.memory_space<vmem>>, vector<256x8xbf16>
    tpu.vector_store %arg11[%c0_100, %c56], %90 {strides = array<i32>} : memref<256x72xbf16, #tpu.memory_space<vmem>>, vector<256x8xbf16>,
    %c2_101 = arith.constant 2 : index
    %c2_102 = arith.constant 2 : index
    %c0_103 = arith.constant 0 : index
    %92 = vector.load %arg10[%c2_101, %c2_102, %c0_103] : memref<18x18x8xf32, #tpu.memory_space<vmem>>, vector<16x16x8xf32>
    %93 = vector.shape_cast %92 : vector<16x16x8xf32> to vector<256x8xf32>
    %94 = arith.truncf %93 : vector<256x8xf32> to vector<256x8xbf16>
    %c0_104 = arith.constant 0 : index
    %c64 = arith.constant 64 : index
    %95 = vector.load %arg11[%c0_104, %c64] : memref<256x72xbf16, #tpu.memory_space<vmem>>, vector<256x8xbf16>
    tpu.vector_store %arg11[%c0_104, %c64], %94 {strides = array<i32>} : memref<256x72xbf16, #tpu.memory_space<vmem>>, vector<256x8xbf16>,
    %c0_105 = arith.constant 0 : index
    %c0_106 = arith.constant 0 : index
    %96 = vector.load %arg11[%c0_105, %c0_106] : memref<256x72xbf16, #tpu.memory_space<vmem>>, vector<256x72xbf16>
    %c0_107 = arith.constant 0 : index
    %c0_108 = arith.constant 0 : index
    %97 = vector.load %arg5[%c0_107, %c0_108] : memref<72x8xbf16, #tpu.memory_space<vmem>>, vector<72x8xbf16>
    %cst_109 = arith.constant dense<0.000000e+00> : vector<256x8xf32>
    %98 = tpu.matmul %96, %97, %cst_109 {dimension_numbers = #tpu.dot_dimension_numbers<[1], [0], [0], [1], [0, 0, 1, 1], [], []>} : vector<256x72xbf16>, vector<72x8xbf16>, vector<256x8xf32> -> vector<256x8xf32>
    %c0_110 = arith.constant 0 : index
    %c0_111 = arith.constant 0 : index
    %99 = vector.load %arg6[%c0_110, %c0_111] : memref<1x8xf32, #tpu.memory_space<vmem>>, vector<1x8xf32>
    %100 = vector.shape_cast %99 : vector<1x8xf32> to vector<8xf32>
    %101 = vector.shape_cast %100 : vector<8xf32> to vector<1x8xf32>
    %102 = vector.broadcast %101 : vector<1x8xf32> to vector<256x8xf32>
    %103 = arith.addf %98, %102 : vector<256x8xf32>
    %cst_112 = arith.constant 0.000000e+00 : f32
    %104 = vector.broadcast %cst_112 : f32 to vector<256x8xf32>
    %105 = arith.maximumf %103, %104 : vector<256x8xf32>
    %106 = tpu.transpose %105, [1, 0] : vector<256x8xf32> -> vector<8x256xf32>
    %c0_113 = arith.constant 0 : index
    %c0_114 = arith.constant 0 : index
    %c0_115 = arith.constant 0 : index
    %107 = vector.load %arg7[%c0_113, %c0_114, %c0_115] : memref<1x8x256xf32, #tpu.memory_space<vmem>>, vector<1x8x256xf32>
    %108 = vector.shape_cast %107 : vector<1x8x256xf32> to vector<8x256xf32>
    %109 = vector.shape_cast %106 : vector<8x256xf32> to vector<1x8x256xf32>
    tpu.vector_store %arg7[%c0_113, %c0_114, %c0_115], %109 {strides = array<i32>} : memref<1x8x256xf32, #tpu.memory_space<vmem>>, vector<1x8x256xf32>,
    return
  }
  func.func @transform_0(%arg0: i32) -> (i32, i32, i32, i32) {
    %c0_i32 = arith.constant 0 : i32
    %c0_i32_0 = arith.constant 0 : i32
    %c0_i32_1 = arith.constant 0 : i32
    %c0_i32_2 = arith.constant 0 : i32
    return %arg0, %c0_i32, %c0_i32_0, %c0_i32_1 : i32, i32, i32, i32
  }
  func.func @transform_1(%arg0: i32) -> (i32, i32, i32, i32) {
    %c0_i32 = arith.constant 0 : i32
    %c0_i32_0 = arith.constant 0 : i32
    %c0_i32_1 = arith.constant 0 : i32
    %c0_i32_2 = arith.constant 0 : i32
    return %arg0, %c0_i32, %c0_i32_0, %c0_i32_1 : i32, i32, i32, i32
  }
  func.func @transform_2(%arg0: i32) -> (i32, i32) {
    %c0_i32 = arith.constant 0 : i32
    %c0_i32_0 = arith.constant 0 : i32
    %c0_i32_1 = arith.constant 0 : i32
    return %c0_i32, %c0_i32_0 : i32, i32
  }
  func.func @transform_3(%arg0: i32) -> (i32, i32) {
    %c0_i32 = arith.constant 0 : i32
    %c0_i32_0 = arith.constant 0 : i32
    %c0_i32_1 = arith.constant 0 : i32
    return %c0_i32, %c0_i32_0 : i32, i32
  }
  func.func @transform_4(%arg0: i32) -> (i32, i32) {
    %c0_i32 = arith.constant 0 : i32
    %c0_i32_0 = arith.constant 0 : i32
    %c0_i32_1 = arith.constant 0 : i32
    return %c0_i32, %c0_i32_0 : i32, i32
  }
  func.func @transform_5(%arg0: i32) -> (i32, i32) {
    %c0_i32 = arith.constant 0 : i32
    %c0_i32_0 = arith.constant 0 : i32
    %c0_i32_1 = arith.constant 0 : i32
    return %c0_i32, %c0_i32_0 : i32, i32
  }
  func.func @transform_6(%arg0: i32) -> (i32, i32, i32) {
    %c0_i32 = arith.constant 0 : i32
    %c0_i32_0 = arith.constant 0 : i32
    %c0_i32_1 = arith.constant 0 : i32
    return %arg0, %c0_i32, %c0_i32_0 : i32, i32, i32
  }
}

</mosaic_0001>

<llo_original>
// kernel: unet_up_forward.1
$region0: #{unet_up_forward.1}
  #allocation0 [shape = 'u32[]', space=smem, size = 0x4, offset = 0x4, fixed_abs, tag = 'smem constant byte address 0x4 - core index']
  #allocation1 [shape = 'u32[144,128]{1,0:T(1,128)}', space=vmem, size = 0x12000, scoped, tag = 'internal scratch']
  #allocation2 [shape = 'f32[18,18,12]{2,1,0:T(8,128)}', space=vmem, size = 0x36000, scoped, tag = 'scratch operand']
  #allocation3 [shape = 'bf16[256,108]{1,0:T(16,128)(2,1)}', space=vmem, size = 0x10000, scoped, tag = 'scratch operand']
  #allocation4 [shape = 'f32[18,18,8]{2,1,0:T(8,128)}', space=vmem, size = 0x36000, scoped, tag = 'scratch operand']
  #allocation5 [shape = 'bf16[256,72]{1,0:T(16,128)(2,1)}', space=vmem, size = 0x10000, scoped, tag = 'scratch operand']
  %s0 = inlined_call_operand.vmem [shape: bf16[2,16,16,8], index: 0, kind: input, shape index: {}]
  %s1 = inlined_call_operand.vmem [shape: bf16[2,16,16,4], index: 1, kind: input, shape index: {}]
  %s2 = inlined_call_operand.vmem [shape: bf16[108,8], index: 2, kind: input, shape index: {}]
  %s3 = inlined_call_operand.vmem [shape: f32[1,8], index: 3, kind: input, shape index: {}]
  %s4 = inlined_call_operand.vmem [shape: bf16[72,8], index: 4, kind: input, shape index: {}]
  %s5 = inlined_call_operand.vmem [shape: f32[1,8], index: 5, kind: input, shape index: {}]
  %s6 = inlined_call_operand.vmem [shape: f32[2,8,256], index: 6, kind: output, shape index: {}]
  %s7 = sld [smem:[#allocation0]]
  $region57: #{unet_up_forward.1} parent=0
    _
  %s9 = ssub.s32 1, %s7
  %s10 = scalar_select 0, %s9, %s7
  loop: start=0, step=1, limit=4
  $region2: #{unet_up_forward.1} parent=0 // loop_pre_header
    _
  $region3: #{unet_up_forward.1} parent=0 // loop_header
    %s12 = sphi 0, %s16
    %p13 = scmp.ge.s32.totalorder %s12, 4
    %s22 = sphi 0, %s24
    %s25 = sphi 0, %s22
    %s26 = sphi 0, %s25
    %s42 = sphi 0, %s26
    %s48 = sphi 0, %s50
    %s51 = sphi 0, %s48
    %s52 = sphi 0, %s51
    %s68 = sphi 0, %s52
    %s72 = sphi 0, %s72
    %s74 = sphi 0, %s72
    %s75 = sphi 0, %s74
    %s89 = sphi 0, %s75
    %s93 = sphi 0, %s93
    %s95 = sphi 0, %s93
    %s96 = sphi 0, %s95
    %s110 = sphi 0, %s96
    %s114 = sphi 0, %s114
    %s116 = sphi 0, %s114
    %s117 = sphi 0, %s116
    %s131 = sphi 0, %s117
    %s135 = sphi 0, %s135
    %s137 = sphi 0, %s135
    %s138 = sphi 0, %s137
    %s152 = sphi 0, %s138
    %s158 = sphi 0, %s160
    %s161 = sphi 0, %s158
    %s162 = sphi 0, %s161
    %s178 = sphi 0, %s162
  $region4: #{unet_up_forward.1} parent=0 // loop_header_branch
    %15 = sbr.rel (%p13) target = $region8
  $region5: #{unet_up_forward.1} parent=0 // loop_body
    %s17 = ssub.s32 %s12, 1
    %s18 = ssub.s32 %s12, 2
    %s19 = sadd.s32 %s12, 1
    %s20 = ssub.s32 %s12, %s19
    %p21 = scmp.eq.s32.totalorder %s20, 0
    %s23 = sadd.s32 %s22, 1
    %s24 = scalar_select %p21, %s22, %s23
    %p27 = pneg %p21
    %p28 = scmp.eq.s32.totalorder %s12, 1
    %p29 = por %p27, %p28
    %p30 = scmp.ne.s32.totalorder %s22, %s25
    %p31 = scmp.eq.s32.totalorder %s12, 0
    %p32 = por %p30, %p31
    %p33 = scmp.ne.s32.totalorder %s22, %s25
    %p34 = scmp.eq.s32.totalorder %s17, 1
    %p35 = por %p33, %p34
    %p36 = scmp.ne.s32.totalorder %s25, %s26
    %p37 = scmp.eq.s32.totalorder %s17, 0
    %p38 = por %p36, %p37
    %p39 = scmp.ne.s32.totalorder %s25, %s26
    %p40 = scmp.eq.s32.totalorder %s18, 1
    %p41 = por %p39, %p40
    %p43 = scmp.ne.s32.totalorder %s26, %s42
    %p44 = scmp.eq.s32.totalorder %s18, 0
    %p45 = por %p43, %p44
    %s46 = ssub.s32 %s12, %s19
    %p47 = scmp.eq.s32.totalorder %s46, 0
    %s49 = sadd.s32 %s48, 1
    %s50 = scalar_select %p47, %s48, %s49
    %p53 = pneg %p47
    %p54 = scmp.eq.s32.totalorder %s12, 1
    %p55 = por %p53, %p54
    %p56 = scmp.ne.s32.totalorder %s48, %s51
    %p57 = scmp.eq.s32.totalorder %s12, 0
    %p58 = por %p56, %p57
    %p59 = scmp.ne.s32.totalorder %s48, %s51
    %p60 = scmp.eq.s32.totalorder %s17, 1
    %p61 = por %p59, %p60
    %p62 = scmp.ne.s32.totalorder %s51, %s52
    %p63 = scmp.eq.s32.totalorder %s17, 0
    %p64 = por %p62, %p63
    %p65 = scmp.ne.s32.totalorder %s51, %s52
    %p66 = scmp.eq.s32.totalorder %s18, 1
    %p67 = por %p65, %p66
    %p69 = scmp.ne.s32.totalorder %s52, %s68
    %p70 = scmp.eq.s32.totalorder %s18, 0
    %p71 = por %p69, %p70
    %s73 = sadd.s32 %s72, 1
    %p76 = scmp.eq.s32.totalorder %s12, 1
    %p77 = scmp.ne.s32.totalorder %s72, %s74
    %p78 = scmp.eq.s32.totalorder %s12, 0
    %p79 = por %p77, %p78
    %p80 = scmp.ne.s32.totalorder %s72, %s74
    %p81 = scmp.eq.s32.totalorder %s17, 1
    %p82 = por %p80, %p81
    %p83 = scmp.ne.s32.totalorder %s74, %s75
    %p84 = scmp.eq.s32.totalorder %s17, 0
    %p85 = por %p83, %p84
    %p86 = scmp.ne.s32.totalorder %s74, %s75
    %p87 = scmp.eq.s32.totalorder %s18, 1
    %p88 = por %p86, %p87
    %p90 = scmp.ne.s32.totalorder %s75, %s89
    %p91 = scmp.eq.s32.totalorder %s18, 0
    %p92 = por %p90, %p91
    %s94 = sadd.s32 %s93, 1
    %p97 = scmp.eq.s32.totalorder %s12, 1
    %p98 = scmp.ne.s32.totalorder %s93, %s95
    %p99 = scmp.eq.s32.totalorder %s12, 0
    %p100 = por %p98, %p99
    %p101 = scmp.ne.s32.totalorder %s93, %s95
    %p102 = scmp.eq.s32.totalorder %s17, 1
    %p103 = por %p101, %p102
    %p104 = scmp.ne.s32.totalorder %s95, %s96
    %p105 = scmp.eq.s32.totalorder %s17, 0
    %p106 = por %p104, %p105
    %p107 = scmp.ne.s32.totalorder %s95, %s96
    %p108 = scmp.eq.s32.totalorder %s18, 1
    %p109 = por %p107, %p108
    %p111 = scmp.ne.s32.totalorder %s96, %s110
    %p112 = scmp.eq.s32.totalorder %s18, 0
    %p113 = por %p111, %p112
    %s115 = sadd.s32 %s114, 1
    %p118 = scmp.eq.s32.totalorder %s12, 1
    %p119 = scmp.ne.s32.totalorder %s114, %s116
    %p120 = scmp.eq.s32.totalorder %s12, 0
    %p121 = por %p119, %p120
    %p122 = scmp.ne.s32.totalorder %s114, %s116
    %p123 = scmp.eq.s32.totalorder %s17, 1
    %p124 = por %p122, %p123
    %p125 = scmp.ne.s32.totalorder %s116, %s117
    %p126 = scmp.eq.s32.totalorder %s17, 0
    %p127 = por %p125, %p126
    %p128 = scmp.ne.s32.totalorder %s116, %s117
    %p129 = scmp.eq.s32.totalorder %s18, 1
    %p130 = por %p128, %p129
    %p132 = scmp.ne.s32.totalorder %s117, %s131
    %p133 = scmp.eq.s32.totalorder %s18, 0
    %p134 = por %p132, %p133
    %s136 = sadd.s32 %s135, 1
    %p139 = scmp.eq.s32.totalorder %s12, 1
    %p140 = scmp.ne.s32.totalorder %s135, %s137
    %p141 = scmp.eq.s32.totalorder %s12, 0
    %p142 = por %p140, %p141
    %p143 = scmp.ne.s32.totalorder %s135, %s137
    %p144 = scmp.eq.s32.totalorder %s17, 1
    %p145 = por %p143, %p144
    %p146 = scmp.ne.s32.totalorder %s137, %s138
    %p147 = scmp.eq.s32.totalorder %s17, 0
    %p148 = por %p146, %p147
    %p149 = scmp.ne.s32.totalorder %s137, %s138
    %p150 = scmp.eq.s32.totalorder %s18, 1
    %p151 = por %p149, %p150
    %p153 = scmp.ne.s32.totalorder %s138, %s152
    %p154 = scmp.eq.s32.totalorder %s18, 0
    %p155 = por %p153, %p154
    %s156 = ssub.s32 %s12, %s19
    %p157 = scmp.eq.s32.totalorder %s156, 0
    %s159 = sadd.s32 %s158, 1
    %s160 = scalar_select %p157, %s158, %s159
    %p163 = pneg %p157
    %p164 = scmp.eq.s32.totalorder %s12, 1
    %p165 = por %p163, %p164
    %p166 = scmp.ne.s32.totalorder %s158, %s161
    %p167 = scmp.eq.s32.totalorder %s12, 0
    %p168 = por %p166, %p167
    %p169 = scmp.ne.s32.totalorder %s158, %s161
    %p170 = scmp.eq.s32.totalorder %s17, 1
    %p171 = por %p169, %p170
    %p172 = scmp.ne.s32.totalorder %s161, %s162
    %p173 = scmp.eq.s32.totalorder %s17, 0
    %p174 = por %p172, %p173
    %p175 = scmp.ne.s32.totalorder %s161, %s162
    %p176 = scmp.eq.s32.totalorder %s18, 1
    %p177 = por %p175, %p176
    %p179 = scmp.ne.s32.totalorder %s162, %s178
    %p180 = scmp.eq.s32.totalorder %s18, 0
    %p181 = por %p179, %p180
    %p182 = scmp.le.s32.totalorder 1, %s12
    %p183 = scmp.lt.s32.totalorder %s12, 3
    %p184 = pnand %p182, %p183
    %p185 = pneg %p184
    // Predicated region
    $region9: #{unet_up_forward.1} parent=5 // pred_check
      _
    $region10: #{unet_up_forward.1} parent=5 // pred_check_branch
      %187 = sbr.rel (%p184) target = $region12
    $region11: #{unet_up_forward.1} parent=5 // pred_region
      %s188 = ssub.s32 %s12, 1
      // Predicated region
      $region13: #{unet_up_forward.1} parent=11 // pred_check
        %p189 = pneg %p85
      $region14: #{unet_up_forward.1} parent=11 // pred_check_branch
        %191 = sbr.rel (%p189) target = $region16
      $region15: #{unet_up_forward.1} parent=11 // pred_region
        _
      $region16: #{unet_up_forward.1} parent=11 // pred_fallthru
        _
      // Predicated region
      $region17: #{unet_up_forward.1} parent=11 // pred_check
        %p192 = pneg %p106
      $region18: #{unet_up_forward.1} parent=11 // pred_check_branch
        %194 = sbr.rel (%p192) target = $region20
      $region19: #{unet_up_forward.1} parent=11 // pred_region
        _
      $region20: #{unet_up_forward.1} parent=11 // pred_fallthru
        _
      // Predicated region
      $region21: #{unet_up_forward.1} parent=11 // pred_check
        %p195 = pneg %p127
      $region22: #{unet_up_forward.1} parent=11 // pred_check_branch
        %197 = sbr.rel (%p195) target = $region24
      $region23: #{unet_up_forward.1} parent=11 // pred_region
        _
      $region24: #{unet_up_forward.1} parent=11 // pred_fallthru
        _
      // Predicated region
      $region25: #{unet_up_forward.1} parent=11 // pred_check
        %p198 = pneg %p148
      $region26: #{unet_up_forward.1} parent=11 // pred_check_branch
        %200 = sbr.rel (%p198) target = $region28
      $region27: #{unet_up_forward.1} parent=11 // pred_region
        _
      $region28: #{unet_up_forward.1} parent=11 // pred_fallthru
        _
    $region12: #{unet_up_forward.1} parent=5 // pred_fallthru
      _
    %p201 = scmp.lt.s32.totalorder %s12, 2
    // Predicated region
    $region29: #{unet_up_forward.1} parent=5 // pred_check
      %p202 = pneg %p201
    $region30: #{unet_up_forward.1} parent=5 // pred_check_branch
      %204 = sbr.rel (%p202) target = $region32
    $region31: #{unet_up_forward.1} parent=5 // pred_region
      // Predicated region
      $region33: #{unet_up_forward.1} parent=31 // pred_check
        %p205 = pneg %p32
      $region34: #{unet_up_forward.1} parent=31 // pred_check_branch
        %207 = sbr.rel (%p205) target = $region36
      $region35: #{unet_up_forward.1} parent=31 // pred_region
        %p208 = scmp.lt.s32.totalorder %s12, 1
        %s209 = scalar_select %p208, %s12, 1
        %s210 = smul.addr %s209, 32
        %s211 = smul.addr %s210, 4
        %s212 = scalar_lea.vmem %s0, %s211
      $region36: #{unet_up_forward.1} parent=31 // pred_fallthru
        _
      // Predicated region
      $region37: #{unet_up_forward.1} parent=31 // pred_check
        %p213 = pneg %p58
      $region38: #{unet_up_forward.1} parent=31 // pred_check_branch
        %215 = sbr.rel (%p213) target = $region40
      $region39: #{unet_up_forward.1} parent=31 // pred_region
        %p216 = scmp.lt.s32.totalorder %s12, 1
        %s217 = scalar_select %p216, %s12, 1
        %s218 = smul.addr %s217, 32
        %s219 = smul.addr %s218, 4
        %s220 = scalar_lea.vmem %s1, %s219
      $region40: #{unet_up_forward.1} parent=31 // pred_fallthru
        _
    $region32: #{unet_up_forward.1} parent=5 // pred_fallthru
      _
    %p221 = scmp.le.s32.totalorder 1, %s12
    %p222 = scmp.lt.s32.totalorder %s12, 3
    %p223 = pnand %p221, %p222
    %p224 = pneg %p223
    // Predicated region
    $region41: #{unet_up_forward.1} parent=5 // pred_check
      _
    $region42: #{unet_up_forward.1} parent=5 // pred_check_branch
      %226 = sbr.rel (%p223) target = $region44
    $region43: #{unet_up_forward.1} parent=5 // pred_region
      %s227 = ssub.s32 %s12, 1
      %p228 = scmp.lt.s32.totalorder %s17, 1
      %s229 = scalar_select %p228, %s17, 1
      %s230 = smul.addr %s229, 32
      %s231 = smul.addr %s230, 4
      %s232 = scalar_lea.vmem %s0, %s231
      %p233 = pneg %p38
      %p234 = pneg %p35
      %p235 = scmp.lt.s32.totalorder %s17, 1
      %s236 = scalar_select %p235, %s17, 1
      %s237 = smul.addr %s236, 32
      %s238 = smul.addr %s237, 4
      %s239 = scalar_lea.vmem %s1, %s238
      %p240 = pneg %p64
      %p241 = pneg %p61
      %p242 = pneg %p85
      %p243 = pneg %p82
      %p244 = pneg %p106
      %p245 = pneg %p103
      %p246 = pneg %p127
      %p247 = pneg %p124
      %p248 = pneg %p148
      %p249 = pneg %p145
      %p250 = pneg %p174
      %p251 = pneg %p171
      %p252 = scmp.lt.s32.totalorder %s17, 1
      %s253 = scalar_select %p252, %s17, 1
      %s254 = smul.addr %s253, 2
      %s255 = smul.addr %s254, 8
      %s256 = scalar_lea.vmem %s6, %s255
      %p257 = scmp.lt.s32.totalorder %s17, 1
      %s258 = scalar_select %p257, %s17, 1
      %s259 = smul.addr %s258, 32
      %s260 = smul.addr %s259, 4
      %s261 = scalar_lea.vmem %s0, %s260
      %p262 = scmp.lt.s32.totalorder %s17, 1
      %s263 = scalar_select %p262, %s17, 1
      %s264 = smul.addr %s263, 32
      %s265 = smul.addr %s264, 4
      %s266 = scalar_lea.vmem %s1, %s265
      %p267 = scmp.lt.s32.totalorder %s17, 1
      %s268 = scalar_select %p267, %s17, 1
      %s269 = smul.addr %s268, 2
      %s270 = smul.addr %s269, 8
      %s271 = scalar_lea.vmem %s6, %s270
      %vm273 = vcmask 97280
      %274 = vst.msk [vmem:[#allocation2] sm:$0xff] %vm273, 0.0
      %275 = vst.msk [vmem:[#allocation2 + $0x8] sm:$0xff] %vm273, 0.0
      %vm276 = vcmask 91136
      %277 = vst.msk [vmem:[#allocation2 + $0x10] sm:$0x3] %vm276, 0.0
      %278 = vst.msk [vmem:[#allocation2 + $0x18] sm:$0xff] %vm273, 0.0
      %279 = vst.msk [vmem:[#allocation2 + $0x20] sm:$0xff] %vm273, 0.0
      %280 = vst.msk [vmem:[#allocation2 + $0x28] sm:$0x3] %vm276, 0.0
      %281 = vst.msk [vmem:[#allocation2 + $0x30] sm:$0xff] %vm273, 0.0
      %282 = vst.msk [vmem:[#allocation2 + $0x38] sm:$0xff] %vm273, 0.0
      %283 = vst.msk [vmem:[#allocation2 + $0x40] sm:$0x3] %vm276, 0.0
      %284 = vst.msk [vmem:[#allocation2 + $0x48] sm:$0xff] %vm273, 0.0
      %285 = vst.msk [vmem:[#allocation2 + $0x50] sm:$0xff] %vm273, 0.0
      %286 = vst.msk [vmem:[#allocation2 + $0x58] sm:$0x3] %vm276, 0.0
      %287 = vst.msk [vmem:[#allocation2 + $0x60] sm:$0xff] %vm273, 0.0
      %288 = vst.msk [vmem:[#allocation2 + $0x68] sm:$0xff] %vm273, 0.0
      %289 = vst.msk [vmem:[#allocation2 + $0x70] sm:$0x3] %vm276, 0.0
      %290 = vst.msk [vmem:[#allocation2 + $0x78] sm:$0xff] %vm273, 0.0
      %291 = vst.msk [vmem:[#allocation2 + $0x80] sm:$0xff] %vm273, 0.0
      %292 = vst.msk [vmem:[#allocation2 + $0x88] sm:$0x3] %vm276, 0.0
      %293 = vst.msk [vmem:[#allocation2 + $0x90] sm:$0xff] %vm273, 0.0
      %294 = vst.msk [vmem:[#allocation2 + $0x98] sm:$0xff] %vm273, 0.0
      %295 = vst.msk [vmem:[#allocation2 + $0xa0] sm:$0x3] %vm276, 0.0
      %296 = vst.msk [vmem:[#allocation2 + $0xa8] sm:$0xff] %vm273, 0.0
      %297 = vst.msk [vmem:[#allocation2 + $0xb0] sm:$0xff] %vm273, 0.0
      %298 = vst.msk [vmem:[#allocation2 + $0xb8] sm:$0x3] %vm276, 0.0
      %299 = vst.msk [vmem:[#allocation2 + $0xc0] sm:$0xff] %vm273, 0.0
      %300 = vst.msk [vmem:[#allocation2 + $0xc8] sm:$0xff] %vm273, 0.0
      %301 = vst.msk [vmem:[#allocation2 + $0xd0] sm:$0x3] %vm276, 0.0
      %302 = vst.msk [vmem:[#allocation2 + $0xd8] sm:$0xff] %vm273, 0.0
      %303 = vst.msk [vmem:[#allocation2 + $0xe0] sm:$0xff] %vm273, 0.0
      %304 = vst.msk [vmem:[#allocation2 + $0xe8] sm:$0x3] %vm276, 0.0
      %305 = vst.msk [vmem:[#allocation2 + $0xf0] sm:$0xff] %vm273, 0.0
      %306 = vst.msk [vmem:[#allocation2 + $0xf8] sm:$0xff] %vm273, 0.0
      %307 = vst.msk [vmem:[#allocation2 + $0x100] sm:$0x3] %vm276, 0.0
      %308 = vst.msk [vmem:[#allocation2 + $0x108] sm:$0xff] %vm273, 0.0
      %309 = vst.msk [vmem:[#allocation2 + $0x110] sm:$0xff] %vm273, 0.0
      %310 = vst.msk [vmem:[#allocation2 + $0x118] sm:$0x3] %vm276, 0.0
      %311 = vst.msk [vmem:[#allocation2 + $0x120] sm:$0xff] %vm273, 0.0
      %312 = vst.msk [vmem:[#allocation2 + $0x128] sm:$0xff] %vm273, 0.0
      %313 = vst.msk [vmem:[#allocation2 + $0x130] sm:$0x3] %vm276, 0.0
      %314 = vst.msk [vmem:[#allocation2 + $0x138] sm:$0xff] %vm273, 0.0
      %315 = vst.msk [vmem:[#allocation2 + $0x140] sm:$0xff] %vm273, 0.0
      %316 = vst.msk [vmem:[#allocation2 + $0x148] sm:$0x3] %vm276, 0.0
      %317 = vst.msk [vmem:[#allocation2 + $0x150] sm:$0xff] %vm273, 0.0
      %318 = vst.msk [vmem:[#allocation2 + $0x158] sm:$0xff] %vm273, 0.0
      %319 = vst.msk [vmem:[#allocation2 + $0x160] sm:$0x3] %vm276, 0.0
      %320 = vst.msk [vmem:[#allocation2 + $0x168] sm:$0xff] %vm273, 0.0
      %321 = vst.msk [vmem:[#allocation2 + $0x170] sm:$0xff] %vm273, 0.0
      %322 = vst.msk [vmem:[#allocation2 + $0x178] sm:$0x3] %vm276, 0.0
      %323 = vst.msk [vmem:[#allocation2 + $0x180] sm:$0xff] %vm273, 0.0
      %324 = vst.msk [vmem:[#allocation2 + $0x188] sm:$0xff] %vm273, 0.0
      %325 = vst.msk [vmem:[#allocation2 + $0x190] sm:$0x3] %vm276, 0.0
      %326 = vst.msk [vmem:[#allocation2 + $0x198] sm:$0xff] %vm273, 0.0
      %327 = vst.msk [vmem:[#allocation2 + $0x1a0] sm:$0xff] %vm273, 0.0
      %328 = vst.msk [vmem:[#allocation2 + $0x1a8] sm:$0x3] %vm276, 0.0
      %v329 = vld [vmem:[%s261] sm:$0xf]
      %v330 = vld [vmem:[%s261 + $0x4] sm:$0xf]
      %v331 = vld [vmem:[%s261 + $0x8] sm:$0xf]
      %v332 = vld [vmem:[%s261 + $0xc] sm:$0xf]
      %v333 = vld [vmem:[%s261 + $0x10] sm:$0xf]
      %v334 = vld [vmem:[%s261 + $0x14] sm:$0xf]
      %v335 = vld [vmem:[%s261 + $0x18] sm:$0xf]
      %v336 = vld [vmem:[%s261 + $0x1c] sm:$0xf]
      %v337 = vld [vmem:[%s261 + $0x20] sm:$0xf]
      %v338 = vld [vmem:[%s261 + $0x24] sm:$0xf]
      %v339 = vld [vmem:[%s261 + $0x28] sm:$0xf]
      %v340 = vld [vmem:[%s261 + $0x2c] sm:$0xf]
      %v341 = vld [vmem:[%s261 + $0x30] sm:$0xf]
      %v342 = vld [vmem:[%s261 + $0x34] sm:$0xf]
      %v343 = vld [vmem:[%s261 + $0x38] sm:$0xf]
      %v344 = vld [vmem:[%s261 + $0x3c] sm:$0xf]
      %v345 = vld [vmem:[%s261 + $0x40] sm:$0xf]
      %v346 = vld [vmem:[%s261 + $0x44] sm:$0xf]
      %v347 = vld [vmem:[%s261 + $0x48] sm:$0xf]
      %v348 = vld [vmem:[%s261 + $0x4c] sm:$0xf]
      %v349 = vld [vmem:[%s261 + $0x50] sm:$0xf]
      %v350 = vld [vmem:[%s261 + $0x54] sm:$0xf]
      %v351 = vld [vmem:[%s261 + $0x58] sm:$0xf]
      %v352 = vld [vmem:[%s261 + $0x5c] sm:$0xf]
      %v353 = vld [vmem:[%s261 + $0x60] sm:$0xf]
      %v354 = vld [vmem:[%s261 + $0x64] sm:$0xf]
      %v355 = vld [vmem:[%s261 + $0x68] sm:$0xf]
      %v356 = vld [vmem:[%s261 + $0x6c] sm:$0xf]
      %v357 = vld [vmem:[%s261 + $0x70] sm:$0xf]
      %v358 = vld [vmem:[%s261 + $0x74] sm:$0xf]
      %v359 = vld [vmem:[%s261 + $0x78] sm:$0xf]
      %v360 = vld [vmem:[%s261 + $0x7c] sm:$0xf]
      %v361 = vunpack.c.l.bf16 %v329
      %v362 = vunpack.c.l.bf16 %v330
      %v363 = vunpack.c.l.bf16 %v331
      %v364 = vunpack.c.l.bf16 %v332
      %v365 = vunpack.c.l.bf16 %v333
      %v366 = vunpack.c.l.bf16 %v334
      %v367 = vunpack.c.l.bf16 %v335
      %v368 = vunpack.c.l.bf16 %v336
      %v369 = vunpack.c.l.bf16 %v337
      %v370 = vunpack.c.l.bf16 %v338
      %v371 = vunpack.c.l.bf16 %v339
      %v372 = vunpack.c.l.bf16 %v340
      %v373 = vunpack.c.l.bf16 %v341
      %v374 = vunpack.c.l.bf16 %v342
      %v375 = vunpack.c.l.bf16 %v343
      %v376 = vunpack.c.l.bf16 %v344
      %v377 = vunpack.c.l.bf16 %v345
      %v378 = vunpack.c.l.bf16 %v346
      %v379 = vunpack.c.l.bf16 %v347
      %v380 = vunpack.c.l.bf16 %v348
      %v381 = vunpack.c.l.bf16 %v349
      %v382 = vunpack.c.l.bf16 %v350
      %v383 = vunpack.c.l.bf16 %v351
      %v384 = vunpack.c.l.bf16 %v352
      %v385 = vunpack.c.l.bf16 %v353
      %v386 = vunpack.c.l.bf16 %v354
      %v387 = vunpack.c.l.bf16 %v355
      %v388 = vunpack.c.l.bf16 %v356
      %v389 = vunpack.c.l.bf16 %v357
      %v390 = vunpack.c.l.bf16 %v358
      %v391 = vunpack.c.l.bf16 %v359
      %v392 = vunpack.c.l.bf16 %v360
      %s393 = scalar_lea.vmem [#allocation2], 24
      %vm394 = vcmask 64512
      %395 = vst.msk [vmem:[%s393 + $0x1] sm:$0xff] %vm394, %v361
      %396 = vst.msk [vmem:[%s393 + $0x9] sm:$0xff] %vm394, %v362
      %397 = vst.msk [vmem:[%s393 + $0x19] sm:$0xff] %vm394, %v363
      %398 = vst.msk [vmem:[%s393 + $0x21] sm:$0xff] %vm394, %v364
      %399 = vst.msk [vmem:[%s393 + $0x31] sm:$0xff] %vm394, %v365
      %400 = vst.msk [vmem:[%s393 + $0x39] sm:$0xff] %vm394, %v366
      %401 = vst.msk [vmem:[%s393 + $0x49] sm:$0xff] %vm394, %v367
      %402 = vst.msk [vmem:[%s393 + $0x51] sm:$0xff] %vm394, %v368
      %403 = vst.msk [vmem:[%s393 + $0x61] sm:$0xff] %vm394, %v369
      %404 = vst.msk [vmem:[%s393 + $0x69] sm:$0xff] %vm394, %v370
      %405 = vst.msk [vmem:[%s393 + $0x79] sm:$0xff] %vm394, %v371
      %406 = vst.msk [vmem:[%s393 + $0x81] sm:$0xff] %vm394, %v372
      %407 = vst.msk [vmem:[%s393 + $0x91] sm:$0xff] %vm394, %v373
      %408 = vst.msk [vmem:[%s393 + $0x99] sm:$0xff] %vm394, %v374
      %409 = vst.msk [vmem:[%s393 + $0xa9] sm:$0xff] %vm394, %v375
      %410 = vst.msk [vmem:[%s393 + $0xb1] sm:$0xff] %vm394, %v376
      %411 = vst.msk [vmem:[%s393 + $0xc1] sm:$0xff] %vm394, %v377
      %412 = vst.msk [vmem:[%s393 + $0xc9] sm:$0xff] %vm394, %v378
      %413 = vst.msk [vmem:[%s393 + $0xd9] sm:$0xff] %vm394, %v379
      %414 = vst.msk [vmem:[%s393 + $0xe1] sm:$0xff] %vm394, %v380
      %415 = vst.msk [vmem:[%s393 + $0xf1] sm:$0xff] %vm394, %v381
      %416 = vst.msk [vmem:[%s393 + $0xf9] sm:$0xff] %vm394, %v382
      %417 = vst.msk [vmem:[%s393 + $0x109] sm:$0xff] %vm394, %v383
      %418 = vst.msk [vmem:[%s393 + $0x111] sm:$0xff] %vm394, %v384
      %419 = vst.msk [vmem:[%s393 + $0x121] sm:$0xff] %vm394, %v385
      %420 = vst.msk [vmem:[%s393 + $0x129] sm:$0xff] %vm394, %v386
      %421 = vst.msk [vmem:[%s393 + $0x139] sm:$0xff] %vm394, %v387
      %422 = vst.msk [vmem:[%s393 + $0x141] sm:$0xff] %vm394, %v388
      %423 = vst.msk [vmem:[%s393 + $0x151] sm:$0xff] %vm394, %v389
      %424 = vst.msk [vmem:[%s393 + $0x159] sm:$0xff] %vm394, %v390
      %425 = vst.msk [vmem:[%s393 + $0x169] sm:$0xff] %vm394, %v391
      %426 = vst.msk [vmem:[%s393 + $0x171] sm:$0xff] %vm394, %v392
      %v427 = vld [vmem:[%s266] sm:$0xf]
      %v428 = vld [vmem:[%s266 + $0x4] sm:$0xf]
      %v429 = vld [vmem:[%s266 + $0x8] sm:$0xf]
      %v430 = vld [vmem:[%s266 + $0xc] sm:$0xf]
      %v431 = vld [vmem:[%s266 + $0x10] sm:$0xf]
      %v432 = vld [vmem:[%s266 + $0x14] sm:$0xf]
      %v433 = vld [vmem:[%s266 + $0x18] sm:$0xf]
      %v434 = vld [vmem:[%s266 + $0x1c] sm:$0xf]
      %v435 = vld [vmem:[%s266 + $0x20] sm:$0xf]
      %v436 = vld [vmem:[%s266 + $0x24] sm:$0xf]
      %v437 = vld [vmem:[%s266 + $0x28] sm:$0xf]
      %v438 = vld [vmem:[%s266 + $0x2c] sm:$0xf]
      %v439 = vld [vmem:[%s266 + $0x30] sm:$0xf]
      %v440 = vld [vmem:[%s266 + $0x34] sm:$0xf]
      %v441 = vld [vmem:[%s266 + $0x38] sm:$0xf]
      %v442 = vld [vmem:[%s266 + $0x3c] sm:$0xf]
      %v443 = vld [vmem:[%s266 + $0x40] sm:$0xf]
      %v444 = vld [vmem:[%s266 + $0x44] sm:$0xf]
      %v445 = vld [vmem:[%s266 + $0x48] sm:$0xf]
      %v446 = vld [vmem:[%s266 + $0x4c] sm:$0xf]
      %v447 = vld [vmem:[%s266 + $0x50] sm:$0xf]
      %v448 = vld [vmem:[%s266 + $0x54] sm:$0xf]
      %v449 = vld [vmem:[%s266 + $0x58] sm:$0xf]
      %v450 = vld [vmem:[%s266 + $0x5c] sm:$0xf]
      %v451 = vld [vmem:[%s266 + $0x60] sm:$0xf]
      %v452 = vld [vmem:[%s266 + $0x64] sm:$0xf]
      %v453 = vld [vmem:[%s266 + $0x68] sm:$0xf]
      %v454 = vld [vmem:[%s266 + $0x6c] sm:$0xf]
      %v455 = vld [vmem:[%s266 + $0x70] sm:$0xf]
      %v456 = vld [vmem:[%s266 + $0x74] sm:$0xf]
      %v457 = vld [vmem:[%s266 + $0x78] sm:$0xf]
      %v458 = vld [vmem:[%s266 + $0x7c] sm:$0xf]
      %v459 = vunpack.c.l.bf16 %v427
      %v460 = vunpack.c.l.bf16 %v428
      %v461 = vunpack.c.l.bf16 %v429
      %v462 = vunpack.c.l.bf16 %v430
      %v463 = vunpack.c.l.bf16 %v431
      %v464 = vunpack.c.l.bf16 %v432
      %v465 = vunpack.c.l.bf16 %v433
      %v466 = vunpack.c.l.bf16 %v434
      %v467 = vunpack.c.l.bf16 %v435
      %v468 = vunpack.c.l.bf16 %v436
      %v469 = vunpack.c.l.bf16 %v437
      %v470 = vunpack.c.l.bf16 %v438
      %v471 = vunpack.c.l.bf16 %v439
      %v472 = vunpack.c.l.bf16 %v440
      %v473 = vunpack.c.l.bf16 %v441
      %v474 = vunpack.c.l.bf16 %v442
      %v475 = vunpack.c.l.bf16 %v443
      %v476 = vunpack.c.l.bf16 %v444
      %v477 = vunpack.c.l.bf16 %v445
      %v478 = vunpack.c.l.bf16 %v446
      %v479 = vunpack.c.l.bf16 %v447
      %v480 = vunpack.c.l.bf16 %v448
      %v481 = vunpack.c.l.bf16 %v449
      %v482 = vunpack.c.l.bf16 %v450
      %v483 = vunpack.c.l.bf16 %v451
      %v484 = vunpack.c.l.bf16 %v452
      %v485 = vunpack.c.l.bf16 %v453
      %v486 = vunpack.c.l.bf16 %v454
      %v487 = vunpack.c.l.bf16 %v455
      %v488 = vunpack.c.l.bf16 %v456
      %v489 = vunpack.c.l.bf16 %v457
      %v490 = vunpack.c.l.bf16 %v458
      %523 = vrot.lane.b32.xlu0 %v459, 8
      %v524 = vpop.permute.xlu0 %523
      %525 = vrot.lane.b32.xlu0 %v460, 8
      %v526 = vpop.permute.xlu0 %525
      %527 = vrot.lane.b32.xlu0 %v461, 8
      %v528 = vpop.permute.xlu0 %527
      %529 = vrot.lane.b32.xlu0 %v462, 8
      %v530 = vpop.permute.xlu0 %529
      %531 = vrot.lane.b32.xlu0 %v463, 8
      %v532 = vpop.permute.xlu0 %531
      %533 = vrot.lane.b32.xlu0 %v464, 8
      %v534 = vpop.permute.xlu0 %533
      %535 = vrot.lane.b32.xlu0 %v465, 8
      %v536 = vpop.permute.xlu0 %535
      %537 = vrot.lane.b32.xlu0 %v466, 8
      %v538 = vpop.permute.xlu0 %537
      %539 = vrot.lane.b32.xlu0 %v467, 8
      %v540 = vpop.permute.xlu0 %539
      %541 = vrot.lane.b32.xlu0 %v468, 8
      %v542 = vpop.permute.xlu0 %541
      %543 = vrot.lane.b32.xlu0 %v469, 8
      %v544 = vpop.permute.xlu0 %543
      %545 = vrot.lane.b32.xlu0 %v470, 8
      %v546 = vpop.permute.xlu0 %545
      %547 = vrot.lane.b32.xlu0 %v471, 8
      %v548 = vpop.permute.xlu0 %547
      %549 = vrot.lane.b32.xlu0 %v472, 8
      %v550 = vpop.permute.xlu0 %549
      %551 = vrot.lane.b32.xlu0 %v473, 8
      %v552 = vpop.permute.xlu0 %551
      %553 = vrot.lane.b32.xlu0 %v474, 8
      %v554 = vpop.permute.xlu0 %553
      %555 = vrot.lane.b32.xlu0 %v475, 8
      %v556 = vpop.permute.xlu0 %555
      %557 = vrot.lane.b32.xlu0 %v476, 8
      %v558 = vpop.permute.xlu0 %557
      %559 = vrot.lane.b32.xlu0 %v477, 8
      %v560 = vpop.permute.xlu0 %559
      %561 = vrot.lane.b32.xlu0 %v478, 8
      %v562 = vpop.permute.xlu0 %561
      %563 = vrot.lane.b32.xlu0 %v479, 8
      %v564 = vpop.permute.xlu0 %563
      %565 = vrot.lane.b32.xlu0 %v480, 8
      %v566 = vpop.permute.xlu0 %565
      %567 = vrot.lane.b32.xlu0 %v481, 8
      %v568 = vpop.permute.xlu0 %567
      %569 = vrot.lane.b32.xlu0 %v482, 8
      %v570 = vpop.permute.xlu0 %569
      %571 = vrot.lane.b32.xlu0 %v483, 8
      %v572 = vpop.permute.xlu0 %571
      %573 = vrot.lane.b32.xlu0 %v484, 8
      %v574 = vpop.permute.xlu0 %573
      %575 = vrot.lane.b32.xlu0 %v485, 8
      %v576 = vpop.permute.xlu0 %575
      %577 = vrot.lane.b32.xlu0 %v486, 8
      %v578 = vpop.permute.xlu0 %577
      %579 = vrot.lane.b32.xlu0 %v487, 8
      %v580 = vpop.permute.xlu0 %579
      %581 = vrot.lane.b32.xlu0 %v488, 8
      %v582 = vpop.permute.xlu0 %581
      %583 = vrot.lane.b32.xlu0 %v489, 8
      %v584 = vpop.permute.xlu0 %583
      %585 = vrot.lane.b32.xlu0 %v490, 8
      %v586 = vpop.permute.xlu0 %585
      %vm619 = vcmask 97344
      %620 = vst.msk [vmem:[%s393 + $0x1] sm:$0xff] %vm619, %v524
      %621 = vst.msk [vmem:[%s393 + $0x9] sm:$0xff] %vm619, %v526
      %622 = vst.msk [vmem:[%s393 + $0x19] sm:$0xff] %vm619, %v528
      %623 = vst.msk [vmem:[%s393 + $0x21] sm:$0xff] %vm619, %v530
      %624 = vst.msk [vmem:[%s393 + $0x31] sm:$0xff] %vm619, %v532
      %625 = vst.msk [vmem:[%s393 + $0x39] sm:$0xff] %vm619, %v534
      %626 = vst.msk [vmem:[%s393 + $0x49] sm:$0xff] %vm619, %v536
      %627 = vst.msk [vmem:[%s393 + $0x51] sm:$0xff] %vm619, %v538
      %628 = vst.msk [vmem:[%s393 + $0x61] sm:$0xff] %vm619, %v540
      %629 = vst.msk [vmem:[%s393 + $0x69] sm:$0xff] %vm619, %v542
      %630 = vst.msk [vmem:[%s393 + $0x79] sm:$0xff] %vm619, %v544
      %631 = vst.msk [vmem:[%s393 + $0x81] sm:$0xff] %vm619, %v546
      %632 = vst.msk [vmem:[%s393 + $0x91] sm:$0xff] %vm619, %v548
      %633 = vst.msk [vmem:[%s393 + $0x99] sm:$0xff] %vm619, %v550
      %634 = vst.msk [vmem:[%s393 + $0xa9] sm:$0xff] %vm619, %v552
      %635 = vst.msk [vmem:[%s393 + $0xb1] sm:$0xff] %vm619, %v554
      %636 = vst.msk [vmem:[%s393 + $0xc1] sm:$0xff] %vm619, %v556
      %637 = vst.msk [vmem:[%s393 + $0xc9] sm:$0xff] %vm619, %v558
      %638 = vst.msk [vmem:[%s393 + $0xd9] sm:$0xff] %vm619, %v560
      %639 = vst.msk [vmem:[%s393 + $0xe1] sm:$0xff] %vm619, %v562
      %640 = vst.msk [vmem:[%s393 + $0xf1] sm:$0xff] %vm619, %v564
      %641 = vst.msk [vmem:[%s393 + $0xf9] sm:$0xff] %vm619, %v566
      %642 = vst.msk [vmem:[%s393 + $0x109] sm:$0xff] %vm619, %v568
      %643 = vst.msk [vmem:[%s393 + $0x111] sm:$0xff] %vm619, %v570
      %644 = vst.msk [vmem:[%s393 + $0x121] sm:$0xff] %vm619, %v572
      %645 = vst.msk [vmem:[%s393 + $0x129] sm:$0xff] %vm619, %v574
      %646 = vst.msk [vmem:[%s393 + $0x139] sm:$0xff] %vm619, %v576
      %647 = vst.msk [vmem:[%s393 + $0x141] sm:$0xff] %vm619, %v578
      %648 = vst.msk [vmem:[%s393 + $0x151] sm:$0xff] %vm619, %v580
      %649 = vst.msk [vmem:[%s393 + $0x159] sm:$0xff] %vm619, %v582
      %650 = vst.msk [vmem:[%s393 + $0x169] sm:$0xff] %vm619, %v584
      %651 = vst.msk [vmem:[%s393 + $0x171] sm:$0xff] %vm619, %v586
      %v652 = vld [vmem:[#allocation2] sm:$0xff]
      %v653 = vld [vmem:[#allocation2 + $0x8] sm:$0xff]
      %v654 = vld [vmem:[#allocation2 + $0x18] sm:$0xff]
      %v655 = vld [vmem:[#allocation2 + $0x20] sm:$0xff]
      %v656 = vld [vmem:[#allocation2 + $0x30] sm:$0xff]
      %v657 = vld [vmem:[#allocation2 + $0x38] sm:$0xff]
      %v658 = vld [vmem:[#allocation2 + $0x48] sm:$0xff]
      %v659 = vld [vmem:[#allocation2 + $0x50] sm:$0xff]
      %v660 = vld [vmem:[#allocation2 + $0x60] sm:$0xff]
      %v661 = vld [vmem:[#allocation2 + $0x68] sm:$0xff]
      %v662 = vld [vmem:[#allocation2 + $0x78] sm:$0xff]
      %v663 = vld [vmem:[#allocation2 + $0x80] sm:$0xff]
      %v664 = vld [vmem:[#allocation2 + $0x90] sm:$0xff]
      %v665 = vld [vmem:[#allocation2 + $0x98] sm:$0xff]
      %v666 = vld [vmem:[#allocation2 + $0xa8] sm:$0xff]
      %v667 = vld [vmem:[#allocation2 + $0xb0] sm:$0xff]
      %v668 = vld [vmem:[#allocation2 + $0xc0] sm:$0xff]
      %v669 = vld [vmem:[#allocation2 + $0xc8] sm:$0xff]
      %v670 = vld [vmem:[#allocation2 + $0xd8] sm:$0xff]
      %v671 = vld [vmem:[#allocation2 + $0xe0] sm:$0xff]
      %v672 = vld [vmem:[#allocation2 + $0xf0] sm:$0xff]
      %v673 = vld [vmem:[#allocation2 + $0xf8] sm:$0xff]
      %v674 = vld [vmem:[#allocation2 + $0x108] sm:$0xff]
      %v675 = vld [vmem:[#allocation2 + $0x110] sm:$0xff]
      %v676 = vld [vmem:[#allocation2 + $0x120] sm:$0xff]
      %v677 = vld [vmem:[#allocation2 + $0x128] sm:$0xff]
      %v678 = vld [vmem:[#allocation2 + $0x138] sm:$0xff]
      %v679 = vld [vmem:[#allocation2 + $0x140] sm:$0xff]
      %v680 = vld [vmem:[#allocation2 + $0x150] sm:$0xff]
      %v681 = vld [vmem:[#allocation2 + $0x158] sm:$0xff]
      %v682 = vld [vmem:[#allocation2 + $0x168] sm:$0xff]
      %v683 = vld [vmem:[#allocation2 + $0x170] sm:$0xff]
      %v684 = vpack.c.bf16 %v653, %v652
      %v685 = vpack.c.bf16 %v655, %v654
      %v686 = vpack.c.bf16 %v657, %v656
      %v687 = vpack.c.bf16 %v659, %v658
      %v688 = vpack.c.bf16 %v661, %v660
      %v689 = vpack.c.bf16 %v663, %v662
      %v690 = vpack.c.bf16 %v665, %v664
      %v691 = vpack.c.bf16 %v667, %v666
      %v692 = vpack.c.bf16 %v669, %v668
      %v693 = vpack.c.bf16 %v671, %v670
      %v694 = vpack.c.bf16 %v673, %v672
      %v695 = vpack.c.bf16 %v675, %v674
      %v696 = vpack.c.bf16 %v677, %v676
      %v697 = vpack.c.bf16 %v679, %v678
      %v698 = vpack.c.bf16 %v681, %v680
      %v699 = vpack.c.bf16 %v683, %v682
      %700 = vst.msk [vmem:[#allocation3] sm:$0xff] %vm273, %v684
      %701 = vst.msk [vmem:[#allocation3 + $0x8] sm:$0xff] %vm273, %v685
      %702 = vst.msk [vmem:[#allocation3 + $0x10] sm:$0xff] %vm273, %v686
      %703 = vst.msk [vmem:[#allocation3 + $0x18] sm:$0xff] %vm273, %v687
      %704 = vst.msk [vmem:[#allocation3 + $0x20] sm:$0xff] %vm273, %v688
      %705 = vst.msk [vmem:[#allocation3 + $0x28] sm:$0xff] %vm273, %v689
      %706 = vst.msk [vmem:[#allocation3 + $0x30] sm:$0xff] %vm273, %v690
      %707 = vst.msk [vmem:[#allocation3 + $0x38] sm:$0xff] %vm273, %v691
      %708 = vst.msk [vmem:[#allocation3 + $0x40] sm:$0xff] %vm273, %v692
      %709 = vst.msk [vmem:[#allocation3 + $0x48] sm:$0xff] %vm273, %v693
      %710 = vst.msk [vmem:[#allocation3 + $0x50] sm:$0xff] %vm273, %v694
      %711 = vst.msk [vmem:[#allocation3 + $0x58] sm:$0xff] %vm273, %v695
      %712 = vst.msk [vmem:[#allocation3 + $0x60] sm:$0xff] %vm273, %v696
      %713 = vst.msk [vmem:[#allocation3 + $0x68] sm:$0xff] %vm273, %v697
      %714 = vst.msk [vmem:[#allocation3 + $0x70] sm:$0xff] %vm273, %v698
      %715 = vst.msk [vmem:[#allocation3 + $0x78] sm:$0xff] %vm273, %v699
      %v716 = vld [vmem:[#allocation2 + $0x1] sm:$0xff]
      %v717 = vld [vmem:[#allocation2 + $0x9] sm:$0xff]
      %v718 = vld [vmem:[#allocation2 + $0x19] sm:$0xff]
      %v719 = vld [vmem:[#allocation2 + $0x21] sm:$0xff]
      %v720 = vld [vmem:[#allocation2 + $0x31] sm:$0xff]
      %v721 = vld [vmem:[#allocation2 + $0x39] sm:$0xff]
      %v722 = vld [vmem:[#allocation2 + $0x49] sm:$0xff]
      %v723 = vld [vmem:[#allocation2 + $0x51] sm:$0xff]
      %v724 = vld [vmem:[#allocation2 + $0x61] sm:$0xff]
      %v725 = vld [vmem:[#allocation2 + $0x69] sm:$0xff]
      %v726 = vld [vmem:[#allocation2 + $0x79] sm:$0xff]
      %v727 = vld [vmem:[#allocation2 + $0x81] sm:$0xff]
      %v728 = vld [vmem:[#allocation2 + $0x91] sm:$0xff]
      %v729 = vld [vmem:[#allocation2 + $0x99] sm:$0xff]
      %v730 = vld [vmem:[#allocation2 + $0xa9] sm:$0xff]
      %v731 = vld [vmem:[#allocation2 + $0xb1] sm:$0xff]
      %v732 = vld [vmem:[#allocation2 + $0xc1] sm:$0xff]
      %v733 = vld [vmem:[#allocation2 + $0xc9] sm:$0xff]
      %v734 = vld [vmem:[#allocation2 + $0xd9] sm:$0xff]
      %v735 = vld [vmem:[#allocation2 + $0xe1] sm:$0xff]
      %v736 = vld [vmem:[#allocation2 + $0xf1] sm:$0xff]
      %v737 = vld [vmem:[#allocation2 + $0xf9] sm:$0xff]
      %v738 = vld [vmem:[#allocation2 + $0x109] sm:$0xff]
      %v739 = vld [vmem:[#allocation2 + $0x111] sm:$0xff]
      %v740 = vld [vmem:[#allocation2 + $0x121] sm:$0xff]
      %v741 = vld [vmem:[#allocation2 + $0x129] sm:$0xff]
      %v742 = vld [vmem:[#allocation2 + $0x139] sm:$0xff]
      %v743 = vld [vmem:[#allocation2 + $0x141] sm:$0xff]
      %v744 = vld [vmem:[#allocation2 + $0x151] sm:$0xff]
      %v745 = vld [vmem:[#allocation2 + $0x159] sm:$0xff]
      %v746 = vld [vmem:[#allocation2 + $0x169] sm:$0xff]
      %v747 = vld [vmem:[#allocation2 + $0x171] sm:$0xff]
      %v748 = vpack.c.bf16 %v717, %v716
      %v749 = vpack.c.bf16 %v719, %v718
      %v750 = vpack.c.bf16 %v721, %v720
      %v751 = vpack.c.bf16 %v723, %v722
      %v752 = vpack.c.bf16 %v725, %v724
      %v753 = vpack.c.bf16 %v727, %v726
      %v754 = vpack.c.bf16 %v729, %v728
      %v755 = vpack.c.bf16 %v731, %v730
      %v756 = vpack.c.bf16 %v733, %v732
      %v757 = vpack.c.bf16 %v735, %v734
      %v758 = vpack.c.bf16 %v737, %v736
      %v759 = vpack.c.bf16 %v739, %v738
      %v760 = vpack.c.bf16 %v741, %v740
      %v761 = vpack.c.bf16 %v743, %v742
      %v762 = vpack.c.bf16 %v745, %v744
      %v763 = vpack.c.bf16 %v747, %v746
      %780 = vrot.lane.b32.xlu0 %v748, 12
      %v781 = vpop.permute.xlu0 %780
      %782 = vrot.lane.b32.xlu0 %v749, 12
      %v783 = vpop.permute.xlu0 %782
      %784 = vrot.lane.b32.xlu0 %v750, 12
      %v785 = vpop.permute.xlu0 %784
      %786 = vrot.lane.b32.xlu0 %v751, 12
      %v787 = vpop.permute.xlu0 %786
      %788 = vrot.lane.b32.xlu0 %v752, 12
      %v789 = vpop.permute.xlu0 %788
      %790 = vrot.lane.b32.xlu0 %v753, 12
      %v791 = vpop.permute.xlu0 %790
      %792 = vrot.lane.b32.xlu0 %v754, 12
      %v793 = vpop.permute.xlu0 %792
      %794 = vrot.lane.b32.xlu0 %v755, 12
      %v795 = vpop.permute.xlu0 %794
      %796 = vrot.lane.b32.xlu0 %v756, 12
      %v797 = vpop.permute.xlu0 %796
      %798 = vrot.lane.b32.xlu0 %v757, 12
      %v799 = vpop.permute.xlu0 %798
      %800 = vrot.lane.b32.xlu0 %v758, 12
      %v801 = vpop.permute.xlu0 %800
      %802 = vrot.lane.b32.xlu0 %v759, 12
      %v803 = vpop.permute.xlu0 %802
      %804 = vrot.lane.b32.xlu0 %v760, 12
      %v805 = vpop.permute.xlu0 %804
      %806 = vrot.lane.b32.xlu0 %v761, 12
      %v807 = vpop.permute.xlu0 %806
      %808 = vrot.lane.b32.xlu0 %v762, 12
      %v809 = vpop.permute.xlu0 %808
      %810 = vrot.lane.b32.xlu0 %v763, 12
      %v811 = vpop.permute.xlu0 %810
      %vm828 = vcmask 195680
      %829 = vst.msk [vmem:[#allocation3] sm:$0xff] %vm828, %v781
      %830 = vst.msk [vmem:[#allocation3 + $0x8] sm:$0xff] %vm828, %v783
      %831 = vst.msk [vmem:[#allocation3 + $0x10] sm:$0xff] %vm828, %v785
      %832 = vst.msk [vmem:[#allocation3 + $0x18] sm:$0xff] %vm828, %v787
      %833 = vst.msk [vmem:[#allocation3 + $0x20] sm:$0xff] %vm828, %v789
      %834 = vst.msk [vmem:[#allocation3 + $0x28] sm:$0xff] %vm828, %v791
      %835 = vst.msk [vmem:[#allocation3 + $0x30] sm:$0xff] %vm828, %v793
      %836 = vst.msk [vmem:[#allocation3 + $0x38] sm:$0xff] %vm828, %v795
      %837 = vst.msk [vmem:[#allocation3 + $0x40] sm:$0xff] %vm828, %v797
      %838 = vst.msk [vmem:[#allocation3 + $0x48] sm:$0xff] %vm828, %v799
      %839 = vst.msk [vmem:[#allocation3 + $0x50] sm:$0xff] %vm828, %v801
      %840 = vst.msk [vmem:[#allocation3 + $0x58] sm:$0xff] %vm828, %v803
      %841 = vst.msk [vmem:[#allocation3 + $0x60] sm:$0xff] %vm828, %v805
      %842 = vst.msk [vmem:[#allocation3 + $0x68] sm:$0xff] %vm828, %v807
      %843 = vst.msk [vmem:[#allocation3 + $0x70] sm:$0xff] %vm828, %v809
      %844 = vst.msk [vmem:[#allocation3 + $0x78] sm:$0xff] %vm828, %v811
      %v845 = vld [vmem:[#allocation2 + $0x2] sm:$0xff]
      %v846 = vld [vmem:[#allocation2 + $0xa] sm:$0xff]
      %v847 = vld [vmem:[#allocation2 + $0x1a] sm:$0xff]
      %v848 = vld [vmem:[#allocation2 + $0x22] sm:$0xff]
      %v849 = vld [vmem:[#allocation2 + $0x32] sm:$0xff]
      %v850 = vld [vmem:[#allocation2 + $0x3a] sm:$0xff]
      %v851 = vld [vmem:[#allocation2 + $0x4a] sm:$0xff]
      %v852 = vld [vmem:[#allocation2 + $0x52] sm:$0xff]
      %v853 = vld [vmem:[#allocation2 + $0x62] sm:$0xff]
      %v854 = vld [vmem:[#allocation2 + $0x6a] sm:$0xff]
      %v855 = vld [vmem:[#allocation2 + $0x7a] sm:$0xff]
      %v856 = vld [vmem:[#allocation2 + $0x82] sm:$0xff]
      %v857 = vld [vmem:[#allocation2 + $0x92] sm:$0xff]
      %v858 = vld [vmem:[#allocation2 + $0x9a] sm:$0xff]
      %v859 = vld [vmem:[#allocation2 + $0xaa] sm:$0xff]
      %v860 = vld [vmem:[#allocation2 + $0xb2] sm:$0xff]
      %v861 = vld [vmem:[#allocation2 + $0xc2] sm:$0xff]
      %v862 = vld [vmem:[#allocation2 + $0xca] sm:$0xff]
      %v863 = vld [vmem:[#allocation2 + $0xda] sm:$0xff]
      %v864 = vld [vmem:[#allocation2 + $0xe2] sm:$0xff]
      %v865 = vld [vmem:[#allocation2 + $0xf2] sm:$0xff]
      %v866 = vld [vmem:[#allocation2 + $0xfa] sm:$0xff]
      %v867 = vld [vmem:[#allocation2 + $0x10a] sm:$0xff]
      %v868 = vld [vmem:[#allocation2 + $0x112] sm:$0xff]
      %v869 = vld [vmem:[#allocation2 + $0x122] sm:$0xff]
      %v870 = vld [vmem:[#allocation2 + $0x12a] sm:$0xff]
      %v871 = vld [vmem:[#allocation2 + $0x13a] sm:$0xff]
      %v872 = vld [vmem:[#allocation2 + $0x142] sm:$0xff]
      %v873 = vld [vmem:[#allocation2 + $0x152] sm:$0xff]
      %v874 = vld [vmem:[#allocation2 + $0x15a] sm:$0xff]
      %v875 = vld [vmem:[#allocation2 + $0x16a] sm:$0xff]
      %v876 = vld [vmem:[#allocation2 + $0x172] sm:$0xff]
      %v877 = vpack.c.bf16 %v846, %v845
      %v878 = vpack.c.bf16 %v848, %v847
      %v879 = vpack.c.bf16 %v850, %v849
      %v880 = vpack.c.bf16 %v852, %v851
      %v881 = vpack.c.bf16 %v854, %v853
      %v882 = vpack.c.bf16 %v856, %v855
      %v883 = vpack.c.bf16 %v858, %v857
      %v884 = vpack.c.bf16 %v860, %v859
      %v885 = vpack.c.bf16 %v862, %v861
      %v886 = vpack.c.bf16 %v864, %v863
      %v887 = vpack.c.bf16 %v866, %v865
      %v888 = vpack.c.bf16 %v868, %v867
      %v889 = vpack.c.bf16 %v870, %v869
      %v890 = vpack.c.bf16 %v872, %v871
      %v891 = vpack.c.bf16 %v874, %v873
      %v892 = vpack.c.bf16 %v876, %v875
      %909 = vrot.lane.b32.xlu0 %v877, 24
      %v910 = vpop.permute.xlu0 %909
      %911 = vrot.lane.b32.xlu0 %v878, 24
      %v912 = vpop.permute.xlu0 %911
      %913 = vrot.lane.b32.xlu0 %v879, 24
      %v914 = vpop.permute.xlu0 %913
      %915 = vrot.lane.b32.xlu0 %v880, 24
      %v916 = vpop.permute.xlu0 %915
      %917 = vrot.lane.b32.xlu0 %v881, 24
      %v918 = vpop.permute.xlu0 %917
      %919 = vrot.lane.b32.xlu0 %v882, 24
      %v920 = vpop.permute.xlu0 %919
      %921 = vrot.lane.b32.xlu0 %v883, 24
      %v922 = vpop.permute.xlu0 %921
      %923 = vrot.lane.b32.xlu0 %v884, 24
      %v924 = vpop.permute.xlu0 %923
      %925 = vrot.lane.b32.xlu0 %v885, 24
      %v926 = vpop.permute.xlu0 %925
      %927 = vrot.lane.b32.xlu0 %v886, 24
      %v928 = vpop.permute.xlu0 %927
      %929 = vrot.lane.b32.xlu0 %v887, 24
      %v930 = vpop.permute.xlu0 %929
      %931 = vrot.lane.b32.xlu0 %v888, 24
      %v932 = vpop.permute.xlu0 %931
      %933 = vrot.lane.b32.xlu0 %v889, 24
      %v934 = vpop.permute.xlu0 %933
      %935 = vrot.lane.b32.xlu0 %v890, 24
      %v936 = vpop.permute.xlu0 %935
      %937 = vrot.lane.b32.xlu0 %v891, 24
      %v938 = vpop.permute.xlu0 %937
      %939 = vrot.lane.b32.xlu0 %v892, 24
      %v940 = vpop.permute.xlu0 %939
      %vm957 = vcmask 294080
      %958 = vst.msk [vmem:[#allocation3] sm:$0xff] %vm957, %v910
      %959 = vst.msk [vmem:[#allocation3 + $0x8] sm:$0xff] %vm957, %v912
      %960 = vst.msk [vmem:[#allocation3 + $0x10] sm:$0xff] %vm957, %v914
      %961 = vst.msk [vmem:[#allocation3 + $0x18] sm:$0xff] %vm957, %v916
      %962 = vst.msk [vmem:[#allocation3 + $0x20] sm:$0xff] %vm957, %v918
      %963 = vst.msk [vmem:[#allocation3 + $0x28] sm:$0xff] %vm957, %v920
      %964 = vst.msk [vmem:[#allocation3 + $0x30] sm:$0xff] %vm957, %v922
      %965 = vst.msk [vmem:[#allocation3 + $0x38] sm:$0xff] %vm957, %v924
      %966 = vst.msk [vmem:[#allocation3 + $0x40] sm:$0xff] %vm957, %v926
      %967 = vst.msk [vmem:[#allocation3 + $0x48] sm:$0xff] %vm957, %v928
      %968 = vst.msk [vmem:[#allocation3 + $0x50] sm:$0xff] %vm957, %v930
      %969 = vst.msk [vmem:[#allocation3 + $0x58] sm:$0xff] %vm957, %v932
      %970 = vst.msk [vmem:[#allocation3 + $0x60] sm:$0xff] %vm957, %v934
      %971 = vst.msk [vmem:[#allocation3 + $0x68] sm:$0xff] %vm957, %v936
      %972 = vst.msk [vmem:[#allocation3 + $0x70] sm:$0xff] %vm957, %v938
      %973 = vst.msk [vmem:[#allocation3 + $0x78] sm:$0xff] %vm957, %v940
      %v974 = vld [vmem:[%s393] sm:$0xff]
      %v975 = vld [vmem:[%s393 + $0x8] sm:$0xff]
      %v976 = vld [vmem:[%s393 + $0x18] sm:$0xff]
      %v977 = vld [vmem:[%s393 + $0x20] sm:$0xff]
      %v978 = vld [vmem:[%s393 + $0x30] sm:$0xff]
      %v979 = vld [vmem:[%s393 + $0x38] sm:$0xff]
      %v980 = vld [vmem:[%s393 + $0x48] sm:$0xff]
      %v981 = vld [vmem:[%s393 + $0x50] sm:$0xff]
      %v982 = vld [vmem:[%s393 + $0x60] sm:$0xff]
      %v983 = vld [vmem:[%s393 + $0x68] sm:$0xff]
      %v984 = vld [vmem:[%s393 + $0x78] sm:$0xff]
      %v985 = vld [vmem:[%s393 + $0x80] sm:$0xff]
      %v986 = vld [vmem:[%s393 + $0x90] sm:$0xff]
      %v987 = vld [vmem:[%s393 + $0x98] sm:$0xff]
      %v988 = vld [vmem:[%s393 + $0xa8] sm:$0xff]
      %v989 = vld [vmem:[%s393 + $0xb0] sm:$0xff]
      %v990 = vld [vmem:[%s393 + $0xc0] sm:$0xff]
      %v991 = vld [vmem:[%s393 + $0xc8] sm:$0xff]
      %v992 = vld [vmem:[%s393 + $0xd8] sm:$0xff]
      %v993 = vld [vmem:[%s393 + $0xe0] sm:$0xff]
      %v994 = vld [vmem:[%s393 + $0xf0] sm:$0xff]
      %v995 = vld [vmem:[%s393 + $0xf8] sm:$0xff]
      %v996 = vld [vmem:[%s393 + $0x108] sm:$0xff]
      %v997 = vld [vmem:[%s393 + $0x110] sm:$0xff]
      %v998 = vld [vmem:[%s393 + $0x120] sm:$0xff]
      %v999 = vld [vmem:[%s393 + $0x128] sm:$0xff]
      %v1000 = vld [vmem:[%s393 + $0x138] sm:$0xff]
      %v1001 = vld [vmem:[%s393 + $0x140] sm:$0xff]
      %v1002 = vld [vmem:[%s393 + $0x150] sm:$0xff]
      %v1003 = vld [vmem:[%s393 + $0x158] sm:$0xff]
      %v1004 = vld [vmem:[%s393 + $0x168] sm:$0xff]
      %v1005 = vld [vmem:[%s393 + $0x170] sm:$0xff]
      %v1006 = vpack.c.bf16 %v975, %v974
      %v1007 = vpack.c.bf16 %v977, %v976
      %v1008 = vpack.c.bf16 %v979, %v978
      %v1009 = vpack.c.bf16 %v981, %v980
      %v1010 = vpack.c.bf16 %v983, %v982
      %v1011 = vpack.c.bf16 %v985, %v984
      %v1012 = vpack.c.bf16 %v987, %v986
      %v1013 = vpack.c.bf16 %v989, %v988
      %v1014 = vpack.c.bf16 %v991, %v990
      %v1015 = vpack.c.bf16 %v993, %v992
      %v1016 = vpack.c.bf16 %v995, %v994
      %v1017 = vpack.c.bf16 %v997, %v996
      %v1018 = vpack.c.bf16 %v999, %v998
      %v1019 = vpack.c.bf16 %v1001, %v1000
      %v1020 = vpack.c.bf16 %v1003, %v1002
      %v1021 = vpack.c.bf16 %v1005, %v1004
      %1038 = vrot.lane.b32.xlu0 %v1006, 36
      %v1039 = vpop.permute.xlu0 %1038
      %1040 = vrot.lane.b32.xlu0 %v1007, 36
      %v1041 = vpop.permute.xlu0 %1040
      %1042 = vrot.lane.b32.xlu0 %v1008, 36
      %v1043 = vpop.permute.xlu0 %1042
      %1044 = vrot.lane.b32.xlu0 %v1009, 36
      %v1045 = vpop.permute.xlu0 %1044
      %1046 = vrot.lane.b32.xlu0 %v1010, 36
      %v1047 = vpop.permute.xlu0 %1046
      %1048 = vrot.lane.b32.xlu0 %v1011, 36
      %v1049 = vpop.permute.xlu0 %1048
      %1050 = vrot.lane.b32.xlu0 %v1012, 36
      %v1051 = vpop.permute.xlu0 %1050
      %1052 = vrot.lane.b32.xlu0 %v1013, 36
      %v1053 = vpop.permute.xlu0 %1052
      %1054 = vrot.lane.b32.xlu0 %v1014, 36
      %v1055 = vpop.permute.xlu0 %1054
      %1056 = vrot.lane.b32.xlu0 %v1015, 36
      %v1057 = vpop.permute.xlu0 %1056
      %1058 = vrot.lane.b32.xlu0 %v1016, 36
      %v1059 = vpop.permute.xlu0 %1058
      %1060 = vrot.lane.b32.xlu0 %v1017, 36
      %v1061 = vpop.permute.xlu0 %1060
      %1062 = vrot.lane.b32.xlu0 %v1018, 36
      %v1063 = vpop.permute.xlu0 %1062
      %1064 = vrot.lane.b32.xlu0 %v1019, 36
      %v1065 = vpop.permute.xlu0 %1064
      %1066 = vrot.lane.b32.xlu0 %v1020, 36
      %v1067 = vpop.permute.xlu0 %1066
      %1068 = vrot.lane.b32.xlu0 %v1021, 36
      %v1069 = vpop.permute.xlu0 %1068
      %vm1086 = vcmask 392480
      %1087 = vst.msk [vmem:[#allocation3] sm:$0xff] %vm1086, %v1039
      %1088 = vst.msk [vmem:[#allocation3 + $0x8] sm:$0xff] %vm1086, %v1041
      %1089 = vst.msk [vmem:[#allocation3 + $0x10] sm:$0xff] %vm1086, %v1043
      %1090 = vst.msk [vmem:[#allocation3 + $0x18] sm:$0xff] %vm1086, %v1045
      %1091 = vst.msk [vmem:[#allocation3 + $0x20] sm:$0xff] %vm1086, %v1047
      %1092 = vst.msk [vmem:[#allocation3 + $0x28] sm:$0xff] %vm1086, %v1049
      %1093 = vst.msk [vmem:[#allocation3 + $0x30] sm:$0xff] %vm1086, %v1051
      %1094 = vst.msk [vmem:[#allocation3 + $0x38] sm:$0xff] %vm1086, %v1053
      %1095 = vst.msk [vmem:[#allocation3 + $0x40] sm:$0xff] %vm1086, %v1055
      %1096 = vst.msk [vmem:[#allocation3 + $0x48] sm:$0xff] %vm1086, %v1057
      %1097 = vst.msk [vmem:[#allocation3 + $0x50] sm:$0xff] %vm1086, %v1059
      %1098 = vst.msk [vmem:[#allocation3 + $0x58] sm:$0xff] %vm1086, %v1061
      %1099 = vst.msk [vmem:[#allocation3 + $0x60] sm:$0xff] %vm1086, %v1063
      %1100 = vst.msk [vmem:[#allocation3 + $0x68] sm:$0xff] %vm1086, %v1065
      %1101 = vst.msk [vmem:[#allocation3 + $0x70] sm:$0xff] %vm1086, %v1067
      %1102 = vst.msk [vmem:[#allocation3 + $0x78] sm:$0xff] %vm1086, %v1069
      %v1103 = vld [vmem:[%s393 + $0x1] sm:$0xff]
      %v1104 = vld [vmem:[%s393 + $0x9] sm:$0xff]
      %v1105 = vld [vmem:[%s393 + $0x19] sm:$0xff]
      %v1106 = vld [vmem:[%s393 + $0x21] sm:$0xff]
      %v1107 = vld [vmem:[%s393 + $0x31] sm:$0xff]
      %v1108 = vld [vmem:[%s393 + $0x39] sm:$0xff]
      %v1109 = vld [vmem:[%s393 + $0x49] sm:$0xff]
      %v1110 = vld [vmem:[%s393 + $0x51] sm:$0xff]
      %v1111 = vld [vmem:[%s393 + $0x61] sm:$0xff]
      %v1112 = vld [vmem:[%s393 + $0x69] sm:$0xff]
      %v1113 = vld [vmem:[%s393 + $0x79] sm:$0xff]
      %v1114 = vld [vmem:[%s393 + $0x81] sm:$0xff]
      %v1115 = vld [vmem:[%s393 + $0x91] sm:$0xff]
      %v1116 = vld [vmem:[%s393 + $0x99] sm:$0xff]
      %v1117 = vld [vmem:[%s393 + $0xa9] sm:$0xff]
      %v1118 = vld [vmem:[%s393 + $0xb1] sm:$0xff]
      %v1119 = vld [vmem:[%s393 + $0xc1] sm:$0xff]
      %v1120 = vld [vmem:[%s393 + $0xc9] sm:$0xff]
      %v1121 = vld [vmem:[%s393 + $0xd9] sm:$0xff]
      %v1122 = vld [vmem:[%s393 + $0xe1] sm:$0xff]
      %v1123 = vld [vmem:[%s393 + $0xf1] sm:$0xff]
      %v1124 = vld [vmem:[%s393 + $0xf9] sm:$0xff]
      %v1125 = vld [vmem:[%s393 + $0x109] sm:$0xff]
      %v1126 = vld [vmem:[%s393 + $0x111] sm:$0xff]
      %v1127 = vld [vmem:[%s393 + $0x121] sm:$0xff]
      %v1128 = vld [vmem:[%s393 + $0x129] sm:$0xff]
      %v1129 = vld [vmem:[%s393 + $0x139] sm:$0xff]
      %v1130 = vld [vmem:[%s393 + $0x141] sm:$0xff]
      %v1131 = vld [vmem:[%s393 + $0x151] sm:$0xff]
      %v1132 = vld [vmem:[%s393 + $0x159] sm:$0xff]
      %v1133 = vld [vmem:[%s393 + $0x169] sm:$0xff]
      %v1134 = vld [vmem:[%s393 + $0x171] sm:$0xff]
      %v1135 = vpack.c.bf16 %v1104, %v1103
      %v1136 = vpack.c.bf16 %v1106, %v1105
      %v1137 = vpack.c.bf16 %v1108, %v1107
      %v1138 = vpack.c.bf16 %v1110, %v1109
      %v1139 = vpack.c.bf16 %v1112, %v1111
      %v1140 = vpack.c.bf16 %v1114, %v1113
      %v1141 = vpack.c.bf16 %v1116, %v1115
      %v1142 = vpack.c.bf16 %v1118, %v1117
      %v1143 = vpack.c.bf16 %v1120, %v1119
      %v1144 = vpack.c.bf16 %v1122, %v1121
      %v1145 = vpack.c.bf16 %v1124, %v1123
      %v1146 = vpack.c.bf16 %v1126, %v1125
      %v1147 = vpack.c.bf16 %v1128, %v1127
      %v1148 = vpack.c.bf16 %v1130, %v1129
      %v1149 = vpack.c.bf16 %v1132, %v1131
      %v1150 = vpack.c.bf16 %v1134, %v1133
      %1167 = vrot.lane.b32.xlu0 %v1135, 48
      %v1168 = vpop.permute.xlu0 %1167
      %1169 = vrot.lane.b32.xlu0 %v1136, 48
      %v1170 = vpop.permute.xlu0 %1169
      %1171 = vrot.lane.b32.xlu0 %v1137, 48
      %v1172 = vpop.permute.xlu0 %1171
      %1173 = vrot.lane.b32.xlu0 %v1138, 48
      %v1174 = vpop.permute.xlu0 %1173
      %1175 = vrot.lane.b32.xlu0 %v1139, 48
      %v1176 = vpop.permute.xlu0 %1175
      %1177 = vrot.lane.b32.xlu0 %v1140, 48
      %v1178 = vpop.permute.xlu0 %1177
      %1179 = vrot.lane.b32.xlu0 %v1141, 48
      %v1180 = vpop.permute.xlu0 %1179
      %1181 = vrot.lane.b32.xlu0 %v1142, 48
      %v1182 = vpop.permute.xlu0 %1181
      %1183 = vrot.lane.b32.xlu0 %v1143, 48
      %v1184 = vpop.permute.xlu0 %1183
      %1185 = vrot.lane.b32.xlu0 %v1144, 48
      %v1186 = vpop.permute.xlu0 %1185
      %1187 = vrot.lane.b32.xlu0 %v1145, 48
      %v1188 = vpop.permute.xlu0 %1187
      %1189 = vrot.lane.b32.xlu0 %v1146, 48
      %v1190 = vpop.permute.xlu0 %1189
      %1191 = vrot.lane.b32.xlu0 %v1147, 48
      %v1192 = vpop.permute.xlu0 %1191
      %1193 = vrot.lane.b32.xlu0 %v1148, 48
      %v1194 = vpop.permute.xlu0 %1193
      %1195 = vrot.lane.b32.xlu0 %v1149, 48
      %v1196 = vpop.permute.xlu0 %1195
      %1197 = vrot.lane.b32.xlu0 %v1150, 48
      %v1198 = vpop.permute.xlu0 %1197
      %vm1215 = vcmask 490880
      %1216 = vst.msk [vmem:[#allocation3] sm:$0xff] %vm1215, %v1168
      %1217 = vst.msk [vmem:[#allocation3 + $0x8] sm:$0xff] %vm1215, %v1170
      %1218 = vst.msk [vmem:[#allocation3 + $0x10] sm:$0xff] %vm1215, %v1172
      %1219 = vst.msk [vmem:[#allocation3 + $0x18] sm:$0xff] %vm1215, %v1174
      %1220 = vst.msk [vmem:[#allocation3 + $0x20] sm:$0xff] %vm1215, %v1176
      %1221 = vst.msk [vmem:[#allocation3 + $0x28] sm:$0xff] %vm1215, %v1178
      %1222 = vst.msk [vmem:[#allocation3 + $0x30] sm:$0xff] %vm1215, %v1180
      %1223 = vst.msk [vmem:[#allocation3 + $0x38] sm:$0xff] %vm1215, %v1182
      %1224 = vst.msk [vmem:[#allocation3 + $0x40] sm:$0xff] %vm1215, %v1184
      %1225 = vst.msk [vmem:[#allocation3 + $0x48] sm:$0xff] %vm1215, %v1186
      %1226 = vst.msk [vmem:[#allocation3 + $0x50] sm:$0xff] %vm1215, %v1188
      %1227 = vst.msk [vmem:[#allocation3 + $0x58] sm:$0xff] %vm1215, %v1190
      %1228 = vst.msk [vmem:[#allocation3 + $0x60] sm:$0xff] %vm1215, %v1192
      %1229 = vst.msk [vmem:[#allocation3 + $0x68] sm:$0xff] %vm1215, %v1194
      %1230 = vst.msk [vmem:[#allocation3 + $0x70] sm:$0xff] %vm1215, %v1196
      %1231 = vst.msk [vmem:[#allocation3 + $0x78] sm:$0xff] %vm1215, %v1198
      %v1232 = vld [vmem:[%s393 + $0x2] sm:$0xff]
      %v1233 = vld [vmem:[%s393 + $0xa] sm:$0xff]
      %v1234 = vld [vmem:[%s393 + $0x1a] sm:$0xff]
      %v1235 = vld [vmem:[%s393 + $0x22] sm:$0xff]
      %v1236 = vld [vmem:[%s393 + $0x32] sm:$0xff]
      %v1237 = vld [vmem:[%s393 + $0x3a] sm:$0xff]
      %v1238 = vld [vmem:[%s393 + $0x4a] sm:$0xff]
      %v1239 = vld [vmem:[%s393 + $0x52] sm:$0xff]
      %v1240 = vld [vmem:[%s393 + $0x62] sm:$0xff]
      %v1241 = vld [vmem:[%s393 + $0x6a] sm:$0xff]
      %v1242 = vld [vmem:[%s393 + $0x7a] sm:$0xff]
      %v1243 = vld [vmem:[%s393 + $0x82] sm:$0xff]
      %v1244 = vld [vmem:[%s393 + $0x92] sm:$0xff]
      %v1245 = vld [vmem:[%s393 + $0x9a] sm:$0xff]
      %v1246 = vld [vmem:[%s393 + $0xaa] sm:$0xff]
      %v1247 = vld [vmem:[%s393 + $0xb2] sm:$0xff]
      %v1248 = vld [vmem:[%s393 + $0xc2] sm:$0xff]
      %v1249 = vld [vmem:[%s393 + $0xca] sm:$0xff]
      %v1250 = vld [vmem:[%s393 + $0xda] sm:$0xff]
      %v1251 = vld [vmem:[%s393 + $0xe2] sm:$0xff]
      %v1252 = vld [vmem:[%s393 + $0xf2] sm:$0xff]
      %v1253 = vld [vmem:[%s393 + $0xfa] sm:$0xff]
      %v1254 = vld [vmem:[%s393 + $0x10a] sm:$0xff]
      %v1255 = vld [vmem:[%s393 + $0x112] sm:$0xff]
      %v1256 = vld [vmem:[%s393 + $0x122] sm:$0xff]
      %v1257 = vld [vmem:[%s393 + $0x12a] sm:$0xff]
      %v1258 = vld [vmem:[%s393 + $0x13a] sm:$0xff]
      %v1259 = vld [vmem:[%s393 + $0x142] sm:$0xff]
      %v1260 = vld [vmem:[%s393 + $0x152] sm:$0xff]
      %v1261 = vld [vmem:[%s393 + $0x15a] sm:$0xff]
      %v1262 = vld [vmem:[%s393 + $0x16a] sm:$0xff]
      %v1263 = vld [vmem:[%s393 + $0x172] sm:$0xff]
      %v1264 = vpack.c.bf16 %v1233, %v1232
      %v1265 = vpack.c.bf16 %v1235, %v1234
      %v1266 = vpack.c.bf16 %v1237, %v1236
      %v1267 = vpack.c.bf16 %v1239, %v1238
      %v1268 = vpack.c.bf16 %v1241, %v1240
      %v1269 = vpack.c.bf16 %v1243, %v1242
      %v1270 = vpack.c.bf16 %v1245, %v1244
      %v1271 = vpack.c.bf16 %v1247, %v1246
      %v1272 = vpack.c.bf16 %v1249, %v1248
      %v1273 = vpack.c.bf16 %v1251, %v1250
      %v1274 = vpack.c.bf16 %v1253, %v1252
      %v1275 = vpack.c.bf16 %v1255, %v1254
      %v1276 = vpack.c.bf16 %v1257, %v1256
      %v1277 = vpack.c.bf16 %v1259, %v1258
      %v1278 = vpack.c.bf16 %v1261, %v1260
      %v1279 = vpack.c.bf16 %v1263, %v1262
      %1296 = vrot.lane.b32.xlu0 %v1264, 60
      %v1297 = vpop.permute.xlu0 %1296
      %1298 = vrot.lane.b32.xlu0 %v1265, 60
      %v1299 = vpop.permute.xlu0 %1298
      %1300 = vrot.lane.b32.xlu0 %v1266, 60
      %v1301 = vpop.permute.xlu0 %1300
      %1302 = vrot.lane.b32.xlu0 %v1267, 60
      %v1303 = vpop.permute.xlu0 %1302
      %1304 = vrot.lane.b32.xlu0 %v1268, 60
      %v1305 = vpop.permute.xlu0 %1304
      %1306 = vrot.lane.b32.xlu0 %v1269, 60
      %v1307 = vpop.permute.xlu0 %1306
      %1308 = vrot.lane.b32.xlu0 %v1270, 60
      %v1309 = vpop.permute.xlu0 %1308
      %1310 = vrot.lane.b32.xlu0 %v1271, 60
      %v1311 = vpop.permute.xlu0 %1310
      %1312 = vrot.lane.b32.xlu0 %v1272, 60
      %v1313 = vpop.permute.xlu0 %1312
      %1314 = vrot.lane.b32.xlu0 %v1273, 60
      %v1315 = vpop.permute.xlu0 %1314
      %1316 = vrot.lane.b32.xlu0 %v1274, 60
      %v1317 = vpop.permute.xlu0 %1316
      %1318 = vrot.lane.b32.xlu0 %v1275, 60
      %v1319 = vpop.permute.xlu0 %1318
      %1320 = vrot.lane.b32.xlu0 %v1276, 60
      %v1321 = vpop.permute.xlu0 %1320
      %1322 = vrot.lane.b32.xlu0 %v1277, 60
      %v1323 = vpop.permute.xlu0 %1322
      %1324 = vrot.lane.b32.xlu0 %v1278, 60
      %v1325 = vpop.permute.xlu0 %1324
      %1326 = vrot.lane.b32.xlu0 %v1279, 60
      %v1327 = vpop.permute.xlu0 %1326
      %vm1344 = vcmask 589280
      %1345 = vst.msk [vmem:[#allocation3] sm:$0xff] %vm1344, %v1297
      %1346 = vst.msk [vmem:[#allocation3 + $0x8] sm:$0xff] %vm1344, %v1299
      %1347 = vst.msk [vmem:[#allocation3 + $0x10] sm:$0xff] %vm1344, %v1301
      %1348 = vst.msk [vmem:[#allocation3 + $0x18] sm:$0xff] %vm1344, %v1303
      %1349 = vst.msk [vmem:[#allocation3 + $0x20] sm:$0xff] %vm1344, %v1305
      %1350 = vst.msk [vmem:[#allocation3 + $0x28] sm:$0xff] %vm1344, %v1307
      %1351 = vst.msk [vmem:[#allocation3 + $0x30] sm:$0xff] %vm1344, %v1309
      %1352 = vst.msk [vmem:[#allocation3 + $0x38] sm:$0xff] %vm1344, %v1311
      %1353 = vst.msk [vmem:[#allocation3 + $0x40] sm:$0xff] %vm1344, %v1313
      %1354 = vst.msk [vmem:[#allocation3 + $0x48] sm:$0xff] %vm1344, %v1315
      %1355 = vst.msk [vmem:[#allocation3 + $0x50] sm:$0xff] %vm1344, %v1317
      %1356 = vst.msk [vmem:[#allocation3 + $0x58] sm:$0xff] %vm1344, %v1319
      %1357 = vst.msk [vmem:[#allocation3 + $0x60] sm:$0xff] %vm1344, %v1321
      %1358 = vst.msk [vmem:[#allocation3 + $0x68] sm:$0xff] %vm1344, %v1323
      %1359 = vst.msk [vmem:[#allocation3 + $0x70] sm:$0xff] %vm1344, %v1325
      %1360 = vst.msk [vmem:[#allocation3 + $0x78] sm:$0xff] %vm1344, %v1327
      %s1361 = scalar_lea.vmem [#allocation2], 48
      %v1362 = vld [vmem:[%s1361] sm:$0xff]
      %v1363 = vld [vmem:[%s1361 + $0x8] sm:$0xff]
      %v1364 = vld [vmem:[%s1361 + $0x18] sm:$0xff]
      %v1365 = vld [vmem:[%s1361 + $0x20] sm:$0xff]
      %v1366 = vld [vmem:[%s1361 + $0x30] sm:$0xff]
      %v1367 = vld [vmem:[%s1361 + $0x38] sm:$0xff]
      %v1368 = vld [vmem:[%s1361 + $0x48] sm:$0xff]
      %v1369 = vld [vmem:[%s1361 + $0x50] sm:$0xff]
      %v1370 = vld [vmem:[%s1361 + $0x60] sm:$0xff]
      %v1371 = vld [vmem:[%s1361 + $0x68] sm:$0xff]
      %v1372 = vld [vmem:[%s1361 + $0x78] sm:$0xff]
      %v1373 = vld [vmem:[%s1361 + $0x80] sm:$0xff]
      %v1374 = vld [vmem:[%s1361 + $0x90] sm:$0xff]
      %v1375 = vld [vmem:[%s1361 + $0x98] sm:$0xff]
      %v1376 = vld [vmem:[%s1361 + $0xa8] sm:$0xff]
      %v1377 = vld [vmem:[%s1361 + $0xb0] sm:$0xff]
      %v1378 = vld [vmem:[%s1361 + $0xc0] sm:$0xff]
      %v1379 = vld [vmem:[%s1361 + $0xc8] sm:$0xff]
      %v1380 = vld [vmem:[%s1361 + $0xd8] sm:$0xff]
      %v1381 = vld [vmem:[%s1361 + $0xe0] sm:$0xff]
      %v1382 = vld [vmem:[%s1361 + $0xf0] sm:$0xff]
      %v1383 = vld [vmem:[%s1361 + $0xf8] sm:$0xff]
      %v1384 = vld [vmem:[%s1361 + $0x108] sm:$0xff]
      %v1385 = vld [vmem:[%s1361 + $0x110] sm:$0xff]
      %v1386 = vld [vmem:[%s1361 + $0x120] sm:$0xff]
      %v1387 = vld [vmem:[%s1361 + $0x128] sm:$0xff]
      %v1388 = vld [vmem:[%s1361 + $0x138] sm:$0xff]
      %v1389 = vld [vmem:[%s1361 + $0x140] sm:$0xff]
      %v1390 = vld [vmem:[%s1361 + $0x150] sm:$0xff]
      %v1391 = vld [vmem:[%s1361 + $0x158] sm:$0xff]
      %v1392 = vld [vmem:[%s1361 + $0x168] sm:$0xff]
      %v1393 = vld [vmem:[%s1361 + $0x170] sm:$0xff]
      %v1394 = vpack.c.bf16 %v1363, %v1362
      %v1395 = vpack.c.bf16 %v1365, %v1364
      %v1396 = vpack.c.bf16 %v1367, %v1366
      %v1397 = vpack.c.bf16 %v1369, %v1368
      %v1398 = vpack.c.bf16 %v1371, %v1370
      %v1399 = vpack.c.bf16 %v1373, %v1372
      %v1400 = vpack.c.bf16 %v1375, %v1374
      %v1401 = vpack.c.bf16 %v1377, %v1376
      %v1402 = vpack.c.bf16 %v1379, %v1378
      %v1403 = vpack.c.bf16 %v1381, %v1380
      %v1404 = vpack.c.bf16 %v1383, %v1382
      %v1405 = vpack.c.bf16 %v1385, %v1384
      %v1406 = vpack.c.bf16 %v1387, %v1386
      %v1407 = vpack.c.bf16 %v1389, %v1388
      %v1408 = vpack.c.bf16 %v1391, %v1390
      %v1409 = vpack.c.bf16 %v1393, %v1392
      %1426 = vrot.lane.b32.xlu0 %v1394, 72
      %v1427 = vpop.permute.xlu0 %1426
      %1428 = vrot.lane.b32.xlu0 %v1395, 72
      %v1429 = vpop.permute.xlu0 %1428
      %1430 = vrot.lane.b32.xlu0 %v1396, 72
      %v1431 = vpop.permute.xlu0 %1430
      %1432 = vrot.lane.b32.xlu0 %v1397, 72
      %v1433 = vpop.permute.xlu0 %1432
      %1434 = vrot.lane.b32.xlu0 %v1398, 72
      %v1435 = vpop.permute.xlu0 %1434
      %1436 = vrot.lane.b32.xlu0 %v1399, 72
      %v1437 = vpop.permute.xlu0 %1436
      %1438 = vrot.lane.b32.xlu0 %v1400, 72
      %v1439 = vpop.permute.xlu0 %1438
      %1440 = vrot.lane.b32.xlu0 %v1401, 72
      %v1441 = vpop.permute.xlu0 %1440
      %1442 = vrot.lane.b32.xlu0 %v1402, 72
      %v1443 = vpop.permute.xlu0 %1442
      %1444 = vrot.lane.b32.xlu0 %v1403, 72
      %v1445 = vpop.permute.xlu0 %1444
      %1446 = vrot.lane.b32.xlu0 %v1404, 72
      %v1447 = vpop.permute.xlu0 %1446
      %1448 = vrot.lane.b32.xlu0 %v1405, 72
      %v1449 = vpop.permute.xlu0 %1448
      %1450 = vrot.lane.b32.xlu0 %v1406, 72
      %v1451 = vpop.permute.xlu0 %1450
      %1452 = vrot.lane.b32.xlu0 %v1407, 72
      %v1453 = vpop.permute.xlu0 %1452
      %1454 = vrot.lane.b32.xlu0 %v1408, 72
      %v1455 = vpop.permute.xlu0 %1454
      %1456 = vrot.lane.b32.xlu0 %v1409, 72
      %v1457 = vpop.permute.xlu0 %1456
      %vm1474 = vcmask 687680
      %1475 = vst.msk [vmem:[#allocation3] sm:$0xff] %vm1474, %v1427
      %1476 = vst.msk [vmem:[#allocation3 + $0x8] sm:$0xff] %vm1474, %v1429
      %1477 = vst.msk [vmem:[#allocation3 + $0x10] sm:$0xff] %vm1474, %v1431
      %1478 = vst.msk [vmem:[#allocation3 + $0x18] sm:$0xff] %vm1474, %v1433
      %1479 = vst.msk [vmem:[#allocation3 + $0x20] sm:$0xff] %vm1474, %v1435
      %1480 = vst.msk [vmem:[#allocation3 + $0x28] sm:$0xff] %vm1474, %v1437
      %1481 = vst.msk [vmem:[#allocation3 + $0x30] sm:$0xff] %vm1474, %v1439
      %1482 = vst.msk [vmem:[#allocation3 + $0x38] sm:$0xff] %vm1474, %v1441
      %1483 = vst.msk [vmem:[#allocation3 + $0x40] sm:$0xff] %vm1474, %v1443
      %1484 = vst.msk [vmem:[#allocation3 + $0x48] sm:$0xff] %vm1474, %v1445
      %1485 = vst.msk [vmem:[#allocation3 + $0x50] sm:$0xff] %vm1474, %v1447
      %1486 = vst.msk [vmem:[#allocation3 + $0x58] sm:$0xff] %vm1474, %v1449
      %1487 = vst.msk [vmem:[#allocation3 + $0x60] sm:$0xff] %vm1474, %v1451
      %1488 = vst.msk [vmem:[#allocation3 + $0x68] sm:$0xff] %vm1474, %v1453
      %1489 = vst.msk [vmem:[#allocation3 + $0x70] sm:$0xff] %vm1474, %v1455
      %1490 = vst.msk [vmem:[#allocation3 + $0x78] sm:$0xff] %vm1474, %v1457
      %v1491 = vld [vmem:[%s1361 + $0x1] sm:$0xff]
      %v1492 = vld [vmem:[%s1361 + $0x9] sm:$0xff]
      %v1493 = vld [vmem:[%s1361 + $0x19] sm:$0xff]
      %v1494 = vld [vmem:[%s1361 + $0x21] sm:$0xff]
      %v1495 = vld [vmem:[%s1361 + $0x31] sm:$0xff]
      %v1496 = vld [vmem:[%s1361 + $0x39] sm:$0xff]
      %v1497 = vld [vmem:[%s1361 + $0x49] sm:$0xff]
      %v1498 = vld [vmem:[%s1361 + $0x51] sm:$0xff]
      %v1499 = vld [vmem:[%s1361 + $0x61] sm:$0xff]
      %v1500 = vld [vmem:[%s1361 + $0x69] sm:$0xff]
      %v1501 = vld [vmem:[%s1361 + $0x79] sm:$0xff]
      %v1502 = vld [vmem:[%s1361 + $0x81] sm:$0xff]
      %v1503 = vld [vmem:[%s1361 + $0x91] sm:$0xff]
      %v1504 = vld [vmem:[%s1361 + $0x99] sm:$0xff]
      %v1505 = vld [vmem:[%s1361 + $0xa9] sm:$0xff]
      %v1506 = vld [vmem:[%s1361 + $0xb1] sm:$0xff]
      %v1507 = vld [vmem:[%s1361 + $0xc1] sm:$0xff]
      %v1508 = vld [vmem:[%s1361 + $0xc9] sm:$0xff]
      %v1509 = vld [vmem:[%s1361 + $0xd9] sm:$0xff]
      %v1510 = vld [vmem:[%s1361 + $0xe1] sm:$0xff]
      %v1511 = vld [vmem:[%s1361 + $0xf1] sm:$0xff]
      %v1512 = vld [vmem:[%s1361 + $0xf9] sm:$0xff]
      %v1513 = vld [vmem:[%s1361 + $0x109] sm:$0xff]
      %v1514 = vld [vmem:[%s1361 + $0x111] sm:$0xff]
      %v1515 = vld [vmem:[%s1361 + $0x121] sm:$0xff]
      %v1516 = vld [vmem:[%s1361 + $0x129] sm:$0xff]
      %v1517 = vld [vmem:[%s1361 + $0x139] sm:$0xff]
      %v1518 = vld [vmem:[%s1361 + $0x141] sm:$0xff]
      %v1519 = vld [vmem:[%s1361 + $0x151] sm:$0xff]
      %v1520 = vld [vmem:[%s1361 + $0x159] sm:$0xff]
      %v1521 = vld [vmem:[%s1361 + $0x169] sm:$0xff]
      %v1522 = vld [vmem:[%s1361 + $0x171] sm:$0xff]
      %v1523 = vpack.c.bf16 %v1492, %v1491
      %v1524 = vpack.c.bf16 %v1494, %v1493
      %v1525 = vpack.c.bf16 %v1496, %v1495
      %v1526 = vpack.c.bf16 %v1498, %v1497
      %v1527 = vpack.c.bf16 %v1500, %v1499
      %v1528 = vpack.c.bf16 %v1502, %v1501
      %v1529 = vpack.c.bf16 %v1504, %v1503
      %v1530 = vpack.c.bf16 %v1506, %v1505
      %v1531 = vpack.c.bf16 %v1508, %v1507
      %v1532 = vpack.c.bf16 %v1510, %v1509
      %v1533 = vpack.c.bf16 %v1512, %v1511
      %v1534 = vpack.c.bf16 %v1514, %v1513
      %v1535 = vpack.c.bf16 %v1516, %v1515
      %v1536 = vpack.c.bf16 %v1518, %v1517
      %v1537 = vpack.c.bf16 %v1520, %v1519
      %v1538 = vpack.c.bf16 %v1522, %v1521
      %1555 = vrot.lane.b32.xlu0 %v1523, 84
      %v1556 = vpop.permute.xlu0 %1555
      %1557 = vrot.lane.b32.xlu0 %v1524, 84
      %v1558 = vpop.permute.xlu0 %1557
      %1559 = vrot.lane.b32.xlu0 %v1525, 84
      %v1560 = vpop.permute.xlu0 %1559
      %1561 = vrot.lane.b32.xlu0 %v1526, 84
      %v1562 = vpop.permute.xlu0 %1561
      %1563 = vrot.lane.b32.xlu0 %v1527, 84
      %v1564 = vpop.permute.xlu0 %1563
      %1565 = vrot.lane.b32.xlu0 %v1528, 84
      %v1566 = vpop.permute.xlu0 %1565
      %1567 = vrot.lane.b32.xlu0 %v1529, 84
      %v1568 = vpop.permute.xlu0 %1567
      %1569 = vrot.lane.b32.xlu0 %v1530, 84
      %v1570 = vpop.permute.xlu0 %1569
      %1571 = vrot.lane.b32.xlu0 %v1531, 84
      %v1572 = vpop.permute.xlu0 %1571
      %1573 = vrot.lane.b32.xlu0 %v1532, 84
      %v1574 = vpop.permute.xlu0 %1573
      %1575 = vrot.lane.b32.xlu0 %v1533, 84
      %v1576 = vpop.permute.xlu0 %1575
      %1577 = vrot.lane.b32.xlu0 %v1534, 84
      %v1578 = vpop.permute.xlu0 %1577
      %1579 = vrot.lane.b32.xlu0 %v1535, 84
      %v1580 = vpop.permute.xlu0 %1579
      %1581 = vrot.lane.b32.xlu0 %v1536, 84
      %v1582 = vpop.permute.xlu0 %1581
      %1583 = vrot.lane.b32.xlu0 %v1537, 84
      %v1584 = vpop.permute.xlu0 %1583
      %1585 = vrot.lane.b32.xlu0 %v1538, 84
      %v1586 = vpop.permute.xlu0 %1585
      %vm1603 = vcmask 786080
      %1604 = vst.msk [vmem:[#allocation3] sm:$0xff] %vm1603, %v1556
      %1605 = vst.msk [vmem:[#allocation3 + $0x8] sm:$0xff] %vm1603, %v1558
      %1606 = vst.msk [vmem:[#allocation3 + $0x10] sm:$0xff] %vm1603, %v1560
      %1607 = vst.msk [vmem:[#allocation3 + $0x18] sm:$0xff] %vm1603, %v1562
      %1608 = vst.msk [vmem:[#allocation3 + $0x20] sm:$0xff] %vm1603, %v1564
      %1609 = vst.msk [vmem:[#allocation3 + $0x28] sm:$0xff] %vm1603, %v1566
      %1610 = vst.msk [vmem:[#allocation3 + $0x30] sm:$0xff] %vm1603, %v1568
      %1611 = vst.msk [vmem:[#allocation3 + $0x38] sm:$0xff] %vm1603, %v1570
      %1612 = vst.msk [vmem:[#allocation3 + $0x40] sm:$0xff] %vm1603, %v1572
      %1613 = vst.msk [vmem:[#allocation3 + $0x48] sm:$0xff] %vm1603, %v1574
      %1614 = vst.msk [vmem:[#allocation3 + $0x50] sm:$0xff] %vm1603, %v1576
      %1615 = vst.msk [vmem:[#allocation3 + $0x58] sm:$0xff] %vm1603, %v1578
      %1616 = vst.msk [vmem:[#allocation3 + $0x60] sm:$0xff] %vm1603, %v1580
      %1617 = vst.msk [vmem:[#allocation3 + $0x68] sm:$0xff] %vm1603, %v1582
      %1618 = vst.msk [vmem:[#allocation3 + $0x70] sm:$0xff] %vm1603, %v1584
      %1619 = vst.msk [vmem:[#allocation3 + $0x78] sm:$0xff] %vm1603, %v1586
      %v1620 = vld [vmem:[%s1361 + $0x2] sm:$0xff]
      %v1621 = vld [vmem:[%s1361 + $0xa] sm:$0xff]
      %v1622 = vld [vmem:[%s1361 + $0x1a] sm:$0xff]
      %v1623 = vld [vmem:[%s1361 + $0x22] sm:$0xff]
      %v1624 = vld [vmem:[%s1361 + $0x32] sm:$0xff]
      %v1625 = vld [vmem:[%s1361 + $0x3a] sm:$0xff]
      %v1626 = vld [vmem:[%s1361 + $0x4a] sm:$0xff]
      %v1627 = vld [vmem:[%s1361 + $0x52] sm:$0xff]
      %v1628 = vld [vmem:[%s1361 + $0x62] sm:$0xff]
      %v1629 = vld [vmem:[%s1361 + $0x6a] sm:$0xff]
      %v1630 = vld [vmem:[%s1361 + $0x7a] sm:$0xff]
      %v1631 = vld [vmem:[%s1361 + $0x82] sm:$0xff]
      %v1632 = vld [vmem:[%s1361 + $0x92] sm:$0xff]
      %v1633 = vld [vmem:[%s1361 + $0x9a] sm:$0xff]
      %v1634 = vld [vmem:[%s1361 + $0xaa] sm:$0xff]
      %v1635 = vld [vmem:[%s1361 + $0xb2] sm:$0xff]
      %v1636 = vld [vmem:[%s1361 + $0xc2] sm:$0xff]
      %v1637 = vld [vmem:[%s1361 + $0xca] sm:$0xff]
      %v1638 = vld [vmem:[%s1361 + $0xda] sm:$0xff]
      %v1639 = vld [vmem:[%s1361 + $0xe2] sm:$0xff]
      %v1640 = vld [vmem:[%s1361 + $0xf2] sm:$0xff]
      %v1641 = vld [vmem:[%s1361 + $0xfa] sm:$0xff]
      %v1642 = vld [vmem:[%s1361 + $0x10a] sm:$0xff]
      %v1643 = vld [vmem:[%s1361 + $0x112] sm:$0xff]
      %v1644 = vld [vmem:[%s1361 + $0x122] sm:$0xff]
      %v1645 = vld [vmem:[%s1361 + $0x12a] sm:$0xff]
      %v1646 = vld [vmem:[%s1361 + $0x13a] sm:$0xff]
      %v1647 = vld [vmem:[%s1361 + $0x142] sm:$0xff]
      %v1648 = vld [vmem:[%s1361 + $0x152] sm:$0xff]
      %v1649 = vld [vmem:[%s1361 + $0x15a] sm:$0xff]
      %v1650 = vld [vmem:[%s1361 + $0x16a] sm:$0xff]
      %v1651 = vld [vmem:[%s1361 + $0x172] sm:$0xff]
      %v1652 = vpack.c.bf16 %v1621, %v1620
      %v1653 = vpack.c.bf16 %v1623, %v1622
      %v1654 = vpack.c.bf16 %v1625, %v1624
      %v1655 = vpack.c.bf16 %v1627, %v1626
      %v1656 = vpack.c.bf16 %v1629, %v1628
      %v1657 = vpack.c.bf16 %v1631, %v1630
      %v1658 = vpack.c.bf16 %v1633, %v1632
      %v1659 = vpack.c.bf16 %v1635, %v1634
      %v1660 = vpack.c.bf16 %v1637, %v1636
      %v1661 = vpack.c.bf16 %v1639, %v1638
      %v1662 = vpack.c.bf16 %v1641, %v1640
      %v1663 = vpack.c.bf16 %v1643, %v1642
      %v1664 = vpack.c.bf16 %v1645, %v1644
      %v1665 = vpack.c.bf16 %v1647, %v1646
      %v1666 = vpack.c.bf16 %v1649, %v1648
      %v1667 = vpack.c.bf16 %v1651, %v1650
      %1684 = vrot.lane.b32.xlu0 %v1652, 96
      %v1685 = vpop.permute.xlu0 %1684
      %1686 = vrot.lane.b32.xlu0 %v1653, 96
      %v1687 = vpop.permute.xlu0 %1686
      %1688 = vrot.lane.b32.xlu0 %v1654, 96
      %v1689 = vpop.permute.xlu0 %1688
      %1690 = vrot.lane.b32.xlu0 %v1655, 96
      %v1691 = vpop.permute.xlu0 %1690
      %1692 = vrot.lane.b32.xlu0 %v1656, 96
      %v1693 = vpop.permute.xlu0 %1692
      %1694 = vrot.lane.b32.xlu0 %v1657, 96
      %v1695 = vpop.permute.xlu0 %1694
      %1696 = vrot.lane.b32.xlu0 %v1658, 96
      %v1697 = vpop.permute.xlu0 %1696
      %1698 = vrot.lane.b32.xlu0 %v1659, 96
      %v1699 = vpop.permute.xlu0 %1698
      %1700 = vrot.lane.b32.xlu0 %v1660, 96
      %v1701 = vpop.permute.xlu0 %1700
      %1702 = vrot.lane.b32.xlu0 %v1661, 96
      %v1703 = vpop.permute.xlu0 %1702
      %1704 = vrot.lane.b32.xlu0 %v1662, 96
      %v1705 = vpop.permute.xlu0 %1704
      %1706 = vrot.lane.b32.xlu0 %v1663, 96
      %v1707 = vpop.permute.xlu0 %1706
      %1708 = vrot.lane.b32.xlu0 %v1664, 96
      %v1709 = vpop.permute.xlu0 %1708
      %1710 = vrot.lane.b32.xlu0 %v1665, 96
      %v1711 = vpop.permute.xlu0 %1710
      %1712 = vrot.lane.b32.xlu0 %v1666, 96
      %v1713 = vpop.permute.xlu0 %1712
      %1714 = vrot.lane.b32.xlu0 %v1667, 96
      %v1715 = vpop.permute.xlu0 %1714
      %vm1732 = vcmask 884480
      %1733 = vst.msk [vmem:[#allocation3] sm:$0xff] %vm1732, %v1685
      %1734 = vst.msk [vmem:[#allocation3 + $0x8] sm:$0xff] %vm1732, %v1687
      %1735 = vst.msk [vmem:[#allocation3 + $0x10] sm:$0xff] %vm1732, %v1689
      %1736 = vst.msk [vmem:[#allocation3 + $0x18] sm:$0xff] %vm1732, %v1691
      %1737 = vst.msk [vmem:[#allocation3 + $0x20] sm:$0xff] %vm1732, %v1693
      %1738 = vst.msk [vmem:[#allocation3 + $0x28] sm:$0xff] %vm1732, %v1695
      %1739 = vst.msk [vmem:[#allocation3 + $0x30] sm:$0xff] %vm1732, %v1697
      %1740 = vst.msk [vmem:[#allocation3 + $0x38] sm:$0xff] %vm1732, %v1699
      %1741 = vst.msk [vmem:[#allocation3 + $0x40] sm:$0xff] %vm1732, %v1701
      %1742 = vst.msk [vmem:[#allocation3 + $0x48] sm:$0xff] %vm1732, %v1703
      %1743 = vst.msk [vmem:[#allocation3 + $0x50] sm:$0xff] %vm1732, %v1705
      %1744 = vst.msk [vmem:[#allocation3 + $0x58] sm:$0xff] %vm1732, %v1707
      %1745 = vst.msk [vmem:[#allocation3 + $0x60] sm:$0xff] %vm1732, %v1709
      %1746 = vst.msk [vmem:[#allocation3 + $0x68] sm:$0xff] %vm1732, %v1711
      %1747 = vst.msk [vmem:[#allocation3 + $0x70] sm:$0xff] %vm1732, %v1713
      %1748 = vst.msk [vmem:[#allocation3 + $0x78] sm:$0xff] %vm1732, %v1715
      %v1749 = vld [vmem:[#allocation3] sm:$0xff]
      %v1750 = vld [vmem:[#allocation3 + $0x8] sm:$0xff]
      %v1751 = vld [vmem:[#allocation3 + $0x10] sm:$0xff]
      %v1752 = vld [vmem:[#allocation3 + $0x18] sm:$0xff]
      %v1753 = vld [vmem:[#allocation3 + $0x20] sm:$0xff]
      %v1754 = vld [vmem:[#allocation3 + $0x28] sm:$0xff]
      %v1755 = vld [vmem:[#allocation3 + $0x30] sm:$0xff]
      %v1756 = vld [vmem:[#allocation3 + $0x38] sm:$0xff]
      %v1757 = vld [vmem:[#allocation3 + $0x40] sm:$0xff]
      %v1758 = vld [vmem:[#allocation3 + $0x48] sm:$0xff]
      %v1759 = vld [vmem:[#allocation3 + $0x50] sm:$0xff]
      %v1760 = vld [vmem:[#allocation3 + $0x58] sm:$0xff]
      %v1761 = vld [vmem:[#allocation3 + $0x60] sm:$0xff]
      %v1762 = vld [vmem:[#allocation3 + $0x68] sm:$0xff]
      %v1763 = vld [vmem:[#allocation3 + $0x70] sm:$0xff]
      %v1764 = vld [vmem:[#allocation3 + $0x78] sm:$0xff]
      %v1765 = vld [vmem:[%s2] sm:$0xf]
      %v1766 = vld [vmem:[%s2 + $0x4] sm:$0xf]
      %v1767 = vld [vmem:[%s2 + $0x8] sm:$0xf]
      %v1768 = vld [vmem:[%s2 + $0xc] sm:$0xf]
      %v1769 = vld [vmem:[%s2 + $0x10] sm:$0xf]
      %v1770 = vld [vmem:[%s2 + $0x14] sm:$0xf]
      %v1771 = vld [vmem:[%s2 + $0x18] sm:$0xf]
      %v1772 = vld [vmem:[%s2 + $0x1c] sm:$0xf]
      %v1773 = vld [vmem:[%s2 + $0x20] sm:$0xf]
      %v1774 = vld [vmem:[%s2 + $0x24] sm:$0xf]
      %v1775 = vld [vmem:[%s2 + $0x28] sm:$0xf]
      %v1776 = vld [vmem:[%s2 + $0x2c] sm:$0xf]
      %v1777 = vld [vmem:[%s2 + $0x30] sm:$0xf]
      %v1778 = vld [vmem:[%s2 + $0x34] sm:$0x3]
      %v1779 = vld [vmem:[%s3] sm:$0x1]
      %v1781 = vlaneseq
      %v1782 = vshrl.u32 %v1781, 7
      %v1783 = vsub.s32 0, %v1782
      %v1784 = vrot.slane %v1779, %v1783
      %v1800 = vunpack.c.l.b16 %v1765
      %v1801 = vunpack.c.l.b16 %v1766
      %v1802 = vunpack.c.l.b16 %v1767
      %v1803 = vunpack.c.l.b16 %v1768
      %v1804 = vunpack.c.l.b16 %v1769
      %v1805 = vunpack.c.l.b16 %v1770
      %v1806 = vunpack.c.l.b16 %v1771
      %v1807 = vunpack.c.l.b16 %v1772
      %v1808 = vunpack.c.l.b16 %v1773
      %v1809 = vunpack.c.l.b16 %v1774
      %v1810 = vunpack.c.l.b16 %v1775
      %v1811 = vunpack.c.l.b16 %v1776
      %v1812 = vunpack.c.l.b16 %v1777
      %v1813 = vunpack.c.l.b16 %v1778
      %v1814 = vpack.c.b16 %v1801, %v1800
      %v1815 = vpack.c.b16 %v1803, %v1802
      %v1816 = vpack.c.b16 %v1805, %v1804
      %v1817 = vpack.c.b16 %v1807, %v1806
      %v1818 = vpack.c.b16 %v1809, %v1808
      %v1819 = vpack.c.b16 %v1811, %v1810
      %v1820 = vpack.c.b16 %v1813, %v1812
      %vm1827 = vcmask 883712
      %v1829 = vsel %vm1827, %v1749, 0
      %v1832 = vsel %vm1827, %v1750, 0
      %v1835 = vsel %vm1827, %v1751, 0
      %v1838 = vsel %vm1827, %v1752, 0
      %v1841 = vsel %vm1827, %v1753, 0
      %v1844 = vsel %vm1827, %v1754, 0
      %v1847 = vsel %vm1827, %v1755, 0
      %v1850 = vsel %vm1827, %v1756, 0
      %v1853 = vsel %vm1827, %v1757, 0
      %v1856 = vsel %vm1827, %v1758, 0
      %v1859 = vsel %vm1827, %v1759, 0
      %v1862 = vsel %vm1827, %v1760, 0
      %v1865 = vsel %vm1827, %v1761, 0
      %v1868 = vsel %vm1827, %v1762, 0
      %v1871 = vsel %vm1827, %v1763, 0
      %v1874 = vsel %vm1827, %v1764, 0
      %vm1876 = vcmask 1045504
      %v1878 = vsel %vm1876, %v1820, 0
      %1880 = vmatprep.subr.bf16.mxu0 0
      %1881 = vmatpush1.bf16.msra.mxu0 %v1814
      %1882 = vmatprep.subr.bf16.mxu0 0
      %1883 = vmatpush1.bf16.msra.mxu0 %v1815
      %1884 = vmatprep.subr.bf16.mxu0 0
      %1885 = vmatpush1.bf16.msra.mxu0 %v1816
      %1886 = vmatprep.subr.bf16.mxu0 0
      %1887 = vmatpush1.bf16.msra.mxu0 %v1817
      %1888 = vmatprep.subr.bf16.mxu0 0
      %1889 = vmatpush1.bf16.msra.mxu0 %v1818
      %1890 = vmatprep.subr.bf16.mxu0 0
      %1891 = vmatpush1.bf16.msra.mxu0 %v1819
      %1892 = vmatprep.subr.bf16.mxu0 0
      %1893 = vmatpush1.bf16.msra.mxu0 %v1878
      %1894 = vmatprep.subr.bf16.mxu0 0
      %1895 = vmatpush1.bf16.msra.mxu0 0
      %1896 = vmatprep.subr.bf16.mxu0 0
      %1897 = vmatpush1.bf16.msra.mxu0 0
      %1898 = vmatprep.subr.bf16.mxu0 0
      %1899 = vmatpush1.bf16.msra.mxu0 0
      %1900 = vmatprep.subr.bf16.mxu0 0
      %1901 = vmatpush1.bf16.msra.mxu0 0
      %1902 = vmatprep.subr.bf16.mxu0 0
      %1903 = vmatpush1.bf16.msra.mxu0 0
      %1904 = vmatprep.subr.bf16.mxu0 0
      %1905 = vmatpush1.bf16.msra.mxu0 0
      %1906 = vmatprep.subr.bf16.mxu0 0
      %1907 = vmatpush1.bf16.msra.mxu0 0
      %1908 = vmatprep.subr.bf16.mxu0 0
      %1909 = vmatpush1.bf16.msra.mxu0 0
      %1910 = vmatprep.subr.bf16.mxu0 0
      %1911 = vmatpush1.bf16.msra.mxu0 0
      %1912 = vmatprep.mubr.bf16.mxu0 0
      %1913 = vmatmul.mubr.bf16.gmra.mrb[0].mxu0 %v1829
      %v1914 = vpop.f32.mrb[0].mxu0
      %v1915 = vadd.f32 %v1784, %v1914
      %v1916 = vpop.f32.mrb[0].mxu0
      %v1917 = vpop.f32.mrb[0].mxu0
      %v1918 = vadd.f32 %v1784, %v1917
      %v1919 = vpop.f32.mrb[0].mxu0
      %1920 = vmatprep.mubr.bf16.mxu0 0
      %1921 = vmatmul.mubr.bf16.gmra.mrb[0].mxu0 %v1832
      %v1922 = vpop.f32.mrb[0].mxu0
      %v1923 = vadd.f32 %v1784, %v1922
      %v1924 = vpop.f32.mrb[0].mxu0
      %v1925 = vpop.f32.mrb[0].mxu0
      %v1926 = vadd.f32 %v1784, %v1925
      %v1927 = vpop.f32.mrb[0].mxu0
      %1928 = vmatprep.mubr.bf16.mxu0 0
      %1929 = vmatmul.mubr.bf16.gmra.mrb[0].mxu0 %v1835
      %v1930 = vpop.f32.mrb[0].mxu0
      %v1931 = vadd.f32 %v1784, %v1930
      %v1932 = vpop.f32.mrb[0].mxu0
      %v1933 = vpop.f32.mrb[0].mxu0
      %v1934 = vadd.f32 %v1784, %v1933
      %v1935 = vpop.f32.mrb[0].mxu0
      %1936 = vmatprep.mubr.bf16.mxu0 0
      %1937 = vmatmul.mubr.bf16.gmra.mrb[0].mxu0 %v1838
      %v1938 = vpop.f32.mrb[0].mxu0
      %v1939 = vadd.f32 %v1784, %v1938
      %v1940 = vpop.f32.mrb[0].mxu0
      %v1941 = vpop.f32.mrb[0].mxu0
      %v1942 = vadd.f32 %v1784, %v1941
      %v1943 = vpop.f32.mrb[0].mxu0
      %1944 = vmatprep.mubr.bf16.mxu0 0
      %1945 = vmatmul.mubr.bf16.gmra.mrb[0].mxu0 %v1841
      %v1946 = vpop.f32.mrb[0].mxu0
      %v1947 = vadd.f32 %v1784, %v1946
      %v1948 = vpop.f32.mrb[0].mxu0
      %v1949 = vpop.f32.mrb[0].mxu0
      %v1950 = vadd.f32 %v1784, %v1949
      %v1951 = vpop.f32.mrb[0].mxu0
      %1952 = vmatprep.mubr.bf16.mxu0 0
      %1953 = vmatmul.mubr.bf16.gmra.mrb[0].mxu0 %v1844
      %v1954 = vpop.f32.mrb[0].mxu0
      %v1955 = vadd.f32 %v1784, %v1954
      %v1956 = vpop.f32.mrb[0].mxu0
      %v1957 = vpop.f32.mrb[0].mxu0
      %v1958 = vadd.f32 %v1784, %v1957
      %v1959 = vpop.f32.mrb[0].mxu0
      %1960 = vmatprep.mubr.bf16.mxu0 0
      %1961 = vmatmul.mubr.bf16.gmra.mrb[0].mxu0 %v1847
      %v1962 = vpop.f32.mrb[0].mxu0
      %v1963 = vadd.f32 %v1784, %v1962
      %v1964 = vpop.f32.mrb[0].mxu0
      %v1965 = vpop.f32.mrb[0].mxu0
      %v1966 = vadd.f32 %v1784, %v1965
      %v1967 = vpop.f32.mrb[0].mxu0
      %1968 = vmatprep.mubr.bf16.mxu0 0
      %1969 = vmatmul.mubr.bf16.gmra.mrb[0].mxu0 %v1850
      %v1970 = vpop.f32.mrb[0].mxu0
      %v1971 = vadd.f32 %v1784, %v1970
      %v1972 = vpop.f32.mrb[0].mxu0
      %v1973 = vpop.f32.mrb[0].mxu0
      %v1974 = vadd.f32 %v1784, %v1973
      %v1975 = vpop.f32.mrb[0].mxu0
      %1976 = vmatprep.mubr.bf16.mxu0 0
      %1977 = vmatmul.mubr.bf16.gmra.mrb[0].mxu0 %v1853
      %v1978 = vpop.f32.mrb[0].mxu0
      %v1979 = vadd.f32 %v1784, %v1978
      %v1980 = vpop.f32.mrb[0].mxu0
      %v1981 = vpop.f32.mrb[0].mxu0
      %v1982 = vadd.f32 %v1784, %v1981
      %v1983 = vpop.f32.mrb[0].mxu0
      %1984 = vmatprep.mubr.bf16.mxu0 0
      %1985 = vmatmul.mubr.bf16.gmra.mrb[0].mxu0 %v1856
      %v1986 = vpop.f32.mrb[0].mxu0
      %v1987 = vadd.f32 %v1784, %v1986
      %v1988 = vpop.f32.mrb[0].mxu0
      %v1989 = vpop.f32.mrb[0].mxu0
      %v1990 = vadd.f32 %v1784, %v1989
      %v1991 = vpop.f32.mrb[0].mxu0
      %1992 = vmatprep.mubr.bf16.mxu0 0
      %1993 = vmatmul.mubr.bf16.gmra.mrb[0].mxu0 %v1859
      %v1994 = vpop.f32.mrb[0].mxu0
      %v1995 = vadd.f32 %v1784, %v1994
      %v1996 = vpop.f32.mrb[0].mxu0
      %v1997 = vpop.f32.mrb[0].mxu0
      %v1998 = vadd.f32 %v1784, %v1997
      %v1999 = vpop.f32.mrb[0].mxu0
      %2000 = vmatprep.mubr.bf16.mxu0 0
      %2001 = vmatmul.mubr.bf16.gmra.mrb[0].mxu0 %v1862
      %v2002 = vpop.f32.mrb[0].mxu0
      %v2003 = vadd.f32 %v1784, %v2002
      %v2004 = vpop.f32.mrb[0].mxu0
      %v2005 = vpop.f32.mrb[0].mxu0
      %v2006 = vadd.f32 %v1784, %v2005
      %v2007 = vpop.f32.mrb[0].mxu0
      %2008 = vmatprep.mubr.bf16.mxu0 0
      %2009 = vmatmul.mubr.bf16.gmra.mrb[0].mxu0 %v1865
      %v2010 = vpop.f32.mrb[0].mxu0
      %v2011 = vadd.f32 %v1784, %v2010
      %v2012 = vpop.f32.mrb[0].mxu0
      %v2013 = vpop.f32.mrb[0].mxu0
      %v2014 = vadd.f32 %v1784, %v2013
      %v2015 = vpop.f32.mrb[0].mxu0
      %2016 = vmatprep.mubr.bf16.mxu0 0
      %2017 = vmatmul.mubr.bf16.gmra.mrb[0].mxu0 %v1868
      %v2018 = vpop.f32.mrb[0].mxu0
      %v2019 = vadd.f32 %v1784, %v2018
      %v2020 = vpop.f32.mrb[0].mxu0
      %v2021 = vpop.f32.mrb[0].mxu0
      %v2022 = vadd.f32 %v1784, %v2021
      %v2023 = vpop.f32.mrb[0].mxu0
      %2024 = vmatprep.mubr.bf16.mxu0 0
      %2025 = vmatmul.mubr.bf16.gmra.mrb[0].mxu0 %v1871
      %v2026 = vpop.f32.mrb[0].mxu0
      %v2027 = vadd.f32 %v1784, %v2026
      %v2028 = vpop.f32.mrb[0].mxu0
      %v2029 = vpop.f32.mrb[0].mxu0
      %v2030 = vadd.f32 %v1784, %v2029
      %v2031 = vpop.f32.mrb[0].mxu0
      %2032 = vmatprep.mubr.bf16.mxu0 0
      %2033 = vmatmul.mubr.bf16.gmra.mrb[0].mxu0 %v1874
      %v2034 = vpop.f32.mrb[0].mxu0
      %v2035 = vadd.f32 %v1784, %v2034
      %v2036 = vpop.f32.mrb[0].mxu0
      %v2037 = vpop.f32.mrb[0].mxu0
      %v2038 = vadd.f32 %v1784, %v2037
      %v2039 = vpop.f32.mrb[0].mxu0
      %2040 = vdwg.mxu0
      %v2041 = vmax.f32 %v1915, 0.0
      %v2042 = vmax.f32 %v1918, 0.0
      %v2043 = vmax.f32 %v1923, 0.0
      %v2044 = vmax.f32 %v1926, 0.0
      %v2045 = vmax.f32 %v1931, 0.0
      %v2046 = vmax.f32 %v1934, 0.0
      %v2047 = vmax.f32 %v1939, 0.0
      %v2048 = vmax.f32 %v1942, 0.0
      %v2049 = vmax.f32 %v1947, 0.0
      %v2050 = vmax.f32 %v1950, 0.0
      %v2051 = vmax.f32 %v1955, 0.0
      %v2052 = vmax.f32 %v1958, 0.0
      %v2053 = vmax.f32 %v1963, 0.0
      %v2054 = vmax.f32 %v1966, 0.0
      %v2055 = vmax.f32 %v1971, 0.0
      %v2056 = vmax.f32 %v1974, 0.0
      %v2057 = vmax.f32 %v1979, 0.0
      %v2058 = vmax.f32 %v1982, 0.0
      %v2059 = vmax.f32 %v1987, 0.0
      %v2060 = vmax.f32 %v1990, 0.0
      %v2061 = vmax.f32 %v1995, 0.0
      %v2062 = vmax.f32 %v1998, 0.0
      %v2063 = vmax.f32 %v2003, 0.0
      %v2064 = vmax.f32 %v2006, 0.0
      %v2065 = vmax.f32 %v2011, 0.0
      %v2066 = vmax.f32 %v2014, 0.0
      %v2067 = vmax.f32 %v2019, 0.0
      %v2068 = vmax.f32 %v2022, 0.0
      %v2069 = vmax.f32 %v2027, 0.0
      %v2070 = vmax.f32 %v2030, 0.0
      %v2071 = vmax.f32 %v2035, 0.0
      %v2072 = vmax.f32 %v2038, 0.0
      %2073 = vst.msk [vmem:[#allocation4] sm:$0xff] %vm394, 0.0
      %2074 = vst.msk [vmem:[#allocation4 + $0x8] sm:$0xff] %vm394, 0.0
      %vm2075 = vcmask 58368
      %2076 = vst.msk [vmem:[#allocation4 + $0x10] sm:$0x3] %vm2075, 0.0
      %2077 = vst.msk [vmem:[#allocation4 + $0x18] sm:$0xff] %vm394, 0.0
      %2078 = vst.msk [vmem:[#allocation4 + $0x20] sm:$0xff] %vm394, 0.0
      %2079 = vst.msk [vmem:[#allocation4 + $0x28] sm:$0x3] %vm2075, 0.0
      %2080 = vst.msk [vmem:[#allocation4 + $0x30] sm:$0xff] %vm394, 0.0
      %2081 = vst.msk [vmem:[#allocation4 + $0x38] sm:$0xff] %vm394, 0.0
      %2082 = vst.msk [vmem:[#allocation4 + $0x40] sm:$0x3] %vm2075, 0.0
      %2083 = vst.msk [vmem:[#allocation4 + $0x48] sm:$0xff] %vm394, 0.0
      %2084 = vst.msk [vmem:[#allocation4 + $0x50] sm:$0xff] %vm394, 0.0
      %2085 = vst.msk [vmem:[#allocation4 + $0x58] sm:$0x3] %vm2075, 0.0
      %2086 = vst.msk [vmem:[#allocation4 + $0x60] sm:$0xff] %vm394, 0.0
      %2087 = vst.msk [vmem:[#allocation4 + $0x68] sm:$0xff] %vm394, 0.0
      %2088 = vst.msk [vmem:[#allocation4 + $0x70] sm:$0x3] %vm2075, 0.0
      %2089 = vst.msk [vmem:[#allocation4 + $0x78] sm:$0xff] %vm394, 0.0
      %2090 = vst.msk [vmem:[#allocation4 + $0x80] sm:$0xff] %vm394, 0.0
      %2091 = vst.msk [vmem:[#allocation4 + $0x88] sm:$0x3] %vm2075, 0.0
      %2092 = vst.msk [vmem:[#allocation4 + $0x90] sm:$0xff] %vm394, 0.0
      %2093 = vst.msk [vmem:[#allocation4 + $0x98] sm:$0xff] %vm394, 0.0
      %2094 = vst.msk [vmem:[#allocation4 + $0xa0] sm:$0x3] %vm2075, 0.0
      %2095 = vst.msk [vmem:[#allocation4 + $0xa8] sm:$0xff] %vm394, 0.0
      %2096 = vst.msk [vmem:[#allocation4 + $0xb0] sm:$0xff] %vm394, 0.0
      %2097 = vst.msk [vmem:[#allocation4 + $0xb8] sm:$0x3] %vm2075, 0.0
      %2098 = vst.msk [vmem:[#allocation4 + $0xc0] sm:$0xff] %vm394, 0.0
      %2099 = vst.msk [vmem:[#allocation4 + $0xc8] sm:$0xff] %vm394, 0.0
      %2100 = vst.msk [vmem:[#allocation4 + $0xd0] sm:$0x3] %vm2075, 0.0
      %2101 = vst.msk [vmem:[#allocation4 + $0xd8] sm:$0xff] %vm394, 0.0
      %2102 = vst.msk [vmem:[#allocation4 + $0xe0] sm:$0xff] %vm394, 0.0
      %2103 = vst.msk [vmem:[#allocation4 + $0xe8] sm:$0x3] %vm2075, 0.0
      %2104 = vst.msk [vmem:[#allocation4 + $0xf0] sm:$0xff] %vm394, 0.0
      %2105 = vst.msk [vmem:[#allocation4 + $0xf8] sm:$0xff] %vm394, 0.0
      %2106 = vst.msk [vmem:[#allocation4 + $0x100] sm:$0x3] %vm2075, 0.0
      %2107 = vst.msk [vmem:[#allocation4 + $0x108] sm:$0xff] %vm394, 0.0
      %2108 = vst.msk [vmem:[#allocation4 + $0x110] sm:$0xff] %vm394, 0.0
      %2109 = vst.msk [vmem:[#allocation4 + $0x118] sm:$0x3] %vm2075, 0.0
      %2110 = vst.msk [vmem:[#allocation4 + $0x120] sm:$0xff] %vm394, 0.0
      %2111 = vst.msk [vmem:[#allocation4 + $0x128] sm:$0xff] %vm394, 0.0
      %2112 = vst.msk [vmem:[#allocation4 + $0x130] sm:$0x3] %vm2075, 0.0
      %2113 = vst.msk [vmem:[#allocation4 + $0x138] sm:$0xff] %vm394, 0.0
      %2114 = vst.msk [vmem:[#allocation4 + $0x140] sm:$0xff] %vm394, 0.0
      %2115 = vst.msk [vmem:[#allocation4 + $0x148] sm:$0x3] %vm2075, 0.0
      %2116 = vst.msk [vmem:[#allocation4 + $0x150] sm:$0xff] %vm394, 0.0
      %2117 = vst.msk [vmem:[#allocation4 + $0x158] sm:$0xff] %vm394, 0.0
      %2118 = vst.msk [vmem:[#allocation4 + $0x160] sm:$0x3] %vm2075, 0.0
      %2119 = vst.msk [vmem:[#allocation4 + $0x168] sm:$0xff] %vm394, 0.0
      %2120 = vst.msk [vmem:[#allocation4 + $0x170] sm:$0xff] %vm394, 0.0
      %2121 = vst.msk [vmem:[#allocation4 + $0x178] sm:$0x3] %vm2075, 0.0
      %2122 = vst.msk [vmem:[#allocation4 + $0x180] sm:$0xff] %vm394, 0.0
      %2123 = vst.msk [vmem:[#allocation4 + $0x188] sm:$0xff] %vm394, 0.0
      %2124 = vst.msk [vmem:[#allocation4 + $0x190] sm:$0x3] %vm2075, 0.0
      %2125 = vst.msk [vmem:[#allocation4 + $0x198] sm:$0xff] %vm394, 0.0
      %2126 = vst.msk [vmem:[#allocation4 + $0x1a0] sm:$0xff] %vm394, 0.0
      %2127 = vst.msk [vmem:[#allocation4 + $0x1a8] sm:$0x3] %vm2075, 0.0
      %s2128 = scalar_lea.vmem [#allocation4], 24
      %2129 = vst.msk [vmem:[%s2128 + $0x1] sm:$0xff] %vm394, %v2041
      %2130 = vst.msk [vmem:[%s2128 + $0x9] sm:$0xff] %vm394, %v2042
      %2131 = vst.msk [vmem:[%s2128 + $0x19] sm:$0xff] %vm394, %v2043
      %2132 = vst.msk [vmem:[%s2128 + $0x21] sm:$0xff] %vm394, %v2044
      %2133 = vst.msk [vmem:[%s2128 + $0x31] sm:$0xff] %vm394, %v2045
      %2134 = vst.msk [vmem:[%s2128 + $0x39] sm:$0xff] %vm394, %v2046
      %2135 = vst.msk [vmem:[%s2128 + $0x49] sm:$0xff] %vm394, %v2047
      %2136 = vst.msk [vmem:[%s2128 + $0x51] sm:$0xff] %vm394, %v2048
      %2137 = vst.msk [vmem:[%s2128 + $0x61] sm:$0xff] %vm394, %v2049
      %2138 = vst.msk [vmem:[%s2128 + $0x69] sm:$0xff] %vm394, %v2050
      %2139 = vst.msk [vmem:[%s2128 + $0x79] sm:$0xff] %vm394, %v2051
      %2140 = vst.msk [vmem:[%s2128 + $0x81] sm:$0xff] %vm394, %v2052
      %2141 = vst.msk [vmem:[%s2128 + $0x91] sm:$0xff] %vm394, %v2053
      %2142 = vst.msk [vmem:[%s2128 + $0x99] sm:$0xff] %vm394, %v2054
      %2143 = vst.msk [vmem:[%s2128 + $0xa9] sm:$0xff] %vm394, %v2055
      %2144 = vst.msk [vmem:[%s2128 + $0xb1] sm:$0xff] %vm394, %v2056
      %2145 = vst.msk [vmem:[%s2128 + $0xc1] sm:$0xff] %vm394, %v2057
      %2146 = vst.msk [vmem:[%s2128 + $0xc9] sm:$0xff] %vm394, %v2058
      %2147 = vst.msk [vmem:[%s2128 + $0xd9] sm:$0xff] %vm394, %v2059
      %2148 = vst.msk [vmem:[%s2128 + $0xe1] sm:$0xff] %vm394, %v2060
      %2149 = vst.msk [vmem:[%s2128 + $0xf1] sm:$0xff] %vm394, %v2061
      %2150 = vst.msk [vmem:[%s2128 + $0xf9] sm:$0xff] %vm394, %v2062
      %2151 = vst.msk [vmem:[%s2128 + $0x109] sm:$0xff] %vm394, %v2063
      %2152 = vst.msk [vmem:[%s2128 + $0x111] sm:$0xff] %vm394, %v2064
      %2153 = vst.msk [vmem:[%s2128 + $0x121] sm:$0xff] %vm394, %v2065
      %2154 = vst.msk [vmem:[%s2128 + $0x129] sm:$0xff] %vm394, %v2066
      %2155 = vst.msk [vmem:[%s2128 + $0x139] sm:$0xff] %vm394, %v2067
      %2156 = vst.msk [vmem:[%s2128 + $0x141] sm:$0xff] %vm394, %v2068
      %2157 = vst.msk [vmem:[%s2128 + $0x151] sm:$0xff] %vm394, %v2069
      %2158 = vst.msk [vmem:[%s2128 + $0x159] sm:$0xff] %vm394, %v2070
      %2159 = vst.msk [vmem:[%s2128 + $0x169] sm:$0xff] %vm394, %v2071
      %2160 = vst.msk [vmem:[%s2128 + $0x171] sm:$0xff] %vm394, %v2072
      %v2161 = vld [vmem:[#allocation4] sm:$0xff]
      %v2162 = vld [vmem:[#allocation4 + $0x8] sm:$0xff]
      %v2163 = vld [vmem:[#allocation4 + $0x18] sm:$0xff]
      %v2164 = vld [vmem:[#allocation4 + $0x20] sm:$0xff]
      %v2165 = vld [vmem:[#allocation4 + $0x30] sm:$0xff]
      %v2166 = vld [vmem:[#allocation4 + $0x38] sm:$0xff]
      %v2167 = vld [vmem:[#allocation4 + $0x48] sm:$0xff]
      %v2168 = vld [vmem:[#allocation4 + $0x50] sm:$0xff]
      %v2169 = vld [vmem:[#allocation4 + $0x60] sm:$0xff]
      %v2170 = vld [vmem:[#allocation4 + $0x68] sm:$0xff]
      %v2171 = vld [vmem:[#allocation4 + $0x78] sm:$0xff]
      %v2172 = vld [vmem:[#allocation4 + $0x80] sm:$0xff]
      %v2173 = vld [vmem:[#allocation4 + $0x90] sm:$0xff]
      %v2174 = vld [vmem:[#allocation4 + $0x98] sm:$0xff]
      %v2175 = vld [vmem:[#allocation4 + $0xa8] sm:$0xff]
      %v2176 = vld [vmem:[#allocation4 + $0xb0] sm:$0xff]
      %v2177 = vld [vmem:[#allocation4 + $0xc0] sm:$0xff]
      %v2178 = vld [vmem:[#allocation4 + $0xc8] sm:$0xff]
      %v2179 = vld [vmem:[#allocation4 + $0xd8] sm:$0xff]
      %v2180 = vld [vmem:[#allocation4 + $0xe0] sm:$0xff]
      %v2181 = vld [vmem:[#allocation4 + $0xf0] sm:$0xff]
      %v2182 = vld [vmem:[#allocation4 + $0xf8] sm:$0xff]
      %v2183 = vld [vmem:[#allocation4 + $0x108] sm:$0xff]
      %v2184 = vld [vmem:[#allocation4 + $0x110] sm:$0xff]
      %v2185 = vld [vmem:[#allocation4 + $0x120] sm:$0xff]
      %v2186 = vld [vmem:[#allocation4 + $0x128] sm:$0xff]
      %v2187 = vld [vmem:[#allocation4 + $0x138] sm:$0xff]
      %v2188 = vld [vmem:[#allocation4 + $0x140] sm:$0xff]
      %v2189 = vld [vmem:[#allocation4 + $0x150] sm:$0xff]
      %v2190 = vld [vmem:[#allocation4 + $0x158] sm:$0xff]
      %v2191 = vld [vmem:[#allocation4 + $0x168] sm:$0xff]
      %v2192 = vld [vmem:[#allocation4 + $0x170] sm:$0xff]
      %v2193 = vpack.c.bf16 %v2162, %v2161
      %v2194 = vpack.c.bf16 %v2164, %v2163
      %v2195 = vpack.c.bf16 %v2166, %v2165
      %v2196 = vpack.c.bf16 %v2168, %v2167
      %v2197 = vpack.c.bf16 %v2170, %v2169
      %v2198 = vpack.c.bf16 %v2172, %v2171
      %v2199 = vpack.c.bf16 %v2174, %v2173
      %v2200 = vpack.c.bf16 %v2176, %v2175
      %v2201 = vpack.c.bf16 %v2178, %v2177
      %v2202 = vpack.c.bf16 %v2180, %v2179
      %v2203 = vpack.c.bf16 %v2182, %v2181
      %v2204 = vpack.c.bf16 %v2184, %v2183
      %v2205 = vpack.c.bf16 %v2186, %v2185
      %v2206 = vpack.c.bf16 %v2188, %v2187
      %v2207 = vpack.c.bf16 %v2190, %v2189
      %v2208 = vpack.c.bf16 %v2192, %v2191
      %2209 = vst.msk [vmem:[#allocation5] sm:$0xff] %vm394, %v2193
      %2210 = vst.msk [vmem:[#allocation5 + $0x8] sm:$0xff] %vm394, %v2194
      %2211 = vst.msk [vmem:[#allocation5 + $0x10] sm:$0xff] %vm394, %v2195
      %2212 = vst.msk [vmem:[#allocation5 + $0x18] sm:$0xff] %vm394, %v2196
      %2213 = vst.msk [vmem:[#allocation5 + $0x20] sm:$0xff] %vm394, %v2197
      %2214 = vst.msk [vmem:[#allocation5 + $0x28] sm:$0xff] %vm394, %v2198
      %2215 = vst.msk [vmem:[#allocation5 + $0x30] sm:$0xff] %vm394, %v2199
      %2216 = vst.msk [vmem:[#allocation5 + $0x38] sm:$0xff] %vm394, %v2200
      %2217 = vst.msk [vmem:[#allocation5 + $0x40] sm:$0xff] %vm394, %v2201
      %2218 = vst.msk [vmem:[#allocation5 + $0x48] sm:$0xff] %vm394, %v2202
      %2219 = vst.msk [vmem:[#allocation5 + $0x50] sm:$0xff] %vm394, %v2203
      %2220 = vst.msk [vmem:[#allocation5 + $0x58] sm:$0xff] %vm394, %v2204
      %2221 = vst.msk [vmem:[#allocation5 + $0x60] sm:$0xff] %vm394, %v2205
      %2222 = vst.msk [vmem:[#allocation5 + $0x68] sm:$0xff] %vm394, %v2206
      %2223 = vst.msk [vmem:[#allocation5 + $0x70] sm:$0xff] %vm394, %v2207
      %2224 = vst.msk [vmem:[#allocation5 + $0x78] sm:$0xff] %vm394, %v2208
      %v2225 = vld [vmem:[#allocation4 + $0x1] sm:$0xff]
      %v2226 = vld [vmem:[#allocation4 + $0x9] sm:$0xff]
      %v2227 = vld [vmem:[#allocation4 + $0x19] sm:$0xff]
      %v2228 = vld [vmem:[#allocation4 + $0x21] sm:$0xff]
      %v2229 = vld [vmem:[#allocation4 + $0x31] sm:$0xff]
      %v2230 = vld [vmem:[#allocation4 + $0x39] sm:$0xff]
      %v2231 = vld [vmem:[#allocation4 + $0x49] sm:$0xff]
      %v2232 = vld [vmem:[#allocation4 + $0x51] sm:$0xff]
      %v2233 = vld [vmem:[#allocation4 + $0x61] sm:$0xff]
      %v2234 = vld [vmem:[#allocation4 + $0x69] sm:$0xff]
      %v2235 = vld [vmem:[#allocation4 + $0x79] sm:$0xff]
      %v2236 = vld [vmem:[#allocation4 + $0x81] sm:$0xff]
      %v2237 = vld [vmem:[#allocation4 + $0x91] sm:$0xff]
      %v2238 = vld [vmem:[#allocation4 + $0x99] sm:$0xff]
      %v2239 = vld [vmem:[#allocation4 + $0xa9] sm:$0xff]
      %v2240 = vld [vmem:[#allocation4 + $0xb1] sm:$0xff]
      %v2241 = vld [vmem:[#allocation4 + $0xc1] sm:$0xff]
      %v2242 = vld [vmem:[#allocation4 + $0xc9] sm:$0xff]
      %v2243 = vld [vmem:[#allocation4 + $0xd9] sm:$0xff]
      %v2244 = vld [vmem:[#allocation4 + $0xe1] sm:$0xff]
      %v2245 = vld [vmem:[#allocation4 + $0xf1] sm:$0xff]
      %v2246 = vld [vmem:[#allocation4 + $0xf9] sm:$0xff]
      %v2247 = vld [vmem:[#allocation4 + $0x109] sm:$0xff]
      %v2248 = vld [vmem:[#allocation4 + $0x111] sm:$0xff]
      %v2249 = vld [vmem:[#allocation4 + $0x121] sm:$0xff]
      %v2250 = vld [vmem:[#allocation4 + $0x129] sm:$0xff]
      %v2251 = vld [vmem:[#allocation4 + $0x139] sm:$0xff]
      %v2252 = vld [vmem:[#allocation4 + $0x141] sm:$0xff]
      %v2253 = vld [vmem:[#allocation4 + $0x151] sm:$0xff]
      %v2254 = vld [vmem:[#allocation4 + $0x159] sm:$0xff]
      %v2255 = vld [vmem:[#allocation4 + $0x169] sm:$0xff]
      %v2256 = vld [vmem:[#allocation4 + $0x171] sm:$0xff]
      %v2257 = vpack.c.bf16 %v2226, %v2225
      %v2258 = vpack.c.bf16 %v2228, %v2227
      %v2259 = vpack.c.bf16 %v2230, %v2229
      %v2260 = vpack.c.bf16 %v2232, %v2231
      %v2261 = vpack.c.bf16 %v2234, %v2233
      %v2262 = vpack.c.bf16 %v2236, %v2235
      %v2263 = vpack.c.bf16 %v2238, %v2237
      %v2264 = vpack.c.bf16 %v2240, %v2239
      %v2265 = vpack.c.bf16 %v2242, %v2241
      %v2266 = vpack.c.bf16 %v2244, %v2243
      %v2267 = vpack.c.bf16 %v2246, %v2245
      %v2268 = vpack.c.bf16 %v2248, %v2247
      %v2269 = vpack.c.bf16 %v2250, %v2249
      %v2270 = vpack.c.bf16 %v2252, %v2251
      %v2271 = vpack.c.bf16 %v2254, %v2253
      %v2272 = vpack.c.bf16 %v2256, %v2255
      %2289 = vrot.lane.b32.xlu0 %v2257, 8
      %v2290 = vpop.permute.xlu0 %2289
      %2291 = vrot.lane.b32.xlu0 %v2258, 8
      %v2292 = vpop.permute.xlu0 %2291
      %2293 = vrot.lane.b32.xlu0 %v2259, 8
      %v2294 = vpop.permute.xlu0 %2293
      %2295 = vrot.lane.b32.xlu0 %v2260, 8
      %v2296 = vpop.permute.xlu0 %2295
      %2297 = vrot.lane.b32.xlu0 %v2261, 8
      %v2298 = vpop.permute.xlu0 %2297
      %2299 = vrot.lane.b32.xlu0 %v2262, 8
      %v2300 = vpop.permute.xlu0 %2299
      %2301 = vrot.lane.b32.xlu0 %v2263, 8
      %v2302 = vpop.permute.xlu0 %2301
      %2303 = vrot.lane.b32.xlu0 %v2264, 8
      %v2304 = vpop.permute.xlu0 %2303
      %2305 = vrot.lane.b32.xlu0 %v2265, 8
      %v2306 = vpop.permute.xlu0 %2305
      %2307 = vrot.lane.b32.xlu0 %v2266, 8
      %v2308 = vpop.permute.xlu0 %2307
      %2309 = vrot.lane.b32.xlu0 %v2267, 8
      %v2310 = vpop.permute.xlu0 %2309
      %2311 = vrot.lane.b32.xlu0 %v2268, 8
      %v2312 = vpop.permute.xlu0 %2311
      %2313 = vrot.lane.b32.xlu0 %v2269, 8
      %v2314 = vpop.permute.xlu0 %2313
      %2315 = vrot.lane.b32.xlu0 %v2270, 8
      %v2316 = vpop.permute.xlu0 %2315
      %2317 = vrot.lane.b32.xlu0 %v2271, 8
      %v2318 = vpop.permute.xlu0 %2317
      %2319 = vrot.lane.b32.xlu0 %v2272, 8
      %v2320 = vpop.permute.xlu0 %2319
      %vm2337 = vcmask 130112
      %2338 = vst.msk [vmem:[#allocation5] sm:$0xff] %vm2337, %v2290
      %2339 = vst.msk [vmem:[#allocation5 + $0x8] sm:$0xff] %vm2337, %v2292
      %2340 = vst.msk [vmem:[#allocation5 + $0x10] sm:$0xff] %vm2337, %v2294
      %2341 = vst.msk [vmem:[#allocation5 + $0x18] sm:$0xff] %vm2337, %v2296
      %2342 = vst.msk [vmem:[#allocation5 + $0x20] sm:$0xff] %vm2337, %v2298
      %2343 = vst.msk [vmem:[#allocation5 + $0x28] sm:$0xff] %vm2337, %v2300
      %2344 = vst.msk [vmem:[#allocation5 + $0x30] sm:$0xff] %vm2337, %v2302
      %2345 = vst.msk [vmem:[#allocation5 + $0x38] sm:$0xff] %vm2337, %v2304
      %2346 = vst.msk [vmem:[#allocation5 + $0x40] sm:$0xff] %vm2337, %v2306
      %2347 = vst.msk [vmem:[#allocation5 + $0x48] sm:$0xff] %vm2337, %v2308
      %2348 = vst.msk [vmem:[#allocation5 + $0x50] sm:$0xff] %vm2337, %v2310
      %2349 = vst.msk [vmem:[#allocation5 + $0x58] sm:$0xff] %vm2337, %v2312
      %2350 = vst.msk [vmem:[#allocation5 + $0x60] sm:$0xff] %vm2337, %v2314
      %2351 = vst.msk [vmem:[#allocation5 + $0x68] sm:$0xff] %vm2337, %v2316
      %2352 = vst.msk [vmem:[#allocation5 + $0x70] sm:$0xff] %vm2337, %v2318
      %2353 = vst.msk [vmem:[#allocation5 + $0x78] sm:$0xff] %vm2337, %v2320
      %v2354 = vld [vmem:[#allocation4 + $0x2] sm:$0xff]
      %v2355 = vld [vmem:[#allocation4 + $0xa] sm:$0xff]
      %v2356 = vld [vmem:[#allocation4 + $0x1a] sm:$0xff]
      %v2357 = vld [vmem:[#allocation4 + $0x22] sm:$0xff]
      %v2358 = vld [vmem:[#allocation4 + $0x32] sm:$0xff]
      %v2359 = vld [vmem:[#allocation4 + $0x3a] sm:$0xff]
      %v2360 = vld [vmem:[#allocation4 + $0x4a] sm:$0xff]
      %v2361 = vld [vmem:[#allocation4 + $0x52] sm:$0xff]
      %v2362 = vld [vmem:[#allocation4 + $0x62] sm:$0xff]
      %v2363 = vld [vmem:[#allocation4 + $0x6a] sm:$0xff]
      %v2364 = vld [vmem:[#allocation4 + $0x7a] sm:$0xff]
      %v2365 = vld [vmem:[#allocation4 + $0x82] sm:$0xff]
      %v2366 = vld [vmem:[#allocation4 + $0x92] sm:$0xff]
      %v2367 = vld [vmem:[#allocation4 + $0x9a] sm:$0xff]
      %v2368 = vld [vmem:[#allocation4 + $0xaa] sm:$0xff]
      %v2369 = vld [vmem:[#allocation4 + $0xb2] sm:$0xff]
      %v2370 = vld [vmem:[#allocation4 + $0xc2] sm:$0xff]
      %v2371 = vld [vmem:[#allocation4 + $0xca] sm:$0xff]
      %v2372 = vld [vmem:[#allocation4 + $0xda] sm:$0xff]
      %v2373 = vld [vmem:[#allocation4 + $0xe2] sm:$0xff]
      %v2374 = vld [vmem:[#allocation4 + $0xf2] sm:$0xff]
      %v2375 = vld [vmem:[#allocation4 + $0xfa] sm:$0xff]
      %v2376 = vld [vmem:[#allocation4 + $0x10a] sm:$0xff]
      %v2377 = vld [vmem:[#allocation4 + $0x112] sm:$0xff]
      %v2378 = vld [vmem:[#allocation4 + $0x122] sm:$0xff]
      %v2379 = vld [vmem:[#allocation4 + $0x12a] sm:$0xff]
      %v2380 = vld [vmem:[#allocation4 + $0x13a] sm:$0xff]
      %v2381 = vld [vmem:[#allocation4 + $0x142] sm:$0xff]
      %v2382 = vld [vmem:[#allocation4 + $0x152] sm:$0xff]
      %v2383 = vld [vmem:[#allocation4 + $0x15a] sm:$0xff]
      %v2384 = vld [vmem:[#allocation4 + $0x16a] sm:$0xff]
      %v2385 = vld [vmem:[#allocation4 + $0x172] sm:$0xff]
      %v2386 = vpack.c.bf16 %v2355, %v2354
      %v2387 = vpack.c.bf16 %v2357, %v2356
      %v2388 = vpack.c.bf16 %v2359, %v2358
      %v2389 = vpack.c.bf16 %v2361, %v2360
      %v2390 = vpack.c.bf16 %v2363, %v2362
      %v2391 = vpack.c.bf16 %v2365, %v2364
      %v2392 = vpack.c.bf16 %v2367, %v2366
      %v2393 = vpack.c.bf16 %v2369, %v2368
      %v2394 = vpack.c.bf16 %v2371, %v2370
      %v2395 = vpack.c.bf16 %v2373, %v2372
      %v2396 = vpack.c.bf16 %v2375, %v2374
      %v2397 = vpack.c.bf16 %v2377, %v2376
      %v2398 = vpack.c.bf16 %v2379, %v2378
      %v2399 = vpack.c.bf16 %v2381, %v2380
      %v2400 = vpack.c.bf16 %v2383, %v2382
      %v2401 = vpack.c.bf16 %v2385, %v2384
      %2418 = vrot.lane.b32.xlu0 %v2386, 16
      %v2419 = vpop.permute.xlu0 %2418
      %2420 = vrot.lane.b32.xlu0 %v2387, 16
      %v2421 = vpop.permute.xlu0 %2420
      %2422 = vrot.lane.b32.xlu0 %v2388, 16
      %v2423 = vpop.permute.xlu0 %2422
      %2424 = vrot.lane.b32.xlu0 %v2389, 16
      %v2425 = vpop.permute.xlu0 %2424
      %2426 = vrot.lane.b32.xlu0 %v2390, 16
      %v2427 = vpop.permute.xlu0 %2426
      %2428 = vrot.lane.b32.xlu0 %v2391, 16
      %v2429 = vpop.permute.xlu0 %2428
      %2430 = vrot.lane.b32.xlu0 %v2392, 16
      %v2431 = vpop.permute.xlu0 %2430
      %2432 = vrot.lane.b32.xlu0 %v2393, 16
      %v2433 = vpop.permute.xlu0 %2432
      %2434 = vrot.lane.b32.xlu0 %v2394, 16
      %v2435 = vpop.permute.xlu0 %2434
      %2436 = vrot.lane.b32.xlu0 %v2395, 16
      %v2437 = vpop.permute.xlu0 %2436
      %2438 = vrot.lane.b32.xlu0 %v2396, 16
      %v2439 = vpop.permute.xlu0 %2438
      %2440 = vrot.lane.b32.xlu0 %v2397, 16
      %v2441 = vpop.permute.xlu0 %2440
      %2442 = vrot.lane.b32.xlu0 %v2398, 16
      %v2443 = vpop.permute.xlu0 %2442
      %2444 = vrot.lane.b32.xlu0 %v2399, 16
      %v2445 = vpop.permute.xlu0 %2444
      %2446 = vrot.lane.b32.xlu0 %v2400, 16
      %v2447 = vpop.permute.xlu0 %2446
      %2448 = vrot.lane.b32.xlu0 %v2401, 16
      %v2449 = vpop.permute.xlu0 %2448
      %vm2466 = vcmask 195712
      %2467 = vst.msk [vmem:[#allocation5] sm:$0xff] %vm2466, %v2419
      %2468 = vst.msk [vmem:[#allocation5 + $0x8] sm:$0xff] %vm2466, %v2421
      %2469 = vst.msk [vmem:[#allocation5 + $0x10] sm:$0xff] %vm2466, %v2423
      %2470 = vst.msk [vmem:[#allocation5 + $0x18] sm:$0xff] %vm2466, %v2425
      %2471 = vst.msk [vmem:[#allocation5 + $0x20] sm:$0xff] %vm2466, %v2427
      %2472 = vst.msk [vmem:[#allocation5 + $0x28] sm:$0xff] %vm2466, %v2429
      %2473 = vst.msk [vmem:[#allocation5 + $0x30] sm:$0xff] %vm2466, %v2431
      %2474 = vst.msk [vmem:[#allocation5 + $0x38] sm:$0xff] %vm2466, %v2433
      %2475 = vst.msk [vmem:[#allocation5 + $0x40] sm:$0xff] %vm2466, %v2435
      %2476 = vst.msk [vmem:[#allocation5 + $0x48] sm:$0xff] %vm2466, %v2437
      %2477 = vst.msk [vmem:[#allocation5 + $0x50] sm:$0xff] %vm2466, %v2439
      %2478 = vst.msk [vmem:[#allocation5 + $0x58] sm:$0xff] %vm2466, %v2441
      %2479 = vst.msk [vmem:[#allocation5 + $0x60] sm:$0xff] %vm2466, %v2443
      %2480 = vst.msk [vmem:[#allocation5 + $0x68] sm:$0xff] %vm2466, %v2445
      %2481 = vst.msk [vmem:[#allocation5 + $0x70] sm:$0xff] %vm2466, %v2447
      %2482 = vst.msk [vmem:[#allocation5 + $0x78] sm:$0xff] %vm2466, %v2449
      %v2483 = vld [vmem:[%s2128] sm:$0xff]
      %v2484 = vld [vmem:[%s2128 + $0x8] sm:$0xff]
      %v2485 = vld [vmem:[%s2128 + $0x18] sm:$0xff]
      %v2486 = vld [vmem:[%s2128 + $0x20] sm:$0xff]
      %v2487 = vld [vmem:[%s2128 + $0x30] sm:$0xff]
      %v2488 = vld [vmem:[%s2128 + $0x38] sm:$0xff]
      %v2489 = vld [vmem:[%s2128 + $0x48] sm:$0xff]
      %v2490 = vld [vmem:[%s2128 + $0x50] sm:$0xff]
      %v2491 = vld [vmem:[%s2128 + $0x60] sm:$0xff]
      %v2492 = vld [vmem:[%s2128 + $0x68] sm:$0xff]
      %v2493 = vld [vmem:[%s2128 + $0x78] sm:$0xff]
      %v2494 = vld [vmem:[%s2128 + $0x80] sm:$0xff]
      %v2495 = vld [vmem:[%s2128 + $0x90] sm:$0xff]
      %v2496 = vld [vmem:[%s2128 + $0x98] sm:$0xff]
      %v2497 = vld [vmem:[%s2128 + $0xa8] sm:$0xff]
      %v2498 = vld [vmem:[%s2128 + $0xb0] sm:$0xff]
      %v2499 = vld [vmem:[%s2128 + $0xc0] sm:$0xff]
      %v2500 = vld [vmem:[%s2128 + $0xc8] sm:$0xff]
      %v2501 = vld [vmem:[%s2128 + $0xd8] sm:$0xff]
      %v2502 = vld [vmem:[%s2128 + $0xe0] sm:$0xff]
      %v2503 = vld [vmem:[%s2128 + $0xf0] sm:$0xff]
      %v2504 = vld [vmem:[%s2128 + $0xf8] sm:$0xff]
      %v2505 = vld [vmem:[%s2128 + $0x108] sm:$0xff]
      %v2506 = vld [vmem:[%s2128 + $0x110] sm:$0xff]
      %v2507 = vld [vmem:[%s2128 + $0x120] sm:$0xff]
      %v2508 = vld [vmem:[%s2128 + $0x128] sm:$0xff]
      %v2509 = vld [vmem:[%s2128 + $0x138] sm:$0xff]
      %v2510 = vld [vmem:[%s2128 + $0x140] sm:$0xff]
      %v2511 = vld [vmem:[%s2128 + $0x150] sm:$0xff]
      %v2512 = vld [vmem:[%s2128 + $0x158] sm:$0xff]
      %v2513 = vld [vmem:[%s2128 + $0x168] sm:$0xff]
      %v2514 = vld [vmem:[%s2128 + $0x170] sm:$0xff]
      %v2515 = vpack.c.bf16 %v2484, %v2483
      %v2516 = vpack.c.bf16 %v2486, %v2485
      %v2517 = vpack.c.bf16 %v2488, %v2487
      %v2518 = vpack.c.bf16 %v2490, %v2489
      %v2519 = vpack.c.bf16 %v2492, %v2491
      %v2520 = vpack.c.bf16 %v2494, %v2493
      %v2521 = vpack.c.bf16 %v2496, %v2495
      %v2522 = vpack.c.bf16 %v2498, %v2497
      %v2523 = vpack.c.bf16 %v2500, %v2499
      %v2524 = vpack.c.bf16 %v2502, %v2501
      %v2525 = vpack.c.bf16 %v2504, %v2503
      %v2526 = vpack.c.bf16 %v2506, %v2505
      %v2527 = vpack.c.bf16 %v2508, %v2507
      %v2528 = vpack.c.bf16 %v2510, %v2509
      %v2529 = vpack.c.bf16 %v2512, %v2511
      %v2530 = vpack.c.bf16 %v2514, %v2513
      %2547 = vrot.lane.b32.xlu0 %v2515, 24
      %v2548 = vpop.permute.xlu0 %2547
      %2549 = vrot.lane.b32.xlu0 %v2516, 24
      %v2550 = vpop.permute.xlu0 %2549
      %2551 = vrot.lane.b32.xlu0 %v2517, 24
      %v2552 = vpop.permute.xlu0 %2551
      %2553 = vrot.lane.b32.xlu0 %v2518, 24
      %v2554 = vpop.permute.xlu0 %2553
      %2555 = vrot.lane.b32.xlu0 %v2519, 24
      %v2556 = vpop.permute.xlu0 %2555
      %2557 = vrot.lane.b32.xlu0 %v2520, 24
      %v2558 = vpop.permute.xlu0 %2557
      %2559 = vrot.lane.b32.xlu0 %v2521, 24
      %v2560 = vpop.permute.xlu0 %2559
      %2561 = vrot.lane.b32.xlu0 %v2522, 24
      %v2562 = vpop.permute.xlu0 %2561
      %2563 = vrot.lane.b32.xlu0 %v2523, 24
      %v2564 = vpop.permute.xlu0 %2563
      %2565 = vrot.lane.b32.xlu0 %v2524, 24
      %v2566 = vpop.permute.xlu0 %2565
      %2567 = vrot.lane.b32.xlu0 %v2525, 24
      %v2568 = vpop.permute.xlu0 %2567
      %2569 = vrot.lane.b32.xlu0 %v2526, 24
      %v2570 = vpop.permute.xlu0 %2569
      %2571 = vrot.lane.b32.xlu0 %v2527, 24
      %v2572 = vpop.permute.xlu0 %2571
      %2573 = vrot.lane.b32.xlu0 %v2528, 24
      %v2574 = vpop.permute.xlu0 %2573
      %2575 = vrot.lane.b32.xlu0 %v2529, 24
      %v2576 = vpop.permute.xlu0 %2575
      %2577 = vrot.lane.b32.xlu0 %v2530, 24
      %v2578 = vpop.permute.xlu0 %2577
      %vm2595 = vcmask 261312
      %2596 = vst.msk [vmem:[#allocation5] sm:$0xff] %vm2595, %v2548
      %2597 = vst.msk [vmem:[#allocation5 + $0x8] sm:$0xff] %vm2595, %v2550
      %2598 = vst.msk [vmem:[#allocation5 + $0x10] sm:$0xff] %vm2595, %v2552
      %2599 = vst.msk [vmem:[#allocation5 + $0x18] sm:$0xff] %vm2595, %v2554
      %2600 = vst.msk [vmem:[#allocation5 + $0x20] sm:$0xff] %vm2595, %v2556
      %2601 = vst.msk [vmem:[#allocation5 + $0x28] sm:$0xff] %vm2595, %v2558
      %2602 = vst.msk [vmem:[#allocation5 + $0x30] sm:$0xff] %vm2595, %v2560
      %2603 = vst.msk [vmem:[#allocation5 + $0x38] sm:$0xff] %vm2595, %v2562
      %2604 = vst.msk [vmem:[#allocation5 + $0x40] sm:$0xff] %vm2595, %v2564
      %2605 = vst.msk [vmem:[#allocation5 + $0x48] sm:$0xff] %vm2595, %v2566
      %2606 = vst.msk [vmem:[#allocation5 + $0x50] sm:$0xff] %vm2595, %v2568
      %2607 = vst.msk [vmem:[#allocation5 + $0x58] sm:$0xff] %vm2595, %v2570
      %2608 = vst.msk [vmem:[#allocation5 + $0x60] sm:$0xff] %vm2595, %v2572
      %2609 = vst.msk [vmem:[#allocation5 + $0x68] sm:$0xff] %vm2595, %v2574
      %2610 = vst.msk [vmem:[#allocation5 + $0x70] sm:$0xff] %vm2595, %v2576
      %2611 = vst.msk [vmem:[#allocation5 + $0x78] sm:$0xff] %vm2595, %v2578
      %v2612 = vld [vmem:[%s2128 + $0x1] sm:$0xff]
      %v2613 = vld [vmem:[%s2128 + $0x9] sm:$0xff]
      %v2614 = vld [vmem:[%s2128 + $0x19] sm:$0xff]
      %v2615 = vld [vmem:[%s2128 + $0x21] sm:$0xff]
      %v2616 = vld [vmem:[%s2128 + $0x31] sm:$0xff]
      %v2617 = vld [vmem:[%s2128 + $0x39] sm:$0xff]
      %v2618 = vld [vmem:[%s2128 + $0x49] sm:$0xff]
      %v2619 = vld [vmem:[%s2128 + $0x51] sm:$0xff]
      %v2620 = vld [vmem:[%s2128 + $0x61] sm:$0xff]
      %v2621 = vld [vmem:[%s2128 + $0x69] sm:$0xff]
      %v2622 = vld [vmem:[%s2128 + $0x79] sm:$0xff]
      %v2623 = vld [vmem:[%s2128 + $0x81] sm:$0xff]
      %v2624 = vld [vmem:[%s2128 + $0x91] sm:$0xff]
      %v2625 = vld [vmem:[%s2128 + $0x99] sm:$0xff]
      %v2626 = vld [vmem:[%s2128 + $0xa9] sm:$0xff]
      %v2627 = vld [vmem:[%s2128 + $0xb1] sm:$0xff]
      %v2628 = vld [vmem:[%s2128 + $0xc1] sm:$0xff]
      %v2629 = vld [vmem:[%s2128 + $0xc9] sm:$0xff]
      %v2630 = vld [vmem:[%s2128 + $0xd9] sm:$0xff]
      %v2631 = vld [vmem:[%s2128 + $0xe1] sm:$0xff]
      %v2632 = vld [vmem:[%s2128 + $0xf1] sm:$0xff]
      %v2633 = vld [vmem:[%s2128 + $0xf9] sm:$0xff]
      %v2634 = vld [vmem:[%s2128 + $0x109] sm:$0xff]
      %v2635 = vld [vmem:[%s2128 + $0x111] sm:$0xff]
      %v2636 = vld [vmem:[%s2128 + $0x121] sm:$0xff]
      %v2637 = vld [vmem:[%s2128 + $0x129] sm:$0xff]
      %v2638 = vld [vmem:[%s2128 + $0x139] sm:$0xff]
      %v2639 = vld [vmem:[%s2128 + $0x141] sm:$0xff]
      %v2640 = vld [vmem:[%s2128 + $0x151] sm:$0xff]
      %v2641 = vld [vmem:[%s2128 + $0x159] sm:$0xff]
      %v2642 = vld [vmem:[%s2128 + $0x169] sm:$0xff]
      %v2643 = vld [vmem:[%s2128 + $0x171] sm:$0xff]
      %v2644 = vpack.c.bf16 %v2613, %v2612
      %v2645 = vpack.c.bf16 %v2615, %v2614
      %v2646 = vpack.c.bf16 %v2617, %v2616
      %v2647 = vpack.c.bf16 %v2619, %v2618
      %v2648 = vpack.c.bf16 %v2621, %v2620
      %v2649 = vpack.c.bf16 %v2623, %v2622
      %v2650 = vpack.c.bf16 %v2625, %v2624
      %v2651 = vpack.c.bf16 %v2627, %v2626
      %v2652 = vpack.c.bf16 %v2629, %v2628
      %v2653 = vpack.c.bf16 %v2631, %v2630
      %v2654 = vpack.c.bf16 %v2633, %v2632
      %v2655 = vpack.c.bf16 %v2635, %v2634
      %v2656 = vpack.c.bf16 %v2637, %v2636
      %v2657 = vpack.c.bf16 %v2639, %v2638
      %v2658 = vpack.c.bf16 %v2641, %v2640
      %v2659 = vpack.c.bf16 %v2643, %v2642
      %2676 = vrot.lane.b32.xlu0 %v2644, 32
      %v2677 = vpop.permute.xlu0 %2676
      %2678 = vrot.lane.b32.xlu0 %v2645, 32
      %v2679 = vpop.permute.xlu0 %2678
      %2680 = vrot.lane.b32.xlu0 %v2646, 32
      %v2681 = vpop.permute.xlu0 %2680
      %2682 = vrot.lane.b32.xlu0 %v2647, 32
      %v2683 = vpop.permute.xlu0 %2682
      %2684 = vrot.lane.b32.xlu0 %v2648, 32
      %v2685 = vpop.permute.xlu0 %2684
      %2686 = vrot.lane.b32.xlu0 %v2649, 32
      %v2687 = vpop.permute.xlu0 %2686
      %2688 = vrot.lane.b32.xlu0 %v2650, 32
      %v2689 = vpop.permute.xlu0 %2688
      %2690 = vrot.lane.b32.xlu0 %v2651, 32
      %v2691 = vpop.permute.xlu0 %2690
      %2692 = vrot.lane.b32.xlu0 %v2652, 32
      %v2693 = vpop.permute.xlu0 %2692
      %2694 = vrot.lane.b32.xlu0 %v2653, 32
      %v2695 = vpop.permute.xlu0 %2694
      %2696 = vrot.lane.b32.xlu0 %v2654, 32
      %v2697 = vpop.permute.xlu0 %2696
      %2698 = vrot.lane.b32.xlu0 %v2655, 32
      %v2699 = vpop.permute.xlu0 %2698
      %2700 = vrot.lane.b32.xlu0 %v2656, 32
      %v2701 = vpop.permute.xlu0 %2700
      %2702 = vrot.lane.b32.xlu0 %v2657, 32
      %v2703 = vpop.permute.xlu0 %2702
      %2704 = vrot.lane.b32.xlu0 %v2658, 32
      %v2705 = vpop.permute.xlu0 %2704
      %2706 = vrot.lane.b32.xlu0 %v2659, 32
      %v2707 = vpop.permute.xlu0 %2706
      %vm2724 = vcmask 326912
      %2725 = vst.msk [vmem:[#allocation5] sm:$0xff] %vm2724, %v2677
      %2726 = vst.msk [vmem:[#allocation5 + $0x8] sm:$0xff] %vm2724, %v2679
      %2727 = vst.msk [vmem:[#allocation5 + $0x10] sm:$0xff] %vm2724, %v2681
      %2728 = vst.msk [vmem:[#allocation5 + $0x18] sm:$0xff] %vm2724, %v2683
      %2729 = vst.msk [vmem:[#allocation5 + $0x20] sm:$0xff] %vm2724, %v2685
      %2730 = vst.msk [vmem:[#allocation5 + $0x28] sm:$0xff] %vm2724, %v2687
      %2731 = vst.msk [vmem:[#allocation5 + $0x30] sm:$0xff] %vm2724, %v2689
      %2732 = vst.msk [vmem:[#allocation5 + $0x38] sm:$0xff] %vm2724, %v2691
      %2733 = vst.msk [vmem:[#allocation5 + $0x40] sm:$0xff] %vm2724, %v2693
      %2734 = vst.msk [vmem:[#allocation5 + $0x48] sm:$0xff] %vm2724, %v2695
      %2735 = vst.msk [vmem:[#allocation5 + $0x50] sm:$0xff] %vm2724, %v2697
      %2736 = vst.msk [vmem:[#allocation5 + $0x58] sm:$0xff] %vm2724, %v2699
      %2737 = vst.msk [vmem:[#allocation5 + $0x60] sm:$0xff] %vm2724, %v2701
      %2738 = vst.msk [vmem:[#allocation5 + $0x68] sm:$0xff] %vm2724, %v2703
      %2739 = vst.msk [vmem:[#allocation5 + $0x70] sm:$0xff] %vm2724, %v2705
      %2740 = vst.msk [vmem:[#allocation5 + $0x78] sm:$0xff] %vm2724, %v2707
      %v2741 = vld [vmem:[%s2128 + $0x2] sm:$0xff]
      %v2742 = vld [vmem:[%s2128 + $0xa] sm:$0xff]
      %v2743 = vld [vmem:[%s2128 + $0x1a] sm:$0xff]
      %v2744 = vld [vmem:[%s2128 + $0x22] sm:$0xff]
      %v2745 = vld [vmem:[%s2128 + $0x32] sm:$0xff]
      %v2746 = vld [vmem:[%s2128 + $0x3a] sm:$0xff]
      %v2747 = vld [vmem:[%s2128 + $0x4a] sm:$0xff]
      %v2748 = vld [vmem:[%s2128 + $0x52] sm:$0xff]
      %v2749 = vld [vmem:[%s2128 + $0x62] sm:$0xff]
      %v2750 = vld [vmem:[%s2128 + $0x6a] sm:$0xff]
      %v2751 = vld [vmem:[%s2128 + $0x7a] sm:$0xff]
      %v2752 = vld [vmem:[%s2128 + $0x82] sm:$0xff]
      %v2753 = vld [vmem:[%s2128 + $0x92] sm:$0xff]
      %v2754 = vld [vmem:[%s2128 + $0x9a] sm:$0xff]
      %v2755 = vld [vmem:[%s2128 + $0xaa] sm:$0xff]
      %v2756 = vld [vmem:[%s2128 + $0xb2] sm:$0xff]
      %v2757 = vld [vmem:[%s2128 + $0xc2] sm:$0xff]
      %v2758 = vld [vmem:[%s2128 + $0xca] sm:$0xff]
      %v2759 = vld [vmem:[%s2128 + $0xda] sm:$0xff]
      %v2760 = vld [vmem:[%s2128 + $0xe2] sm:$0xff]
      %v2761 = vld [vmem:[%s2128 + $0xf2] sm:$0xff]
      %v2762 = vld [vmem:[%s2128 + $0xfa] sm:$0xff]
      %v2763 = vld [vmem:[%s2128 + $0x10a] sm:$0xff]
      %v2764 = vld [vmem:[%s2128 + $0x112] sm:$0xff]
      %v2765 = vld [vmem:[%s2128 + $0x122] sm:$0xff]
      %v2766 = vld [vmem:[%s2128 + $0x12a] sm:$0xff]
      %v2767 = vld [vmem:[%s2128 + $0x13a] sm:$0xff]
      %v2768 = vld [vmem:[%s2128 + $0x142] sm:$0xff]
      %v2769 = vld [vmem:[%s2128 + $0x152] sm:$0xff]
      %v2770 = vld [vmem:[%s2128 + $0x15a] sm:$0xff]
      %v2771 = vld [vmem:[%s2128 + $0x16a] sm:$0xff]
      %v2772 = vld [vmem:[%s2128 + $0x172] sm:$0xff]
      %v2773 = vpack.c.bf16 %v2742, %v2741
      %v2774 = vpack.c.bf16 %v2744, %v2743
      %v2775 = vpack.c.bf16 %v2746, %v2745
      %v2776 = vpack.c.bf16 %v2748, %v2747
      %v2777 = vpack.c.bf16 %v2750, %v2749
      %v2778 = vpack.c.bf16 %v2752, %v2751
      %v2779 = vpack.c.bf16 %v2754, %v2753
      %v2780 = vpack.c.bf16 %v2756, %v2755
      %v2781 = vpack.c.bf16 %v2758, %v2757
      %v2782 = vpack.c.bf16 %v2760, %v2759
      %v2783 = vpack.c.bf16 %v2762, %v2761
      %v2784 = vpack.c.bf16 %v2764, %v2763
      %v2785 = vpack.c.bf16 %v2766, %v2765
      %v2786 = vpack.c.bf16 %v2768, %v2767
      %v2787 = vpack.c.bf16 %v2770, %v2769
      %v2788 = vpack.c.bf16 %v2772, %v2771
      %2805 = vrot.lane.b32.xlu0 %v2773, 40
      %v2806 = vpop.permute.xlu0 %2805
      %2807 = vrot.lane.b32.xlu0 %v2774, 40
      %v2808 = vpop.permute.xlu0 %2807
      %2809 = vrot.lane.b32.xlu0 %v2775, 40
      %v2810 = vpop.permute.xlu0 %2809
      %2811 = vrot.lane.b32.xlu0 %v2776, 40
      %v2812 = vpop.permute.xlu0 %2811
      %2813 = vrot.lane.b32.xlu0 %v2777, 40
      %v2814 = vpop.permute.xlu0 %2813
      %2815 = vrot.lane.b32.xlu0 %v2778, 40
      %v2816 = vpop.permute.xlu0 %2815
      %2817 = vrot.lane.b32.xlu0 %v2779, 40
      %v2818 = vpop.permute.xlu0 %2817
      %2819 = vrot.lane.b32.xlu0 %v2780, 40
      %v2820 = vpop.permute.xlu0 %2819
      %2821 = vrot.lane.b32.xlu0 %v2781, 40
      %v2822 = vpop.permute.xlu0 %2821
      %2823 = vrot.lane.b32.xlu0 %v2782, 40
      %v2824 = vpop.permute.xlu0 %2823
      %2825 = vrot.lane.b32.xlu0 %v2783, 40
      %v2826 = vpop.permute.xlu0 %2825
      %2827 = vrot.lane.b32.xlu0 %v2784, 40
      %v2828 = vpop.permute.xlu0 %2827
      %2829 = vrot.lane.b32.xlu0 %v2785, 40
      %v2830 = vpop.permute.xlu0 %2829
      %2831 = vrot.lane.b32.xlu0 %v2786, 40
      %v2832 = vpop.permute.xlu0 %2831
      %2833 = vrot.lane.b32.xlu0 %v2787, 40
      %v2834 = vpop.permute.xlu0 %2833
      %2835 = vrot.lane.b32.xlu0 %v2788, 40
      %v2836 = vpop.permute.xlu0 %2835
      %vm2853 = vcmask 392512
      %2854 = vst.msk [vmem:[#allocation5] sm:$0xff] %vm2853, %v2806
      %2855 = vst.msk [vmem:[#allocation5 + $0x8] sm:$0xff] %vm2853, %v2808
      %2856 = vst.msk [vmem:[#allocation5 + $0x10] sm:$0xff] %vm2853, %v2810
      %2857 = vst.msk [vmem:[#allocation5 + $0x18] sm:$0xff] %vm2853, %v2812
      %2858 = vst.msk [vmem:[#allocation5 + $0x20] sm:$0xff] %vm2853, %v2814
      %2859 = vst.msk [vmem:[#allocation5 + $0x28] sm:$0xff] %vm2853, %v2816
      %2860 = vst.msk [vmem:[#allocation5 + $0x30] sm:$0xff] %vm2853, %v2818
      %2861 = vst.msk [vmem:[#allocation5 + $0x38] sm:$0xff] %vm2853, %v2820
      %2862 = vst.msk [vmem:[#allocation5 + $0x40] sm:$0xff] %vm2853, %v2822
      %2863 = vst.msk [vmem:[#allocation5 + $0x48] sm:$0xff] %vm2853, %v2824
      %2864 = vst.msk [vmem:[#allocation5 + $0x50] sm:$0xff] %vm2853, %v2826
      %2865 = vst.msk [vmem:[#allocation5 + $0x58] sm:$0xff] %vm2853, %v2828
      %2866 = vst.msk [vmem:[#allocation5 + $0x60] sm:$0xff] %vm2853, %v2830
      %2867 = vst.msk [vmem:[#allocation5 + $0x68] sm:$0xff] %vm2853, %v2832
      %2868 = vst.msk [vmem:[#allocation5 + $0x70] sm:$0xff] %vm2853, %v2834
      %2869 = vst.msk [vmem:[#allocation5 + $0x78] sm:$0xff] %vm2853, %v2836
      %s2870 = scalar_lea.vmem [#allocation4], 48
      %v2871 = vld [vmem:[%s2870] sm:$0xff]
      %v2872 = vld [vmem:[%s2870 + $0x8] sm:$0xff]
      %v2873 = vld [vmem:[%s2870 + $0x18] sm:$0xff]
      %v2874 = vld [vmem:[%s2870 + $0x20] sm:$0xff]
      %v2875 = vld [vmem:[%s2870 + $0x30] sm:$0xff]
      %v2876 = vld [vmem:[%s2870 + $0x38] sm:$0xff]
      %v2877 = vld [vmem:[%s2870 + $0x48] sm:$0xff]
      %v2878 = vld [vmem:[%s2870 + $0x50] sm:$0xff]
      %v2879 = vld [vmem:[%s2870 + $0x60] sm:$0xff]
      %v2880 = vld [vmem:[%s2870 + $0x68] sm:$0xff]
      %v2881 = vld [vmem:[%s2870 + $0x78] sm:$0xff]
      %v2882 = vld [vmem:[%s2870 + $0x80] sm:$0xff]
      %v2883 = vld [vmem:[%s2870 + $0x90] sm:$0xff]
      %v2884 = vld [vmem:[%s2870 + $0x98] sm:$0xff]
      %v2885 = vld [vmem:[%s2870 + $0xa8] sm:$0xff]
      %v2886 = vld [vmem:[%s2870 + $0xb0] sm:$0xff]
      %v2887 = vld [vmem:[%s2870 + $0xc0] sm:$0xff]
      %v2888 = vld [vmem:[%s2870 + $0xc8] sm:$0xff]
      %v2889 = vld [vmem:[%s2870 + $0xd8] sm:$0xff]
      %v2890 = vld [vmem:[%s2870 + $0xe0] sm:$0xff]
      %v2891 = vld [vmem:[%s2870 + $0xf0] sm:$0xff]
      %v2892 = vld [vmem:[%s2870 + $0xf8] sm:$0xff]
      %v2893 = vld [vmem:[%s2870 + $0x108] sm:$0xff]
      %v2894 = vld [vmem:[%s2870 + $0x110] sm:$0xff]
      %v2895 = vld [vmem:[%s2870 + $0x120] sm:$0xff]
      %v2896 = vld [vmem:[%s2870 + $0x128] sm:$0xff]
      %v2897 = vld [vmem:[%s2870 + $0x138] sm:$0xff]
      %v2898 = vld [vmem:[%s2870 + $0x140] sm:$0xff]
      %v2899 = vld [vmem:[%s2870 + $0x150] sm:$0xff]
      %v2900 = vld [vmem:[%s2870 + $0x158] sm:$0xff]
      %v2901 = vld [vmem:[%s2870 + $0x168] sm:$0xff]
      %v2902 = vld [vmem:[%s2870 + $0x170] sm:$0xff]
      %v2903 = vpack.c.bf16 %v2872, %v2871
      %v2904 = vpack.c.bf16 %v2874, %v2873
      %v2905 = vpack.c.bf16 %v2876, %v2875
      %v2906 = vpack.c.bf16 %v2878, %v2877
      %v2907 = vpack.c.bf16 %v2880, %v2879
      %v2908 = vpack.c.bf16 %v2882, %v2881
      %v2909 = vpack.c.bf16 %v2884, %v2883
      %v2910 = vpack.c.bf16 %v2886, %v2885
      %v2911 = vpack.c.bf16 %v2888, %v2887
      %v2912 = vpack.c.bf16 %v2890, %v2889
      %v2913 = vpack.c.bf16 %v2892, %v2891
      %v2914 = vpack.c.bf16 %v2894, %v2893
      %v2915 = vpack.c.bf16 %v2896, %v2895
      %v2916 = vpack.c.bf16 %v2898, %v2897
      %v2917 = vpack.c.bf16 %v2900, %v2899
      %v2918 = vpack.c.bf16 %v2902, %v2901
      %2935 = vrot.lane.b32.xlu0 %v2903, 48
      %v2936 = vpop.permute.xlu0 %2935
      %2937 = vrot.lane.b32.xlu0 %v2904, 48
      %v2938 = vpop.permute.xlu0 %2937
      %2939 = vrot.lane.b32.xlu0 %v2905, 48
      %v2940 = vpop.permute.xlu0 %2939
      %2941 = vrot.lane.b32.xlu0 %v2906, 48
      %v2942 = vpop.permute.xlu0 %2941
      %2943 = vrot.lane.b32.xlu0 %v2907, 48
      %v2944 = vpop.permute.xlu0 %2943
      %2945 = vrot.lane.b32.xlu0 %v2908, 48
      %v2946 = vpop.permute.xlu0 %2945
      %2947 = vrot.lane.b32.xlu0 %v2909, 48
      %v2948 = vpop.permute.xlu0 %2947
      %2949 = vrot.lane.b32.xlu0 %v2910, 48
      %v2950 = vpop.permute.xlu0 %2949
      %2951 = vrot.lane.b32.xlu0 %v2911, 48
      %v2952 = vpop.permute.xlu0 %2951
      %2953 = vrot.lane.b32.xlu0 %v2912, 48
      %v2954 = vpop.permute.xlu0 %2953
      %2955 = vrot.lane.b32.xlu0 %v2913, 48
      %v2956 = vpop.permute.xlu0 %2955
      %2957 = vrot.lane.b32.xlu0 %v2914, 48
      %v2958 = vpop.permute.xlu0 %2957
      %2959 = vrot.lane.b32.xlu0 %v2915, 48
      %v2960 = vpop.permute.xlu0 %2959
      %2961 = vrot.lane.b32.xlu0 %v2916, 48
      %v2962 = vpop.permute.xlu0 %2961
      %2963 = vrot.lane.b32.xlu0 %v2917, 48
      %v2964 = vpop.permute.xlu0 %2963
      %2965 = vrot.lane.b32.xlu0 %v2918, 48
      %v2966 = vpop.permute.xlu0 %2965
      %vm2983 = vcmask 458112
      %2984 = vst.msk [vmem:[#allocation5] sm:$0xff] %vm2983, %v2936
      %2985 = vst.msk [vmem:[#allocation5 + $0x8] sm:$0xff] %vm2983, %v2938
      %2986 = vst.msk [vmem:[#allocation5 + $0x10] sm:$0xff] %vm2983, %v2940
      %2987 = vst.msk [vmem:[#allocation5 + $0x18] sm:$0xff] %vm2983, %v2942
      %2988 = vst.msk [vmem:[#allocation5 + $0x20] sm:$0xff] %vm2983, %v2944
      %2989 = vst.msk [vmem:[#allocation5 + $0x28] sm:$0xff] %vm2983, %v2946
      %2990 = vst.msk [vmem:[#allocation5 + $0x30] sm:$0xff] %vm2983, %v2948
      %2991 = vst.msk [vmem:[#allocation5 + $0x38] sm:$0xff] %vm2983, %v2950
      %2992 = vst.msk [vmem:[#allocation5 + $0x40] sm:$0xff] %vm2983, %v2952
      %2993 = vst.msk [vmem:[#allocation5 + $0x48] sm:$0xff] %vm2983, %v2954
      %2994 = vst.msk [vmem:[#allocation5 + $0x50] sm:$0xff] %vm2983, %v2956
      %2995 = vst.msk [vmem:[#allocation5 + $0x58] sm:$0xff] %vm2983, %v2958
      %2996 = vst.msk [vmem:[#allocation5 + $0x60] sm:$0xff] %vm2983, %v2960
      %2997 = vst.msk [vmem:[#allocation5 + $0x68] sm:$0xff] %vm2983, %v2962
      %2998 = vst.msk [vmem:[#allocation5 + $0x70] sm:$0xff] %vm2983, %v2964
      %2999 = vst.msk [vmem:[#allocation5 + $0x78] sm:$0xff] %vm2983, %v2966
      %v3000 = vld [vmem:[%s2870 + $0x1] sm:$0xff]
      %v3001 = vld [vmem:[%s2870 + $0x9] sm:$0xff]
      %v3002 = vld [vmem:[%s2870 + $0x19] sm:$0xff]
      %v3003 = vld [vmem:[%s2870 + $0x21] sm:$0xff]
      %v3004 = vld [vmem:[%s2870 + $0x31] sm:$0xff]
      %v3005 = vld [vmem:[%s2870 + $0x39] sm:$0xff]
      %v3006 = vld [vmem:[%s2870 + $0x49] sm:$0xff]
      %v3007 = vld [vmem:[%s2870 + $0x51] sm:$0xff]
      %v3008 = vld [vmem:[%s2870 + $0x61] sm:$0xff]
      %v3009 = vld [vmem:[%s2870 + $0x69] sm:$0xff]
      %v3010 = vld [vmem:[%s2870 + $0x79] sm:$0xff]
      %v3011 = vld [vmem:[%s2870 + $0x81] sm:$0xff]
      %v3012 = vld [vmem:[%s2870 + $0x91] sm:$0xff]
      %v3013 = vld [vmem:[%s2870 + $0x99] sm:$0xff]
      %v3014 = vld [vmem:[%s2870 + $0xa9] sm:$0xff]
      %v3015 = vld [vmem:[%s2870 + $0xb1] sm:$0xff]
      %v3016 = vld [vmem:[%s2870 + $0xc1] sm:$0xff]
      %v3017 = vld [vmem:[%s2870 + $0xc9] sm:$0xff]
      %v3018 = vld [vmem:[%s2870 + $0xd9] sm:$0xff]
      %v3019 = vld [vmem:[%s2870 + $0xe1] sm:$0xff]
      %v3020 = vld [vmem:[%s2870 + $0xf1] sm:$0xff]
      %v3021 = vld [vmem:[%s2870 + $0xf9] sm:$0xff]
      %v3022 = vld [vmem:[%s2870 + $0x109] sm:$0xff]
      %v3023 = vld [vmem:[%s2870 + $0x111] sm:$0xff]
      %v3024 = vld [vmem:[%s2870 + $0x121] sm:$0xff]
      %v3025 = vld [vmem:[%s2870 + $0x129] sm:$0xff]
      %v3026 = vld [vmem:[%s2870 + $0x139] sm:$0xff]
      %v3027 = vld [vmem:[%s2870 + $0x141] sm:$0xff]
      %v3028 = vld [vmem:[%s2870 + $0x151] sm:$0xff]
      %v3029 = vld [vmem:[%s2870 + $0x159] sm:$0xff]
      %v3030 = vld [vmem:[%s2870 + $0x169] sm:$0xff]
      %v3031 = vld [vmem:[%s2870 + $0x171] sm:$0xff]
      %v3032 = vpack.c.bf16 %v3001, %v3000
      %v3033 = vpack.c.bf16 %v3003, %v3002
      %v3034 = vpack.c.bf16 %v3005, %v3004
      %v3035 = vpack.c.bf16 %v3007, %v3006
      %v3036 = vpack.c.bf16 %v3009, %v3008
      %v3037 = vpack.c.bf16 %v3011, %v3010
      %v3038 = vpack.c.bf16 %v3013, %v3012
      %v3039 = vpack.c.bf16 %v3015, %v3014
      %v3040 = vpack.c.bf16 %v3017, %v3016
      %v3041 = vpack.c.bf16 %v3019, %v3018
      %v3042 = vpack.c.bf16 %v3021, %v3020
      %v3043 = vpack.c.bf16 %v3023, %v3022
      %v3044 = vpack.c.bf16 %v3025, %v3024
      %v3045 = vpack.c.bf16 %v3027, %v3026
      %v3046 = vpack.c.bf16 %v3029, %v3028
      %v3047 = vpack.c.bf16 %v3031, %v3030
      %3064 = vrot.lane.b32.xlu0 %v3032, 56
      %v3065 = vpop.permute.xlu0 %3064
      %3066 = vrot.lane.b32.xlu0 %v3033, 56
      %v3067 = vpop.permute.xlu0 %3066
      %3068 = vrot.lane.b32.xlu0 %v3034, 56
      %v3069 = vpop.permute.xlu0 %3068
      %3070 = vrot.lane.b32.xlu0 %v3035, 56
      %v3071 = vpop.permute.xlu0 %3070
      %3072 = vrot.lane.b32.xlu0 %v3036, 56
      %v3073 = vpop.permute.xlu0 %3072
      %3074 = vrot.lane.b32.xlu0 %v3037, 56
      %v3075 = vpop.permute.xlu0 %3074
      %3076 = vrot.lane.b32.xlu0 %v3038, 56
      %v3077 = vpop.permute.xlu0 %3076
      %3078 = vrot.lane.b32.xlu0 %v3039, 56
      %v3079 = vpop.permute.xlu0 %3078
      %3080 = vrot.lane.b32.xlu0 %v3040, 56
      %v3081 = vpop.permute.xlu0 %3080
      %3082 = vrot.lane.b32.xlu0 %v3041, 56
      %v3083 = vpop.permute.xlu0 %3082
      %3084 = vrot.lane.b32.xlu0 %v3042, 56
      %v3085 = vpop.permute.xlu0 %3084
      %3086 = vrot.lane.b32.xlu0 %v3043, 56
      %v3087 = vpop.permute.xlu0 %3086
      %3088 = vrot.lane.b32.xlu0 %v3044, 56
      %v3089 = vpop.permute.xlu0 %3088
      %3090 = vrot.lane.b32.xlu0 %v3045, 56
      %v3091 = vpop.permute.xlu0 %3090
      %3092 = vrot.lane.b32.xlu0 %v3046, 56
      %v3093 = vpop.permute.xlu0 %3092
      %3094 = vrot.lane.b32.xlu0 %v3047, 56
      %v3095 = vpop.permute.xlu0 %3094
      %vm3112 = vcmask 523712
      %3113 = vst.msk [vmem:[#allocation5] sm:$0xff] %vm3112, %v3065
      %3114 = vst.msk [vmem:[#allocation5 + $0x8] sm:$0xff] %vm3112, %v3067
      %3115 = vst.msk [vmem:[#allocation5 + $0x10] sm:$0xff] %vm3112, %v3069
      %3116 = vst.msk [vmem:[#allocation5 + $0x18] sm:$0xff] %vm3112, %v3071
      %3117 = vst.msk [vmem:[#allocation5 + $0x20] sm:$0xff] %vm3112, %v3073
      %3118 = vst.msk [vmem:[#allocation5 + $0x28] sm:$0xff] %vm3112, %v3075
      %3119 = vst.msk [vmem:[#allocation5 + $0x30] sm:$0xff] %vm3112, %v3077
      %3120 = vst.msk [vmem:[#allocation5 + $0x38] sm:$0xff] %vm3112, %v3079
      %3121 = vst.msk [vmem:[#allocation5 + $0x40] sm:$0xff] %vm3112, %v3081
      %3122 = vst.msk [vmem:[#allocation5 + $0x48] sm:$0xff] %vm3112, %v3083
      %3123 = vst.msk [vmem:[#allocation5 + $0x50] sm:$0xff] %vm3112, %v3085
      %3124 = vst.msk [vmem:[#allocation5 + $0x58] sm:$0xff] %vm3112, %v3087
      %3125 = vst.msk [vmem:[#allocation5 + $0x60] sm:$0xff] %vm3112, %v3089
      %3126 = vst.msk [vmem:[#allocation5 + $0x68] sm:$0xff] %vm3112, %v3091
      %3127 = vst.msk [vmem:[#allocation5 + $0x70] sm:$0xff] %vm3112, %v3093
      %3128 = vst.msk [vmem:[#allocation5 + $0x78] sm:$0xff] %vm3112, %v3095
      %v3129 = vld [vmem:[%s2870 + $0x2] sm:$0xff]
      %v3130 = vld [vmem:[%s2870 + $0xa] sm:$0xff]
      %v3131 = vld [vmem:[%s2870 + $0x1a] sm:$0xff]
      %v3132 = vld [vmem:[%s2870 + $0x22] sm:$0xff]
      %v3133 = vld [vmem:[%s2870 + $0x32] sm:$0xff]
      %v3134 = vld [vmem:[%s2870 + $0x3a] sm:$0xff]
      %v3135 = vld [vmem:[%s2870 + $0x4a] sm:$0xff]
      %v3136 = vld [vmem:[%s2870 + $0x52] sm:$0xff]
      %v3137 = vld [vmem:[%s2870 + $0x62] sm:$0xff]
      %v3138 = vld [vmem:[%s2870 + $0x6a] sm:$0xff]
      %v3139 = vld [vmem:[%s2870 + $0x7a] sm:$0xff]
      %v3140 = vld [vmem:[%s2870 + $0x82] sm:$0xff]
      %v3141 = vld [vmem:[%s2870 + $0x92] sm:$0xff]
      %v3142 = vld [vmem:[%s2870 + $0x9a] sm:$0xff]
      %v3143 = vld [vmem:[%s2870 + $0xaa] sm:$0xff]
      %v3144 = vld [vmem:[%s2870 + $0xb2] sm:$0xff]
      %v3145 = vld [vmem:[%s2870 + $0xc2] sm:$0xff]
      %v3146 = vld [vmem:[%s2870 + $0xca] sm:$0xff]
      %v3147 = vld [vmem:[%s2870 + $0xda] sm:$0xff]
      %v3148 = vld [vmem:[%s2870 + $0xe2] sm:$0xff]
      %v3149 = vld [vmem:[%s2870 + $0xf2] sm:$0xff]
      %v3150 = vld [vmem:[%s2870 + $0xfa] sm:$0xff]
      %v3151 = vld [vmem:[%s2870 + $0x10a] sm:$0xff]
      %v3152 = vld [vmem:[%s2870 + $0x112] sm:$0xff]
      %v3153 = vld [vmem:[%s2870 + $0x122] sm:$0xff]
      %v3154 = vld [vmem:[%s2870 + $0x12a] sm:$0xff]
      %v3155 = vld [vmem:[%s2870 + $0x13a] sm:$0xff]
      %v3156 = vld [vmem:[%s2870 + $0x142] sm:$0xff]
      %v3157 = vld [vmem:[%s2870 + $0x152] sm:$0xff]
      %v3158 = vld [vmem:[%s2870 + $0x15a] sm:$0xff]
      %v3159 = vld [vmem:[%s2870 + $0x16a] sm:$0xff]
      %v3160 = vld [vmem:[%s2870 + $0x172] sm:$0xff]
      %v3161 = vpack.c.bf16 %v3130, %v3129
      %v3162 = vpack.c.bf16 %v3132, %v3131
      %v3163 = vpack.c.bf16 %v3134, %v3133
      %v3164 = vpack.c.bf16 %v3136, %v3135
      %v3165 = vpack.c.bf16 %v3138, %v3137
      %v3166 = vpack.c.bf16 %v3140, %v3139
      %v3167 = vpack.c.bf16 %v3142, %v3141
      %v3168 = vpack.c.bf16 %v3144, %v3143
      %v3169 = vpack.c.bf16 %v3146, %v3145
      %v3170 = vpack.c.bf16 %v3148, %v3147
      %v3171 = vpack.c.bf16 %v3150, %v3149
      %v3172 = vpack.c.bf16 %v3152, %v3151
      %v3173 = vpack.c.bf16 %v3154, %v3153
      %v3174 = vpack.c.bf16 %v3156, %v3155
      %v3175 = vpack.c.bf16 %v3158, %v3157
      %v3176 = vpack.c.bf16 %v3160, %v3159
      %3193 = vrot.lane.b32.xlu0 %v3161, 64
      %v3194 = vpop.permute.xlu0 %3193
      %3195 = vrot.lane.b32.xlu0 %v3162, 64
      %v3196 = vpop.permute.xlu0 %3195
      %3197 = vrot.lane.b32.xlu0 %v3163, 64
      %v3198 = vpop.permute.xlu0 %3197
      %3199 = vrot.lane.b32.xlu0 %v3164, 64
      %v3200 = vpop.permute.xlu0 %3199
      %3201 = vrot.lane.b32.xlu0 %v3165, 64
      %v3202 = vpop.permute.xlu0 %3201
      %3203 = vrot.lane.b32.xlu0 %v3166, 64
      %v3204 = vpop.permute.xlu0 %3203
      %3205 = vrot.lane.b32.xlu0 %v3167, 64
      %v3206 = vpop.permute.xlu0 %3205
      %3207 = vrot.lane.b32.xlu0 %v3168, 64
      %v3208 = vpop.permute.xlu0 %3207
      %3209 = vrot.lane.b32.xlu0 %v3169, 64
      %v3210 = vpop.permute.xlu0 %3209
      %3211 = vrot.lane.b32.xlu0 %v3170, 64
      %v3212 = vpop.permute.xlu0 %3211
      %3213 = vrot.lane.b32.xlu0 %v3171, 64
      %v3214 = vpop.permute.xlu0 %3213
      %3215 = vrot.lane.b32.xlu0 %v3172, 64
      %v3216 = vpop.permute.xlu0 %3215
      %3217 = vrot.lane.b32.xlu0 %v3173, 64
      %v3218 = vpop.permute.xlu0 %3217
      %3219 = vrot.lane.b32.xlu0 %v3174, 64
      %v3220 = vpop.permute.xlu0 %3219
      %3221 = vrot.lane.b32.xlu0 %v3175, 64
      %v3222 = vpop.permute.xlu0 %3221
      %3223 = vrot.lane.b32.xlu0 %v3176, 64
      %v3224 = vpop.permute.xlu0 %3223
      %vm3241 = vcmask 589312
      %3242 = vst.msk [vmem:[#allocation5] sm:$0xff] %vm3241, %v3194
      %3243 = vst.msk [vmem:[#allocation5 + $0x8] sm:$0xff] %vm3241, %v3196
      %3244 = vst.msk [vmem:[#allocation5 + $0x10] sm:$0xff] %vm3241, %v3198
      %3245 = vst.msk [vmem:[#allocation5 + $0x18] sm:$0xff] %vm3241, %v3200
      %3246 = vst.msk [vmem:[#allocation5 + $0x20] sm:$0xff] %vm3241, %v3202
      %3247 = vst.msk [vmem:[#allocation5 + $0x28] sm:$0xff] %vm3241, %v3204
      %3248 = vst.msk [vmem:[#allocation5 + $0x30] sm:$0xff] %vm3241, %v3206
      %3249 = vst.msk [vmem:[#allocation5 + $0x38] sm:$0xff] %vm3241, %v3208
      %3250 = vst.msk [vmem:[#allocation5 + $0x40] sm:$0xff] %vm3241, %v3210
      %3251 = vst.msk [vmem:[#allocation5 + $0x48] sm:$0xff] %vm3241, %v3212
      %3252 = vst.msk [vmem:[#allocation5 + $0x50] sm:$0xff] %vm3241, %v3214
      %3253 = vst.msk [vmem:[#allocation5 + $0x58] sm:$0xff] %vm3241, %v3216
      %3254 = vst.msk [vmem:[#allocation5 + $0x60] sm:$0xff] %vm3241, %v3218
      %3255 = vst.msk [vmem:[#allocation5 + $0x68] sm:$0xff] %vm3241, %v3220
      %3256 = vst.msk [vmem:[#allocation5 + $0x70] sm:$0xff] %vm3241, %v3222
      %3257 = vst.msk [vmem:[#allocation5 + $0x78] sm:$0xff] %vm3241, %v3224
      %v3258 = vld [vmem:[#allocation5] sm:$0xff]
      %v3259 = vld [vmem:[#allocation5 + $0x8] sm:$0xff]
      %v3260 = vld [vmem:[#allocation5 + $0x10] sm:$0xff]
      %v3261 = vld [vmem:[#allocation5 + $0x18] sm:$0xff]
      %v3262 = vld [vmem:[#allocation5 + $0x20] sm:$0xff]
      %v3263 = vld [vmem:[#allocation5 + $0x28] sm:$0xff]
      %v3264 = vld [vmem:[#allocation5 + $0x30] sm:$0xff]
      %v3265 = vld [vmem:[#allocation5 + $0x38] sm:$0xff]
      %v3266 = vld [vmem:[#allocation5 + $0x40] sm:$0xff]
      %v3267 = vld [vmem:[#allocation5 + $0x48] sm:$0xff]
      %v3268 = vld [vmem:[#allocation5 + $0x50] sm:$0xff]
      %v3269 = vld [vmem:[#allocation5 + $0x58] sm:$0xff]
      %v3270 = vld [vmem:[#allocation5 + $0x60] sm:$0xff]
      %v3271 = vld [vmem:[#allocation5 + $0x68] sm:$0xff]
      %v3272 = vld [vmem:[#allocation5 + $0x70] sm:$0xff]
      %v3273 = vld [vmem:[#allocation5 + $0x78] sm:$0xff]
      %v3274 = vld [vmem:[%s4] sm:$0xf]
      %v3275 = vld [vmem:[%s4 + $0x4] sm:$0xf]
      %v3276 = vld [vmem:[%s4 + $0x8] sm:$0xf]
      %v3277 = vld [vmem:[%s4 + $0xc] sm:$0xf]
      %v3278 = vld [vmem:[%s4 + $0x10] sm:$0xf]
      %v3279 = vld [vmem:[%s4 + $0x14] sm:$0xf]
      %v3280 = vld [vmem:[%s4 + $0x18] sm:$0xf]
      %v3281 = vld [vmem:[%s4 + $0x1c] sm:$0xf]
      %v3282 = vld [vmem:[%s4 + $0x20] sm:$0xf]
      %v3283 = vld [vmem:[%s5] sm:$0x1]
      %v3285 = vlaneseq
      %v3286 = vshrl.u32 %v3285, 7
      %v3287 = vsub.s32 0, %v3286
      %v3288 = vrot.slane %v3283, %v3287
      %v3299 = vunpack.c.l.b16 %v3274
      %v3300 = vunpack.c.l.b16 %v3275
      %v3301 = vunpack.c.l.b16 %v3276
      %v3302 = vunpack.c.l.b16 %v3277
      %v3303 = vunpack.c.l.b16 %v3278
      %v3304 = vunpack.c.l.b16 %v3279
      %v3305 = vunpack.c.l.b16 %v3280
      %v3306 = vunpack.c.l.b16 %v3281
      %v3307 = vunpack.c.l.b16 %v3282
      %v3308 = vpack.c.b16 %v3300, %v3299
      %v3309 = vpack.c.b16 %v3302, %v3301
      %v3310 = vpack.c.b16 %v3304, %v3303
      %v3311 = vpack.c.b16 %v3306, %v3305
      %v3312 = vpack.c.b16 %v3307, %v3307
      %vm3317 = vcmask 588800
      %v3319 = vsel %vm3317, %v3258, 0
      %v3322 = vsel %vm3317, %v3259, 0
      %v3325 = vsel %vm3317, %v3260, 0
      %v3328 = vsel %vm3317, %v3261, 0
      %v3331 = vsel %vm3317, %v3262, 0
      %v3334 = vsel %vm3317, %v3263, 0
      %v3337 = vsel %vm3317, %v3264, 0
      %v3340 = vsel %vm3317, %v3265, 0
      %v3343 = vsel %vm3317, %v3266, 0
      %v3346 = vsel %vm3317, %v3267, 0
      %v3349 = vsel %vm3317, %v3268, 0
      %v3352 = vsel %vm3317, %v3269, 0
      %v3355 = vsel %vm3317, %v3270, 0
      %v3358 = vsel %vm3317, %v3271, 0
      %v3361 = vsel %vm3317, %v3272, 0
      %v3364 = vsel %vm3317, %v3273, 0
      %vm3366 = vcmask 1043456
      %v3368 = vsel %vm3366, %v3312, 0
      %3370 = vmatprep.subr.bf16.mxu0 0
      %3371 = vmatpush1.bf16.msra.mxu0 %v3308
      %3372 = vmatprep.subr.bf16.mxu0 0
      %3373 = vmatpush1.bf16.msra.mxu0 %v3309
      %3374 = vmatprep.subr.bf16.mxu0 0
      %3375 = vmatpush1.bf16.msra.mxu0 %v3310
      %3376 = vmatprep.subr.bf16.mxu0 0
      %3377 = vmatpush1.bf16.msra.mxu0 %v3311
      %3378 = vmatprep.subr.bf16.mxu0 0
      %3379 = vmatpush1.bf16.msra.mxu0 %v3368
      %3380 = vmatprep.subr.bf16.mxu0 0
      %3381 = vmatpush1.bf16.msra.mxu0 0
      %3382 = vmatprep.subr.bf16.mxu0 0
      %3383 = vmatpush1.bf16.msra.mxu0 0
      %3384 = vmatprep.subr.bf16.mxu0 0
      %3385 = vmatpush1.bf16.msra.mxu0 0
      %3386 = vmatprep.subr.bf16.mxu0 0
      %3387 = vmatpush1.bf16.msra.mxu0 0
      %3388 = vmatprep.subr.bf16.mxu0 0
      %3389 = vmatpush1.bf16.msra.mxu0 0
      %3390 = vmatprep.subr.bf16.mxu0 0
      %3391 = vmatpush1.bf16.msra.mxu0 0
      %3392 = vmatprep.subr.bf16.mxu0 0
      %3393 = vmatpush1.bf16.msra.mxu0 0
      %3394 = vmatprep.subr.bf16.mxu0 0
      %3395 = vmatpush1.bf16.msra.mxu0 0
      %3396 = vmatprep.subr.bf16.mxu0 0
      %3397 = vmatpush1.bf16.msra.mxu0 0
      %3398 = vmatprep.subr.bf16.mxu0 0
      %3399 = vmatpush1.bf16.msra.mxu0 0
      %3400 = vmatprep.subr.bf16.mxu0 0
      %3401 = vmatpush1.bf16.msra.mxu0 0
      %3402 = vmatprep.mubr.bf16.mxu0 0
      %3403 = vmatmul.mubr.bf16.gmra.mrb[0].mxu0 %v3319
      %v3404 = vpop.f32.mrb[0].mxu0
      %v3405 = vadd.f32 %v3288, %v3404
      %v3406 = vpop.f32.mrb[0].mxu0
      %v3407 = vpop.f32.mrb[0].mxu0
      %v3408 = vadd.f32 %v3288, %v3407
      %v3409 = vpop.f32.mrb[0].mxu0
      %3410 = vmatprep.mubr.bf16.mxu0 0
      %3411 = vmatmul.mubr.bf16.gmra.mrb[0].mxu0 %v3322
      %v3412 = vpop.f32.mrb[0].mxu0
      %v3413 = vadd.f32 %v3288, %v3412
      %v3414 = vpop.f32.mrb[0].mxu0
      %v3415 = vpop.f32.mrb[0].mxu0
      %v3416 = vadd.f32 %v3288, %v3415
      %v3417 = vpop.f32.mrb[0].mxu0
      %3418 = vmatprep.mubr.bf16.mxu0 0
      %3419 = vmatmul.mubr.bf16.gmra.mrb[0].mxu0 %v3325
      %v3420 = vpop.f32.mrb[0].mxu0
      %v3421 = vadd.f32 %v3288, %v3420
      %v3422 = vpop.f32.mrb[0].mxu0
      %v3423 = vpop.f32.mrb[0].mxu0
      %v3424 = vadd.f32 %v3288, %v3423
      %v3425 = vpop.f32.mrb[0].mxu0
      %3426 = vmatprep.mubr.bf16.mxu0 0
      %3427 = vmatmul.mubr.bf16.gmra.mrb[0].mxu0 %v3328
      %v3428 = vpop.f32.mrb[0].mxu0
      %v3429 = vadd.f32 %v3288, %v3428
      %v3430 = vpop.f32.mrb[0].mxu0
      %v3431 = vpop.f32.mrb[0].mxu0
      %v3432 = vadd.f32 %v3288, %v3431
      %v3433 = vpop.f32.mrb[0].mxu0
      %3434 = vmatprep.mubr.bf16.mxu0 0
      %3435 = vmatmul.mubr.bf16.gmra.mrb[0].mxu0 %v3331
      %v3436 = vpop.f32.mrb[0].mxu0
      %v3437 = vadd.f32 %v3288, %v3436
      %v3438 = vpop.f32.mrb[0].mxu0
      %v3439 = vpop.f32.mrb[0].mxu0
      %v3440 = vadd.f32 %v3288, %v3439
      %v3441 = vpop.f32.mrb[0].mxu0
      %3442 = vmatprep.mubr.bf16.mxu0 0
      %3443 = vmatmul.mubr.bf16.gmra.mrb[0].mxu0 %v3334
      %v3444 = vpop.f32.mrb[0].mxu0
      %v3445 = vadd.f32 %v3288, %v3444
      %v3446 = vpop.f32.mrb[0].mxu0
      %v3447 = vpop.f32.mrb[0].mxu0
      %v3448 = vadd.f32 %v3288, %v3447
      %v3449 = vpop.f32.mrb[0].mxu0
      %3450 = vmatprep.mubr.bf16.mxu0 0
      %3451 = vmatmul.mubr.bf16.gmra.mrb[0].mxu0 %v3337
      %v3452 = vpop.f32.mrb[0].mxu0
      %v3453 = vadd.f32 %v3288, %v3452
      %v3454 = vpop.f32.mrb[0].mxu0
      %v3455 = vpop.f32.mrb[0].mxu0
      %v3456 = vadd.f32 %v3288, %v3455
      %v3457 = vpop.f32.mrb[0].mxu0
      %3458 = vmatprep.mubr.bf16.mxu0 0
      %3459 = vmatmul.mubr.bf16.gmra.mrb[0].mxu0 %v3340
      %v3460 = vpop.f32.mrb[0].mxu0
      %v3461 = vadd.f32 %v3288, %v3460
      %v3462 = vpop.f32.mrb[0].mxu0
      %v3463 = vpop.f32.mrb[0].mxu0
      %v3464 = vadd.f32 %v3288, %v3463
      %v3465 = vpop.f32.mrb[0].mxu0
      %3466 = vmatprep.mubr.bf16.mxu0 0
      %3467 = vmatmul.mubr.bf16.gmra.mrb[0].mxu0 %v3343
      %v3468 = vpop.f32.mrb[0].mxu0
      %v3469 = vadd.f32 %v3288, %v3468
      %v3470 = vpop.f32.mrb[0].mxu0
      %v3471 = vpop.f32.mrb[0].mxu0
      %v3472 = vadd.f32 %v3288, %v3471
      %v3473 = vpop.f32.mrb[0].mxu0
      %3474 = vmatprep.mubr.bf16.mxu0 0
      %3475 = vmatmul.mubr.bf16.gmra.mrb[0].mxu0 %v3346
      %v3476 = vpop.f32.mrb[0].mxu0
      %v3477 = vadd.f32 %v3288, %v3476
      %v3478 = vpop.f32.mrb[0].mxu0
      %v3479 = vpop.f32.mrb[0].mxu0
      %v3480 = vadd.f32 %v3288, %v3479
      %v3481 = vpop.f32.mrb[0].mxu0
      %3482 = vmatprep.mubr.bf16.mxu0 0
      %3483 = vmatmul.mubr.bf16.gmra.mrb[0].mxu0 %v3349
      %v3484 = vpop.f32.mrb[0].mxu0
      %v3485 = vadd.f32 %v3288, %v3484
      %v3486 = vpop.f32.mrb[0].mxu0
      %v3487 = vpop.f32.mrb[0].mxu0
      %v3488 = vadd.f32 %v3288, %v3487
      %v3489 = vpop.f32.mrb[0].mxu0
      %3490 = vmatprep.mubr.bf16.mxu0 0
      %3491 = vmatmul.mubr.bf16.gmra.mrb[0].mxu0 %v3352
      %v3492 = vpop.f32.mrb[0].mxu0
      %v3493 = vadd.f32 %v3288, %v3492
      %v3494 = vpop.f32.mrb[0].mxu0
      %v3495 = vpop.f32.mrb[0].mxu0
      %v3496 = vadd.f32 %v3288, %v3495
      %v3497 = vpop.f32.mrb[0].mxu0
      %3498 = vmatprep.mubr.bf16.mxu0 0
      %3499 = vmatmul.mubr.bf16.gmra.mrb[0].mxu0 %v3355
      %v3500 = vpop.f32.mrb[0].mxu0
      %v3501 = vadd.f32 %v3288, %v3500
      %v3502 = vpop.f32.mrb[0].mxu0
      %v3503 = vpop.f32.mrb[0].mxu0
      %v3504 = vadd.f32 %v3288, %v3503
      %v3505 = vpop.f32.mrb[0].mxu0
      %3506 = vmatprep.mubr.bf16.mxu0 0
      %3507 = vmatmul.mubr.bf16.gmra.mrb[0].mxu0 %v3358
      %v3508 = vpop.f32.mrb[0].mxu0
      %v3509 = vadd.f32 %v3288, %v3508
      %v3510 = vpop.f32.mrb[0].mxu0
      %v3511 = vpop.f32.mrb[0].mxu0
      %v3512 = vadd.f32 %v3288, %v3511
      %v3513 = vpop.f32.mrb[0].mxu0
      %3514 = vmatprep.mubr.bf16.mxu0 0
      %3515 = vmatmul.mubr.bf16.gmra.mrb[0].mxu0 %v3361
      %v3516 = vpop.f32.mrb[0].mxu0
      %v3517 = vadd.f32 %v3288, %v3516
      %v3518 = vpop.f32.mrb[0].mxu0
      %v3519 = vpop.f32.mrb[0].mxu0
      %v3520 = vadd.f32 %v3288, %v3519
      %v3521 = vpop.f32.mrb[0].mxu0
      %3522 = vmatprep.mubr.bf16.mxu0 0
      %3523 = vmatmul.mubr.bf16.gmra.mrb[0].mxu0 %v3364
      %v3524 = vpop.f32.mrb[0].mxu0
      %v3525 = vadd.f32 %v3288, %v3524
      %v3526 = vpop.f32.mrb[0].mxu0
      %v3527 = vpop.f32.mrb[0].mxu0
      %v3528 = vadd.f32 %v3288, %v3527
      %v3529 = vpop.f32.mrb[0].mxu0
      %3530 = vdwg.mxu0
      %v3531 = vmax.f32 %v3405, 0.0
      %v3532 = vmax.f32 %v3408, 0.0
      %v3533 = vmax.f32 %v3413, 0.0
      %v3534 = vmax.f32 %v3416, 0.0
      %v3535 = vmax.f32 %v3421, 0.0
      %v3536 = vmax.f32 %v3424, 0.0
      %v3537 = vmax.f32 %v3429, 0.0
      %v3538 = vmax.f32 %v3432, 0.0
      %v3539 = vmax.f32 %v3437, 0.0
      %v3540 = vmax.f32 %v3440, 0.0
      %v3541 = vmax.f32 %v3445, 0.0
      %v3542 = vmax.f32 %v3448, 0.0
      %v3543 = vmax.f32 %v3453, 0.0
      %v3544 = vmax.f32 %v3456, 0.0
      %v3545 = vmax.f32 %v3461, 0.0
      %v3546 = vmax.f32 %v3464, 0.0
      %v3547 = vmax.f32 %v3469, 0.0
      %v3548 = vmax.f32 %v3472, 0.0
      %v3549 = vmax.f32 %v3477, 0.0
      %v3550 = vmax.f32 %v3480, 0.0
      %v3551 = vmax.f32 %v3485, 0.0
      %v3552 = vmax.f32 %v3488, 0.0
      %v3553 = vmax.f32 %v3493, 0.0
      %v3554 = vmax.f32 %v3496, 0.0
      %v3555 = vmax.f32 %v3501, 0.0
      %v3556 = vmax.f32 %v3504, 0.0
      %v3557 = vmax.f32 %v3509, 0.0
      %v3558 = vmax.f32 %v3512, 0.0
      %v3559 = vmax.f32 %v3517, 0.0
      %v3560 = vmax.f32 %v3520, 0.0
      %v3561 = vmax.f32 %v3525, 0.0
      %v3562 = vmax.f32 %v3528, 0.0
      %3563 = vxpose.xlu0.b32.start [1/16] %v3531, 128
      %3564 = vxpose.xlu0.b32.cont [2/16] %v3532, 128
      %3565 = vxpose.xlu0.b32.cont [3/16] %v3533, 128
      %3566 = vxpose.xlu0.b32.cont [4/16] %v3534, 128
      %3567 = vxpose.xlu0.b32.cont [5/16] %v3535, 128
      %3568 = vxpose.xlu0.b32.cont [6/16] %v3536, 128
      %3569 = vxpose.xlu0.b32.cont [7/16] %v3537, 128
      %3570 = vxpose.xlu0.b32.cont [8/16] %v3538, 128
      %3571 = vxpose.xlu0.b32.cont [9/16] %v3539, 128
      %3572 = vxpose.xlu0.b32.cont [10/16] %v3540, 128
      %3573 = vxpose.xlu0.b32.cont [11/16] %v3541, 128
      %3574 = vxpose.xlu0.b32.cont [12/16] %v3542, 128
      %3575 = vxpose.xlu0.b32.cont [13/16] %v3543, 128
      %3576 = vxpose.xlu0.b32.cont [14/16] %v3544, 128
      %3577 = vxpose.xlu0.b32.cont [15/16] %v3545, 128
      %3578 = vxpose.xlu0.b32.end [16/16] %v3546, 128
      %v3579 = vpop.trf.xlu0
      %v3580 = vpop.trf.xlu0
      %v3581 = vpop.trf.xlu0
      %v3582 = vpop.trf.xlu0
      %v3583 = vpop.trf.xlu0
      %v3584 = vpop.trf.xlu0
      %v3585 = vpop.trf.xlu0
      %v3586 = vpop.trf.xlu0
      %v3587 = vpop.trf.xlu0
      %v3588 = vpop.trf.xlu0
      %v3589 = vpop.trf.xlu0
      %v3590 = vpop.trf.xlu0
      %v3591 = vpop.trf.xlu0
      %v3592 = vpop.trf.xlu0
      %v3593 = vpop.trf.xlu0
      %v3594 = vpop.trf.xlu0
      %3595 = vxpose.xlu0.b32.start [1/16] %v3547, 128
      %3596 = vxpose.xlu0.b32.cont [2/16] %v3548, 128
      %3597 = vxpose.xlu0.b32.cont [3/16] %v3549, 128
      %3598 = vxpose.xlu0.b32.cont [4/16] %v3550, 128
      %3599 = vxpose.xlu0.b32.cont [5/16] %v3551, 128
      %3600 = vxpose.xlu0.b32.cont [6/16] %v3552, 128
      %3601 = vxpose.xlu0.b32.cont [7/16] %v3553, 128
      %3602 = vxpose.xlu0.b32.cont [8/16] %v3554, 128
      %3603 = vxpose.xlu0.b32.cont [9/16] %v3555, 128
      %3604 = vxpose.xlu0.b32.cont [10/16] %v3556, 128
      %3605 = vxpose.xlu0.b32.cont [11/16] %v3557, 128
      %3606 = vxpose.xlu0.b32.cont [12/16] %v3558, 128
      %3607 = vxpose.xlu0.b32.cont [13/16] %v3559, 128
      %3608 = vxpose.xlu0.b32.cont [14/16] %v3560, 128
      %3609 = vxpose.xlu0.b32.cont [15/16] %v3561, 128
      %3610 = vxpose.xlu0.b32.end [16/16] %v3562, 128
      %v3611 = vpop.trf.xlu0
      %v3612 = vpop.trf.xlu0
      %v3613 = vpop.trf.xlu0
      %v3614 = vpop.trf.xlu0
      %v3615 = vpop.trf.xlu0
      %v3616 = vpop.trf.xlu0
      %v3617 = vpop.trf.xlu0
      %v3618 = vpop.trf.xlu0
      %v3619 = vpop.trf.xlu0
      %v3620 = vpop.trf.xlu0
      %v3621 = vpop.trf.xlu0
      %v3622 = vpop.trf.xlu0
      %v3623 = vpop.trf.xlu0
      %v3624 = vpop.trf.xlu0
      %v3625 = vpop.trf.xlu0
      %v3626 = vpop.trf.xlu0
      %3627 = vst [vmem:[%s271] sm:$0xff] %v3579
      %3628 = vst [vmem:[%s271 + $0x8] sm:$0xff] %v3611
      %p3629 = scmp.lt.s32.totalorder %s17, 1
      %s3630 = scalar_select %p3629, %s17, 1
      %s3631 = smul.addr %s3630, 2
      %s3632 = smul.addr %s3631, 8
      %s3633 = scalar_lea.vmem %s6, %s3632
      // Predicated region
      $region45: #{unet_up_forward.1} parent=43 // pred_check
        %p3634 = pneg %p171
      $region46: #{unet_up_forward.1} parent=43 // pred_check_branch
        %3636 = sbr.rel (%p3634) target = $region48
      $region47: #{unet_up_forward.1} parent=43 // pred_region
        _
      $region48: #{unet_up_forward.1} parent=43 // pred_fallthru
        _
    $region44: #{unet_up_forward.1} parent=5 // pred_fallthru
      _
    %p3637 = scmp.le.s32.totalorder 2, %s12
    // Predicated region
    $region49: #{unet_up_forward.1} parent=5 // pred_check
      %p3638 = pneg %p3637
    $region50: #{unet_up_forward.1} parent=5 // pred_check_branch
      %3640 = sbr.rel (%p3638) target = $region52
    $region51: #{unet_up_forward.1} parent=5 // pred_region
      %s3641 = ssub.s32 %s12, 2
      // Predicated region
      $region53: #{unet_up_forward.1} parent=51 // pred_check
        %p3642 = pneg %p177
      $region54: #{unet_up_forward.1} parent=51 // pred_check_branch
        %3644 = sbr.rel (%p3642) target = $region56
      $region55: #{unet_up_forward.1} parent=51 // pred_region
        %p3645 = scmp.lt.s32.totalorder %s18, 1
        %s3646 = scalar_select %p3645, %s18, 1
        %s3647 = smul.addr %s3646, 2
        %s3648 = smul.addr %s3647, 8
        %s3649 = scalar_lea.vmem %s6, %s3648
      $region56: #{unet_up_forward.1} parent=51 // pred_fallthru
        _
    $region52: #{unet_up_forward.1} parent=5 // pred_fallthru
      _
  $region6: #{unet_up_forward.1} parent=0 // loop_footer
    %s16 = sadd.s32 1, %s12
  $region7: #{unet_up_forward.1} parent=0 // loop_footer_branch
    %11 = sbr.rel target = $region3
  $region8: #{unet_up_forward.1} parent=0 // loop_exit
    _

</llo_original>
